<compile_context>
chip_gen: v7x
topology: tpu7x:2x2x1
jax: 0.10.0
libtpu: 0.0.40
codegen_flags: <defaults>
</compile_context>

<pallas_src>
import math

import numpy as np

import jax
import jax.numpy as jnp
from jax.experimental import pallas as pl
from jax.experimental.pallas import tpu as pltpu


# ----------------------------- in-kernel helpers ----------------------------

def _conv3(x, w_ref, b_ref, relu):
    # 'same' Conv1d(k=3) in channel-major (C, L) layout: one stacked-K bf16 matmul.
    xb = x.astype(jnp.bfloat16)
    C, L = xb.shape
    zero = jnp.zeros((C, 1), jnp.bfloat16)
    xm = jnp.concatenate([zero, xb[:, :L - 1]], axis=1)      # x[:, l-1]
    xp = jnp.concatenate([xb[:, 1:], zero], axis=1)          # x[:, l+1]
    xk = jnp.concatenate([xm, xb, xp], axis=0)               # (3*C, L)
    acc = jnp.dot(w_ref[...], xk, preferred_element_type=jnp.float32) + b_ref[...]
    return jnp.maximum(acc, 0.0) if relu else acc


def _maxpool2(x, sel_ref):
    # MaxPool1d(k=2) along lanes: pairwise max, then one bf16 lane-compaction matmul
    # (the 0/1 selection picks exactly one element per output, so values are exact).
    xb = x.astype(jnp.bfloat16)
    C, L = xb.shape
    xp = jnp.concatenate([xb[:, 1:], jnp.zeros((C, 1), jnp.bfloat16)], axis=1)  # x[:, l+1]
    m = jnp.maximum(xb, xp)
    return jnp.dot(m, sel_ref[...], preferred_element_type=jnp.float32)          # (C, L//2)


def _upsample(x, rep_ref):
    # Nearest-neighbour upsample along lanes via a bf16 replication matmul.
    return jnp.dot(x.astype(jnp.bfloat16), rep_ref[...],
                   preferred_element_type=jnp.float32)


# ------------------------------ fused VAE kernel ----------------------------

def _vae_kernel(x_ref, eps_ref,
                w1_ref, b1_ref, w2_ref, b2_ref, w3_ref, b3_ref, w4_ref, b4_ref,
                wh_ref, bh_ref,
                wd1_ref, bd1_ref, wd2_ref, bd2_ref, wd3_ref, bd3_ref, wd4_ref, bd4_ref,
                sel1_ref, sel2_ref, rep1_ref, rep2_ref,
                xhat_ref, mean_ref, logvar_ref):
    # ---------------- encoder ----------------
    x = x_ref[0]                                                # (20, 256) channel-major
    h = _conv3(x, w1_ref, b1_ref, relu=True)                    # (64, 256)
    h = _conv3(h, w2_ref, b2_ref, relu=True)                    # (64, 256)
    h = _maxpool2(h, sel1_ref)                                  # (64, 128)
    h = _conv3(h, w3_ref, b3_ref, relu=True)                    # (64, 128)
    h = _maxpool2(h, sel2_ref)                                  # (64, 64)
    h = jnp.dot(w4_ref[...], h.astype(jnp.bfloat16),
                preferred_element_type=jnp.float32) + b4_ref[...]   # (4, 64)  conv1x1

    # -------------- fused mean|logvar heads --------------
    # torch flatten: flat[c*64 + l] == h[c, l]; both Linear(256, 4) layers in one pass.
    q = (wh_ref[0] * h[0:1, :] + wh_ref[1] * h[1:2, :]
         + wh_ref[2] * h[2:3, :] + wh_ref[3] * h[3:4, :])       # (8, 64)
    ml = jnp.sum(q, axis=1, keepdims=True) + bh_ref[...]        # (8, 1) = [mean | logvar]
    mean = ml[0:4, :]
    logvar = ml[4:8, :]
    mean_ref[0] = mean
    logvar_ref[0] = logvar

    # reparameterization exactly as the torch source: z = mean + logvar * eps
    z = mean + logvar * eps_ref[0]                              # (4, 1)

    # ---------------- decoder ----------------
    # deconv1 on L=1 ('same' pad -> only the centre tap contributes), then upsample x4.
    a = jnp.dot(wd1_ref[...], z.astype(jnp.bfloat16),
                preferred_element_type=jnp.float32) + bd1_ref[...]   # (64, 1)
    a = jnp.maximum(a, 0.0)
    a = jnp.broadcast_to(a, (a.shape[0], 4))                    # (64, 4)   upsample x4
    a = _conv3(a, wd2_ref, bd2_ref, relu=True)                  # (64, 4)
    a = _upsample(a, rep1_ref)                                  # (64, 32)  upsample x8
    a = _conv3(a, wd3_ref, bd3_ref, relu=True)                  # (64, 32)
    a = _upsample(a, rep2_ref)                                  # (64, 256) upsample x8
    a = _conv3(a, wd4_ref, bd4_ref, relu=False)                 # (20, 256)
    xhat_ref[0] = a.astype(xhat_ref.dtype)


# ------------------------------ host-side prep ------------------------------

def _stack_k3(w):
    # PyTorch Conv1d weight (Cout, Cin, 3) -> (Cout, 3*Cin), tap-major blocks.
    co, ci, k = w.shape
    return jnp.transpose(w, (0, 2, 1)).reshape(co, k * ci)


def _col(b):
    return b.reshape(-1, 1)


def _even_select(L):
    # (L, L//2) 0/1 matrix: out[:, i] = in[:, 2*i]
    j = np.arange(L)[:, None]
    i = np.arange(L // 2)[None, :]
    return jnp.asarray((j == 2 * i).astype(np.float32), dtype=jnp.bfloat16)


def _replicate(L, s):
    # (L, L*s) 0/1 matrix: out[:, i] = in[:, i // s]  (nearest-neighbour upsample)
    j = np.arange(L)[:, None]
    i = np.arange(L * s)[None, :]
    return jnp.asarray((j == i // s).astype(np.float32), dtype=jnp.bfloat16)


def vae_forward(params, x, eps):
    # x: (B, 20, 256) PyTorch NCL layout; eps: (B, 4)
    B, C, L = x.shape
    D = 4

    w1 = _stack_k3(params["e1"][0]).astype(jnp.bfloat16)
    w2 = _stack_k3(params["e2"][0]).astype(jnp.bfloat16)
    w3 = _stack_k3(params["e3"][0]).astype(jnp.bfloat16)
    w4 = params["e4"][0][:, :, 0].astype(jnp.bfloat16)                        # (4, 64)
    wh = jnp.concatenate([params["mean"][0], params["logvar"][0]], axis=0)    # (8, 256)
    wh = jnp.transpose(wh.reshape(2 * D, D, 64), (1, 0, 2))                   # (4, 8, 64)
    bh = _col(jnp.concatenate([params["mean"][1], params["logvar"][1]], axis=0))
    wd1 = params["d1"][0][:, :, 1].astype(jnp.bfloat16)                       # centre tap
    wd2 = _stack_k3(params["d2"][0]).astype(jnp.bfloat16)
    wd3 = _stack_k3(params["d3"][0]).astype(jnp.bfloat16)
    wd4 = _stack_k3(params["d4"][0]).astype(jnp.bfloat16)

    sel1 = _even_select(256)      # (256, 128)
    sel2 = _even_select(128)      # (128, 64)
    rep1 = _replicate(4, 8)       # (4, 32)
    rep2 = _replicate(32, 8)      # (32, 256)

    def batch_spec(shape):
        return pl.BlockSpec((1,) + shape[1:], lambda i: (i,) + (0,) * (len(shape) - 1))

    def full_spec(shape):
        return pl.BlockSpec(shape, lambda i: (0,) * len(shape))

    operands = (
        x, eps.reshape(B, D, 1),
        w1, _col(params["e1"][1]), w2, _col(params["e2"][1]),
        w3, _col(params["e3"][1]), w4, _col(params["e4"][1]),
        wh, bh,
        wd1, _col(params["d1"][1]), wd2, _col(params["d2"][1]),
        wd3, _col(params["d3"][1]), wd4, _col(params["d4"][1]),
        sel1, sel2, rep1, rep2,
    )
    in_specs = [batch_spec(operands[0].shape), batch_spec(operands[1].shape)]
    in_specs += [full_spec(o.shape) for o in operands[2:]]

    flops_per_img = 2 * (64 * 60 * 256 + 64 * 192 * 256 + 64 * 256 * 128   # conv1/2 + pool1
                         + 64 * 192 * 128 + 64 * 128 * 64 + 4 * 64 * 64    # conv3 + pool2 + conv4
                         + 8 * 4 * 64 + 64 * 4 + 64 * 192 * 4              # heads + deconv1/2
                         + 64 * 4 * 32 + 64 * 192 * 32                     # up x8 + deconv3
                         + 64 * 32 * 256 + 20 * 192 * 256)                 # up x8 + deconv4
    weight_bytes = sum(int(o.size) * o.dtype.itemsize for o in operands[2:])
    cost = pl.CostEstimate(
        flops=B * flops_per_img,
        transcendentals=0,
        bytes_accessed=int(x.size) * 4 + B * (C * L + 2 * D) * 4 + weight_bytes)

    x_hat, mean, logvar = pl.pallas_call(
        _vae_kernel,
        out_shape=(jax.ShapeDtypeStruct((B, C, L), jnp.float32),
                   jax.ShapeDtypeStruct((B, D, 1), jnp.float32),
                   jax.ShapeDtypeStruct((B, D, 1), jnp.float32)),
        grid=(B,),
        in_specs=in_specs,
        out_specs=(batch_spec((B, C, L)), batch_spec((B, D, 1)), batch_spec((B, D, 1))),
        compiler_params=pltpu.CompilerParams(dimension_semantics=("parallel",)),
        cost_estimate=cost,
    )(*operands)
    return x_hat, mean.reshape(B, D), logvar.reshape(B, D)


# ------------------------------ parameters ---------------------------------

def init_params(key):
    def conv_init(k, cout, cin, ksz):
        kw, kb = jax.random.split(k)
        bound = 1.0 / math.sqrt(cin * ksz)
        w = jax.random.uniform(kw, (cout, cin, ksz), jnp.float32, -bound, bound)
        b = jax.random.uniform(kb, (cout,), jnp.float32, -bound, bound)
        return w, b

    def linear_init(k, out_f, in_f):
        kw, kb = jax.random.split(k)
        bound = 1.0 / math.sqrt(in_f)
        w = jax.random.uniform(kw, (out_f, in_f), jnp.float32, -bound, bound)
        b = jax.random.uniform(kb, (out_f,), jnp.float32, -bound, bound)
        return w, b

    keys = jax.random.split(key, 10)
    return {
        # encoder (PyTorch Conv1d weight layout: (Cout, Cin, K))
        "e1": conv_init(keys[0], 64, 20, 3),
        "e2": conv_init(keys[1], 64, 64, 3),
        "e3": conv_init(keys[2], 64, 64, 3),
        "e4": conv_init(keys[3], 4, 64, 1),
        # decoder
        "d1": conv_init(keys[4], 64, 4, 3),
        "d2": conv_init(keys[5], 64, 64, 3),
        "d3": conv_init(keys[6], 64, 64, 3),
        "d4": conv_init(keys[7], 20, 64, 3),
        # heads (PyTorch Linear weight layout: (out, in))
        "mean": linear_init(keys[8], 4, 256),
        "logvar": linear_init(keys[9], 4, 256),
    }


# --------------------------------- main -------------------------------------

if __name__ == "__main__":
    key = jax.random.PRNGKey(0)
    pkey, xkey, ekey = jax.random.split(key, 3)

    params = init_params(pkey)
    # Linear(256, 4) on the flattened encoder output forces L=256, C_in=20.
    x = jax.random.normal(xkey, (2, 20, 256), jnp.float32)      # NCL, like torch
    # TODO(synk): torch.randn_like noise stream is not reproducible in JAX; the
    # standard-normal epsilon is drawn deterministically with jax.random instead.
    eps = jax.random.normal(ekey, (2, 4), jnp.float32)

    x_hat, mean, logvar = jax.jit(vae_forward)(params, x, eps)
    jax.block_until_ready((x_hat, mean, logvar))

    assert x_hat.shape == (2, 20, 256)
    assert mean.shape == (2, 4) and logvar.shape == (2, 4)
    print("KERNEL_OK")
</pallas_src>

<mosaic_0001>
module attributes {stable_mosaic.version = 11 : i64} {
  func.func @_vae_kernel(%arg0: i32, %arg1: memref<1x20x256xf32, #tpu.memory_space<vmem>>, %arg2: memref<1x4x1xf32, #tpu.memory_space<vmem>>, %arg3: memref<64x60xbf16, #tpu.memory_space<vmem>>, %arg4: memref<64x1xf32, #tpu.memory_space<vmem>>, %arg5: memref<64x192xbf16, #tpu.memory_space<vmem>>, %arg6: memref<64x1xf32, #tpu.memory_space<vmem>>, %arg7: memref<64x192xbf16, #tpu.memory_space<vmem>>, %arg8: memref<64x1xf32, #tpu.memory_space<vmem>>, %arg9: memref<4x64xbf16, #tpu.memory_space<vmem>>, %arg10: memref<4x1xf32, #tpu.memory_space<vmem>>, %arg11: memref<4x8x64xf32, #tpu.memory_space<vmem>>, %arg12: memref<8x1xf32, #tpu.memory_space<vmem>>, %arg13: memref<64x4xbf16, #tpu.memory_space<vmem>>, %arg14: memref<64x1xf32, #tpu.memory_space<vmem>>, %arg15: memref<64x192xbf16, #tpu.memory_space<vmem>>, %arg16: memref<64x1xf32, #tpu.memory_space<vmem>>, %arg17: memref<64x192xbf16, #tpu.memory_space<vmem>>, %arg18: memref<64x1xf32, #tpu.memory_space<vmem>>, %arg19: memref<20x192xbf16, #tpu.memory_space<vmem>>, %arg20: memref<20x1xf32, #tpu.memory_space<vmem>>, %arg21: memref<256x128xbf16, #tpu.memory_space<vmem>>, %arg22: memref<128x64xbf16, #tpu.memory_space<vmem>>, %arg23: memref<4x32xbf16, #tpu.memory_space<vmem>>, %arg24: memref<32x256xbf16, #tpu.memory_space<vmem>>, %arg25: memref<1x20x256xf32, #tpu.memory_space<vmem>>, %arg26: memref<1x4x1xf32, #tpu.memory_space<vmem>>, %arg27: memref<1x4x1xf32, #tpu.memory_space<vmem>>) attributes {dimension_semantics = [#tpu.dimension_semantics<parallel>], iteration_bounds = array<i64: 2>, scalar_prefetch = 0 : i64, scratch_operands = 0 : i64, tpu.core_type = #tpu.core_type<tc>, window_params = [{transform_indices = @transform_0, window_bounds = array<i64: 1, 20, 256>}, {transform_indices = @transform_1, window_bounds = array<i64: 1, 4, 1>}, {pipeline_mode = #tpu.pipeline_mode<synchronous>, transform_indices = @transform_2, window_bounds = array<i64: 64, 60>}, {pipeline_mode = #tpu.pipeline_mode<synchronous>, transform_indices = @transform_3, window_bounds = array<i64: 64, 1>}, {pipeline_mode = #tpu.pipeline_mode<synchronous>, transform_indices = @transform_4, window_bounds = array<i64: 64, 192>}, {pipeline_mode = #tpu.pipeline_mode<synchronous>, transform_indices = @transform_5, window_bounds = array<i64: 64, 1>}, {pipeline_mode = #tpu.pipeline_mode<synchronous>, transform_indices = @transform_6, window_bounds = array<i64: 64, 192>}, {pipeline_mode = #tpu.pipeline_mode<synchronous>, transform_indices = @transform_7, window_bounds = array<i64: 64, 1>}, {pipeline_mode = #tpu.pipeline_mode<synchronous>, transform_indices = @transform_8, window_bounds = array<i64: 4, 64>}, {pipeline_mode = #tpu.pipeline_mode<synchronous>, transform_indices = @transform_9, window_bounds = array<i64: 4, 1>}, {pipeline_mode = #tpu.pipeline_mode<synchronous>, transform_indices = @transform_10, window_bounds = array<i64: 4, 8, 64>}, {pipeline_mode = #tpu.pipeline_mode<synchronous>, transform_indices = @transform_11, window_bounds = array<i64: 8, 1>}, {pipeline_mode = #tpu.pipeline_mode<synchronous>, transform_indices = @transform_12, window_bounds = array<i64: 64, 4>}, {pipeline_mode = #tpu.pipeline_mode<synchronous>, transform_indices = @transform_13, window_bounds = array<i64: 64, 1>}, {pipeline_mode = #tpu.pipeline_mode<synchronous>, transform_indices = @transform_14, window_bounds = array<i64: 64, 192>}, {pipeline_mode = #tpu.pipeline_mode<synchronous>, transform_indices = @transform_15, window_bounds = array<i64: 64, 1>}, {pipeline_mode = #tpu.pipeline_mode<synchronous>, transform_indices = @transform_16, window_bounds = array<i64: 64, 192>}, {pipeline_mode = #tpu.pipeline_mode<synchronous>, transform_indices = @transform_17, window_bounds = array<i64: 64, 1>}, {pipeline_mode = #tpu.pipeline_mode<synchronous>, transform_indices = @transform_18, window_bounds = array<i64: 20, 192>}, {pipeline_mode = #tpu.pipeline_mode<synchronous>, transform_indices = @transform_19, window_bounds = array<i64: 20, 1>}, {pipeline_mode = #tpu.pipeline_mode<synchronous>, transform_indices = @transform_20, window_bounds = array<i64: 256, 128>}, {pipeline_mode = #tpu.pipeline_mode<synchronous>, transform_indices = @transform_21, window_bounds = array<i64: 128, 64>}, {pipeline_mode = #tpu.pipeline_mode<synchronous>, transform_indices = @transform_22, window_bounds = array<i64: 4, 32>}, {pipeline_mode = #tpu.pipeline_mode<synchronous>, transform_indices = @transform_23, window_bounds = array<i64: 32, 256>}, {transform_indices = @transform_24, window_bounds = array<i64: 1, 20, 256>}, {transform_indices = @transform_25, window_bounds = array<i64: 1, 4, 1>}, {transform_indices = @transform_26, window_bounds = array<i64: 1, 4, 1>}]} {
    %c0 = arith.constant 0 : index
    %c0_0 = arith.constant 0 : index
    %c0_1 = arith.constant 0 : index
    %0 = vector.load %arg1[%c0, %c0_0, %c0_1] : memref<1x20x256xf32, #tpu.memory_space<vmem>>, vector<1x20x256xf32>
    %1 = vector.shape_cast %0 : vector<1x20x256xf32> to vector<20x256xf32>
    %2 = arith.truncf %1 : vector<20x256xf32> to vector<20x256xbf16>
    %cst = arith.constant 0.000000e+00 : bf16
    %3 = vector.broadcast %cst : bf16 to vector<20x1xbf16>
    %4 = vector.extract_strided_slice %2 {offsets = [0, 0], sizes = [20, 255], strides = [1, 1]} : vector<20x256xbf16> to vector<20x255xbf16>
    %5 = tpu.concatenate %3, %4 in 1 : vector<20x1xbf16>, vector<20x255xbf16> -> vector<20x256xbf16>
    %6 = vector.extract_strided_slice %2 {offsets = [0, 1], sizes = [20, 255], strides = [1, 1]} : vector<20x256xbf16> to vector<20x255xbf16>
    %7 = tpu.concatenate %6, %3 in 1 : vector<20x255xbf16>, vector<20x1xbf16> -> vector<20x256xbf16>
    %8 = tpu.concatenate %5, %2, %7 in 0 : vector<20x256xbf16>, vector<20x256xbf16>, vector<20x256xbf16> -> vector<60x256xbf16>
    %c0_2 = arith.constant 0 : index
    %c0_3 = arith.constant 0 : index
    %9 = vector.load %arg3[%c0_2, %c0_3] : memref<64x60xbf16, #tpu.memory_space<vmem>>, vector<64x60xbf16>
    %cst_4 = arith.constant dense<0.000000e+00> : vector<64x256xf32>
    %10 = tpu.matmul %9, %8, %cst_4 {dimension_numbers = #tpu.dot_dimension_numbers<[1], [0], [0], [1], [0, 0, 1, 1], [], []>} : vector<64x60xbf16>, vector<60x256xbf16>, vector<64x256xf32> -> vector<64x256xf32>
    %c0_5 = arith.constant 0 : index
    %c0_6 = arith.constant 0 : index
    %11 = vector.load %arg4[%c0_5, %c0_6] : memref<64x1xf32, #tpu.memory_space<vmem>>, vector<64x1xf32>
    %12 = vector.broadcast %11 : vector<64x1xf32> to vector<64x256xf32>
    %13 = arith.addf %10, %12 : vector<64x256xf32>
    %cst_7 = arith.constant 0.000000e+00 : f32
    %14 = vector.broadcast %cst_7 : f32 to vector<64x256xf32>
    %15 = arith.maximumf %13, %14 : vector<64x256xf32>
    %16 = arith.truncf %15 : vector<64x256xf32> to vector<64x256xbf16>
    %cst_8 = arith.constant 0.000000e+00 : bf16
    %17 = vector.broadcast %cst_8 : bf16 to vector<64x1xbf16>
    %18 = vector.extract_strided_slice %16 {offsets = [0, 0], sizes = [64, 255], strides = [1, 1]} : vector<64x256xbf16> to vector<64x255xbf16>
    %19 = tpu.concatenate %17, %18 in 1 : vector<64x1xbf16>, vector<64x255xbf16> -> vector<64x256xbf16>
    %20 = vector.extract_strided_slice %16 {offsets = [0, 1], sizes = [64, 255], strides = [1, 1]} : vector<64x256xbf16> to vector<64x255xbf16>
    %21 = tpu.concatenate %20, %17 in 1 : vector<64x255xbf16>, vector<64x1xbf16> -> vector<64x256xbf16>
    %22 = tpu.concatenate %19, %16, %21 in 0 : vector<64x256xbf16>, vector<64x256xbf16>, vector<64x256xbf16> -> vector<192x256xbf16>
    %c0_9 = arith.constant 0 : index
    %c0_10 = arith.constant 0 : index
    %23 = vector.load %arg5[%c0_9, %c0_10] : memref<64x192xbf16, #tpu.memory_space<vmem>>, vector<64x192xbf16>
    %cst_11 = arith.constant dense<0.000000e+00> : vector<64x256xf32>
    %24 = tpu.matmul %23, %22, %cst_11 {dimension_numbers = #tpu.dot_dimension_numbers<[1], [0], [0], [1], [0, 0, 1, 1], [], []>} : vector<64x192xbf16>, vector<192x256xbf16>, vector<64x256xf32> -> vector<64x256xf32>
    %c0_12 = arith.constant 0 : index
    %c0_13 = arith.constant 0 : index
    %25 = vector.load %arg6[%c0_12, %c0_13] : memref<64x1xf32, #tpu.memory_space<vmem>>, vector<64x1xf32>
    %26 = vector.broadcast %25 : vector<64x1xf32> to vector<64x256xf32>
    %27 = arith.addf %24, %26 : vector<64x256xf32>
    %cst_14 = arith.constant 0.000000e+00 : f32
    %28 = vector.broadcast %cst_14 : f32 to vector<64x256xf32>
    %29 = arith.maximumf %27, %28 : vector<64x256xf32>
    %30 = arith.truncf %29 : vector<64x256xf32> to vector<64x256xbf16>
    %31 = vector.extract_strided_slice %30 {offsets = [0, 1], sizes = [64, 255], strides = [1, 1]} : vector<64x256xbf16> to vector<64x255xbf16>
    %cst_15 = arith.constant 0.000000e+00 : bf16
    %32 = vector.broadcast %cst_15 : bf16 to vector<64x1xbf16>
    %33 = tpu.concatenate %31, %32 in 1 : vector<64x255xbf16>, vector<64x1xbf16> -> vector<64x256xbf16>
    %34 = arith.maximumf %30, %33 : vector<64x256xbf16>
    %c0_16 = arith.constant 0 : index
    %c0_17 = arith.constant 0 : index
    %35 = vector.load %arg21[%c0_16, %c0_17] : memref<256x128xbf16, #tpu.memory_space<vmem>>, vector<256x128xbf16>
    %cst_18 = arith.constant dense<0.000000e+00> : vector<64x128xf32>
    %36 = tpu.matmul %34, %35, %cst_18 {dimension_numbers = #tpu.dot_dimension_numbers<[1], [0], [0], [1], [0, 0, 1, 1], [], []>} : vector<64x256xbf16>, vector<256x128xbf16>, vector<64x128xf32> -> vector<64x128xf32>
    %37 = arith.truncf %36 : vector<64x128xf32> to vector<64x128xbf16>
    %cst_19 = arith.constant 0.000000e+00 : bf16
    %38 = vector.broadcast %cst_19 : bf16 to vector<64x1xbf16>
    %39 = vector.extract_strided_slice %37 {offsets = [0, 0], sizes = [64, 127], strides = [1, 1]} : vector<64x128xbf16> to vector<64x127xbf16>
    %40 = tpu.concatenate %38, %39 in 1 : vector<64x1xbf16>, vector<64x127xbf16> -> vector<64x128xbf16>
    %41 = vector.extract_strided_slice %37 {offsets = [0, 1], sizes = [64, 127], strides = [1, 1]} : vector<64x128xbf16> to vector<64x127xbf16>
    %42 = tpu.concatenate %41, %38 in 1 : vector<64x127xbf16>, vector<64x1xbf16> -> vector<64x128xbf16>
    %43 = tpu.concatenate %40, %37, %42 in 0 : vector<64x128xbf16>, vector<64x128xbf16>, vector<64x128xbf16> -> vector<192x128xbf16>
    %c0_20 = arith.constant 0 : index
    %c0_21 = arith.constant 0 : index
    %44 = vector.load %arg7[%c0_20, %c0_21] : memref<64x192xbf16, #tpu.memory_space<vmem>>, vector<64x192xbf16>
    %cst_22 = arith.constant dense<0.000000e+00> : vector<64x128xf32>
    %45 = tpu.matmul %44, %43, %cst_22 {dimension_numbers = #tpu.dot_dimension_numbers<[1], [0], [0], [1], [0, 0, 1, 1], [], []>} : vector<64x192xbf16>, vector<192x128xbf16>, vector<64x128xf32> -> vector<64x128xf32>
    %c0_23 = arith.constant 0 : index
    %c0_24 = arith.constant 0 : index
    %46 = vector.load %arg8[%c0_23, %c0_24] : memref<64x1xf32, #tpu.memory_space<vmem>>, vector<64x1xf32>
    %47 = vector.broadcast %46 : vector<64x1xf32> to vector<64x128xf32>
    %48 = arith.addf %45, %47 : vector<64x128xf32>
    %cst_25 = arith.constant 0.000000e+00 : f32
    %49 = vector.broadcast %cst_25 : f32 to vector<64x128xf32>
    %50 = arith.maximumf %48, %49 : vector<64x128xf32>
    %51 = arith.truncf %50 : vector<64x128xf32> to vector<64x128xbf16>
    %52 = vector.extract_strided_slice %51 {offsets = [0, 1], sizes = [64, 127], strides = [1, 1]} : vector<64x128xbf16> to vector<64x127xbf16>
    %cst_26 = arith.constant 0.000000e+00 : bf16
    %53 = vector.broadcast %cst_26 : bf16 to vector<64x1xbf16>
    %54 = tpu.concatenate %52, %53 in 1 : vector<64x127xbf16>, vector<64x1xbf16> -> vector<64x128xbf16>
    %55 = arith.maximumf %51, %54 : vector<64x128xbf16>
    %c0_27 = arith.constant 0 : index
    %c0_28 = arith.constant 0 : index
    %56 = vector.load %arg22[%c0_27, %c0_28] : memref<128x64xbf16, #tpu.memory_space<vmem>>, vector<128x64xbf16>
    %cst_29 = arith.constant dense<0.000000e+00> : vector<64x64xf32>
    %57 = tpu.matmul %55, %56, %cst_29 {dimension_numbers = #tpu.dot_dimension_numbers<[1], [0], [0], [1], [0, 0, 1, 1], [], []>} : vector<64x128xbf16>, vector<128x64xbf16>, vector<64x64xf32> -> vector<64x64xf32>
    %c0_30 = arith.constant 0 : index
    %c0_31 = arith.constant 0 : index
    %58 = vector.load %arg9[%c0_30, %c0_31] : memref<4x64xbf16, #tpu.memory_space<vmem>>, vector<4x64xbf16>
    %59 = arith.truncf %57 : vector<64x64xf32> to vector<64x64xbf16>
    %cst_32 = arith.constant dense<0.000000e+00> : vector<4x64xf32>
    %60 = tpu.matmul %58, %59, %cst_32 {dimension_numbers = #tpu.dot_dimension_numbers<[1], [0], [0], [1], [0, 0, 1, 1], [], []>} : vector<4x64xbf16>, vector<64x64xbf16>, vector<4x64xf32> -> vector<4x64xf32>
    %c0_33 = arith.constant 0 : index
    %c0_34 = arith.constant 0 : index
    %61 = vector.load %arg10[%c0_33, %c0_34] : memref<4x1xf32, #tpu.memory_space<vmem>>, vector<4x1xf32>
    %62 = vector.broadcast %61 : vector<4x1xf32> to vector<4x64xf32>
    %63 = arith.addf %60, %62 : vector<4x64xf32>
    %c0_35 = arith.constant 0 : index
    %c0_36 = arith.constant 0 : index
    %c0_37 = arith.constant 0 : index
    %64 = vector.load %arg11[%c0_35, %c0_36, %c0_37] : memref<4x8x64xf32, #tpu.memory_space<vmem>>, vector<1x8x64xf32>
    %65 = vector.shape_cast %64 : vector<1x8x64xf32> to vector<8x64xf32>
    %66 = vector.extract_strided_slice %63 {offsets = [0, 0], sizes = [1, 64], strides = [1, 1]} : vector<4x64xf32> to vector<1x64xf32>
    %67 = vector.broadcast %66 : vector<1x64xf32> to vector<8x64xf32>
    %68 = arith.mulf %65, %67 : vector<8x64xf32>
    %c1 = arith.constant 1 : index
    %c0_38 = arith.constant 0 : index
    %c0_39 = arith.constant 0 : index
    %69 = vector.load %arg11[%c1, %c0_38, %c0_39] : memref<4x8x64xf32, #tpu.memory_space<vmem>>, vector<1x8x64xf32>
    %70 = vector.shape_cast %69 : vector<1x8x64xf32> to vector<8x64xf32>
    %71 = vector.extract_strided_slice %63 {offsets = [1, 0], sizes = [1, 64], strides = [1, 1]} : vector<4x64xf32> to vector<1x64xf32>
    %72 = vector.broadcast %71 : vector<1x64xf32> to vector<8x64xf32>
    %73 = arith.mulf %70, %72 : vector<8x64xf32>
    %74 = arith.addf %68, %73 : vector<8x64xf32>
    %c2 = arith.constant 2 : index
    %c0_40 = arith.constant 0 : index
    %c0_41 = arith.constant 0 : index
    %75 = vector.load %arg11[%c2, %c0_40, %c0_41] : memref<4x8x64xf32, #tpu.memory_space<vmem>>, vector<1x8x64xf32>
    %76 = vector.shape_cast %75 : vector<1x8x64xf32> to vector<8x64xf32>
    %77 = vector.extract_strided_slice %63 {offsets = [2, 0], sizes = [1, 64], strides = [1, 1]} : vector<4x64xf32> to vector<1x64xf32>
    %78 = vector.broadcast %77 : vector<1x64xf32> to vector<8x64xf32>
    %79 = arith.mulf %76, %78 : vector<8x64xf32>
    %80 = arith.addf %74, %79 : vector<8x64xf32>
    %c3 = arith.constant 3 : index
    %c0_42 = arith.constant 0 : index
    %c0_43 = arith.constant 0 : index
    %81 = vector.load %arg11[%c3, %c0_42, %c0_43] : memref<4x8x64xf32, #tpu.memory_space<vmem>>, vector<1x8x64xf32>
    %82 = vector.shape_cast %81 : vector<1x8x64xf32> to vector<8x64xf32>
    %83 = vector.extract_strided_slice %63 {offsets = [3, 0], sizes = [1, 64], strides = [1, 1]} : vector<4x64xf32> to vector<1x64xf32>
    %84 = vector.broadcast %83 : vector<1x64xf32> to vector<8x64xf32>
    %85 = arith.mulf %82, %84 : vector<8x64xf32>
    %86 = arith.addf %80, %85 : vector<8x64xf32>
    %cst_44 = arith.constant dense<0.000000e+00> : vector<8xf32>
    %87 = vector.multi_reduction <add>, %86, %cst_44 [1] : vector<8x64xf32> to vector<8xf32>
    %88 = vector.shape_cast %87 : vector<8xf32> to vector<8x1xf32>
    %c0_45 = arith.constant 0 : index
    %c0_46 = arith.constant 0 : index
    %89 = vector.load %arg12[%c0_45, %c0_46] : memref<8x1xf32, #tpu.memory_space<vmem>>, vector<8x1xf32>
    %90 = arith.addf %88, %89 : vector<8x1xf32>
    %91 = vector.extract_strided_slice %90 {offsets = [0, 0], sizes = [4, 1], strides = [1, 1]} : vector<8x1xf32> to vector<4x1xf32>
    %92 = vector.extract_strided_slice %90 {offsets = [4, 0], sizes = [4, 1], strides = [1, 1]} : vector<8x1xf32> to vector<4x1xf32>
    %c0_47 = arith.constant 0 : index
    %c0_48 = arith.constant 0 : index
    %c0_49 = arith.constant 0 : index
    %93 = vector.load %arg26[%c0_47, %c0_48, %c0_49] : memref<1x4x1xf32, #tpu.memory_space<vmem>>, vector<1x4x1xf32>
    %94 = vector.shape_cast %93 : vector<1x4x1xf32> to vector<4x1xf32>
    %95 = vector.shape_cast %91 : vector<4x1xf32> to vector<1x4x1xf32>
    tpu.vector_store %arg26[%c0_47, %c0_48, %c0_49], %95 {strides = array<i32>} : memref<1x4x1xf32, #tpu.memory_space<vmem>>, vector<1x4x1xf32>,
    %c0_50 = arith.constant 0 : index
    %c0_51 = arith.constant 0 : index
    %c0_52 = arith.constant 0 : index
    %96 = vector.load %arg27[%c0_50, %c0_51, %c0_52] : memref<1x4x1xf32, #tpu.memory_space<vmem>>, vector<1x4x1xf32>
    %97 = vector.shape_cast %96 : vector<1x4x1xf32> to vector<4x1xf32>
    %98 = vector.shape_cast %92 : vector<4x1xf32> to vector<1x4x1xf32>
    tpu.vector_store %arg27[%c0_50, %c0_51, %c0_52], %98 {strides = array<i32>} : memref<1x4x1xf32, #tpu.memory_space<vmem>>, vector<1x4x1xf32>,
    %c0_53 = arith.constant 0 : index
    %c0_54 = arith.constant 0 : index
    %c0_55 = arith.constant 0 : index
    %99 = vector.load %arg2[%c0_53, %c0_54, %c0_55] : memref<1x4x1xf32, #tpu.memory_space<vmem>>, vector<1x4x1xf32>
    %100 = vector.shape_cast %99 : vector<1x4x1xf32> to vector<4x1xf32>
    %101 = arith.mulf %92, %100 : vector<4x1xf32>
    %102 = arith.addf %91, %101 : vector<4x1xf32>
    %c0_56 = arith.constant 0 : index
    %c0_57 = arith.constant 0 : index
    %103 = vector.load %arg13[%c0_56, %c0_57] : memref<64x4xbf16, #tpu.memory_space<vmem>>, vector<64x4xbf16>
    %104 = arith.truncf %102 : vector<4x1xf32> to vector<4x1xbf16>
    %cst_58 = arith.constant dense<0.000000e+00> : vector<64x1xf32>
    %105 = tpu.matmul %103, %104, %cst_58 {dimension_numbers = #tpu.dot_dimension_numbers<[1], [0], [0], [1], [0, 0, 1, 1], [], []>} : vector<64x4xbf16>, vector<4x1xbf16>, vector<64x1xf32> -> vector<64x1xf32>
    %c0_59 = arith.constant 0 : index
    %c0_60 = arith.constant 0 : index
    %106 = vector.load %arg14[%c0_59, %c0_60] : memref<64x1xf32, #tpu.memory_space<vmem>>, vector<64x1xf32>
    %107 = arith.addf %105, %106 : vector<64x1xf32>
    %cst_61 = arith.constant 0.000000e+00 : f32
    %108 = vector.broadcast %cst_61 : f32 to vector<64x1xf32>
    %109 = arith.maximumf %107, %108 : vector<64x1xf32>
    %110 = vector.shape_cast %109 : vector<64x1xf32> to vector<64x1xf32>
    %111 = vector.broadcast %110 : vector<64x1xf32> to vector<64x4xf32>
    %112 = arith.truncf %111 : vector<64x4xf32> to vector<64x4xbf16>
    %cst_62 = arith.constant 0.000000e+00 : bf16
    %113 = vector.broadcast %cst_62 : bf16 to vector<64x1xbf16>
    %114 = vector.extract_strided_slice %112 {offsets = [0, 0], sizes = [64, 3], strides = [1, 1]} : vector<64x4xbf16> to vector<64x3xbf16>
    %115 = tpu.concatenate %113, %114 in 1 : vector<64x1xbf16>, vector<64x3xbf16> -> vector<64x4xbf16>
    %116 = vector.extract_strided_slice %112 {offsets = [0, 1], sizes = [64, 3], strides = [1, 1]} : vector<64x4xbf16> to vector<64x3xbf16>
    %117 = tpu.concatenate %116, %113 in 1 : vector<64x3xbf16>, vector<64x1xbf16> -> vector<64x4xbf16>
    %118 = tpu.concatenate %115, %112, %117 in 0 : vector<64x4xbf16>, vector<64x4xbf16>, vector<64x4xbf16> -> vector<192x4xbf16>
    %c0_63 = arith.constant 0 : index
    %c0_64 = arith.constant 0 : index
    %119 = vector.load %arg15[%c0_63, %c0_64] : memref<64x192xbf16, #tpu.memory_space<vmem>>, vector<64x192xbf16>
    %cst_65 = arith.constant dense<0.000000e+00> : vector<64x4xf32>
    %120 = tpu.matmul %119, %118, %cst_65 {dimension_numbers = #tpu.dot_dimension_numbers<[1], [0], [0], [1], [0, 0, 1, 1], [], []>} : vector<64x192xbf16>, vector<192x4xbf16>, vector<64x4xf32> -> vector<64x4xf32>
    %c0_66 = arith.constant 0 : index
    %c0_67 = arith.constant 0 : index
    %121 = vector.load %arg16[%c0_66, %c0_67] : memref<64x1xf32, #tpu.memory_space<vmem>>, vector<64x1xf32>
    %122 = vector.broadcast %121 : vector<64x1xf32> to vector<64x4xf32>
    %123 = arith.addf %120, %122 : vector<64x4xf32>
    %cst_68 = arith.constant 0.000000e+00 : f32
    %124 = vector.broadcast %cst_68 : f32 to vector<64x4xf32>
    %125 = arith.maximumf %123, %124 : vector<64x4xf32>
    %126 = arith.truncf %125 : vector<64x4xf32> to vector<64x4xbf16>
    %c0_69 = arith.constant 0 : index
    %c0_70 = arith.constant 0 : index
    %127 = vector.load %arg23[%c0_69, %c0_70] : memref<4x32xbf16, #tpu.memory_space<vmem>>, vector<4x32xbf16>
    %cst_71 = arith.constant dense<0.000000e+00> : vector<64x32xf32>
    %128 = tpu.matmul %126, %127, %cst_71 {dimension_numbers = #tpu.dot_dimension_numbers<[1], [0], [0], [1], [0, 0, 1, 1], [], []>} : vector<64x4xbf16>, vector<4x32xbf16>, vector<64x32xf32> -> vector<64x32xf32>
    %129 = arith.truncf %128 : vector<64x32xf32> to vector<64x32xbf16>
    %cst_72 = arith.constant 0.000000e+00 : bf16
    %130 = vector.broadcast %cst_72 : bf16 to vector<64x1xbf16>
    %131 = vector.extract_strided_slice %129 {offsets = [0, 0], sizes = [64, 31], strides = [1, 1]} : vector<64x32xbf16> to vector<64x31xbf16>
    %132 = tpu.concatenate %130, %131 in 1 : vector<64x1xbf16>, vector<64x31xbf16> -> vector<64x32xbf16>
    %133 = vector.extract_strided_slice %129 {offsets = [0, 1], sizes = [64, 31], strides = [1, 1]} : vector<64x32xbf16> to vector<64x31xbf16>
    %134 = tpu.concatenate %133, %130 in 1 : vector<64x31xbf16>, vector<64x1xbf16> -> vector<64x32xbf16>
    %135 = tpu.concatenate %132, %129, %134 in 0 : vector<64x32xbf16>, vector<64x32xbf16>, vector<64x32xbf16> -> vector<192x32xbf16>
    %c0_73 = arith.constant 0 : index
    %c0_74 = arith.constant 0 : index
    %136 = vector.load %arg17[%c0_73, %c0_74] : memref<64x192xbf16, #tpu.memory_space<vmem>>, vector<64x192xbf16>
    %cst_75 = arith.constant dense<0.000000e+00> : vector<64x32xf32>
    %137 = tpu.matmul %136, %135, %cst_75 {dimension_numbers = #tpu.dot_dimension_numbers<[1], [0], [0], [1], [0, 0, 1, 1], [], []>} : vector<64x192xbf16>, vector<192x32xbf16>, vector<64x32xf32> -> vector<64x32xf32>
    %c0_76 = arith.constant 0 : index
    %c0_77 = arith.constant 0 : index
    %138 = vector.load %arg18[%c0_76, %c0_77] : memref<64x1xf32, #tpu.memory_space<vmem>>, vector<64x1xf32>
    %139 = vector.broadcast %138 : vector<64x1xf32> to vector<64x32xf32>
    %140 = arith.addf %137, %139 : vector<64x32xf32>
    %cst_78 = arith.constant 0.000000e+00 : f32
    %141 = vector.broadcast %cst_78 : f32 to vector<64x32xf32>
    %142 = arith.maximumf %140, %141 : vector<64x32xf32>
    %143 = arith.truncf %142 : vector<64x32xf32> to vector<64x32xbf16>
    %c0_79 = arith.constant 0 : index
    %c0_80 = arith.constant 0 : index
    %144 = vector.load %arg24[%c0_79, %c0_80] : memref<32x256xbf16, #tpu.memory_space<vmem>>, vector<32x256xbf16>
    %cst_81 = arith.constant dense<0.000000e+00> : vector<64x256xf32>
    %145 = tpu.matmul %143, %144, %cst_81 {dimension_numbers = #tpu.dot_dimension_numbers<[1], [0], [0], [1], [0, 0, 1, 1], [], []>} : vector<64x32xbf16>, vector<32x256xbf16>, vector<64x256xf32> -> vector<64x256xf32>
    %146 = arith.truncf %145 : vector<64x256xf32> to vector<64x256xbf16>
    %cst_82 = arith.constant 0.000000e+00 : bf16
    %147 = vector.broadcast %cst_82 : bf16 to vector<64x1xbf16>
    %148 = vector.extract_strided_slice %146 {offsets = [0, 0], sizes = [64, 255], strides = [1, 1]} : vector<64x256xbf16> to vector<64x255xbf16>
    %149 = tpu.concatenate %147, %148 in 1 : vector<64x1xbf16>, vector<64x255xbf16> -> vector<64x256xbf16>
    %150 = vector.extract_strided_slice %146 {offsets = [0, 1], sizes = [64, 255], strides = [1, 1]} : vector<64x256xbf16> to vector<64x255xbf16>
    %151 = tpu.concatenate %150, %147 in 1 : vector<64x255xbf16>, vector<64x1xbf16> -> vector<64x256xbf16>
    %152 = tpu.concatenate %149, %146, %151 in 0 : vector<64x256xbf16>, vector<64x256xbf16>, vector<64x256xbf16> -> vector<192x256xbf16>
    %c0_83 = arith.constant 0 : index
    %c0_84 = arith.constant 0 : index
    %153 = vector.load %arg19[%c0_83, %c0_84] : memref<20x192xbf16, #tpu.memory_space<vmem>>, vector<20x192xbf16>
    %cst_85 = arith.constant dense<0.000000e+00> : vector<20x256xf32>
    %154 = tpu.matmul %153, %152, %cst_85 {dimension_numbers = #tpu.dot_dimension_numbers<[1], [0], [0], [1], [0, 0, 1, 1], [], []>} : vector<20x192xbf16>, vector<192x256xbf16>, vector<20x256xf32> -> vector<20x256xf32>
    %c0_86 = arith.constant 0 : index
    %c0_87 = arith.constant 0 : index
    %155 = vector.load %arg20[%c0_86, %c0_87] : memref<20x1xf32, #tpu.memory_space<vmem>>, vector<20x1xf32>
    %156 = vector.broadcast %155 : vector<20x1xf32> to vector<20x256xf32>
    %157 = arith.addf %154, %156 : vector<20x256xf32>
    %c0_88 = arith.constant 0 : index
    %c0_89 = arith.constant 0 : index
    %c0_90 = arith.constant 0 : index
    %158 = vector.load %arg25[%c0_88, %c0_89, %c0_90] : memref<1x20x256xf32, #tpu.memory_space<vmem>>, vector<1x20x256xf32>
    %159 = vector.shape_cast %158 : vector<1x20x256xf32> to vector<20x256xf32>
    %160 = vector.shape_cast %157 : vector<20x256xf32> to vector<1x20x256xf32>
    tpu.vector_store %arg25[%c0_88, %c0_89, %c0_90], %160 {strides = array<i32>} : memref<1x20x256xf32, #tpu.memory_space<vmem>>, vector<1x20x256xf32>,
    return
  }
  func.func @transform_0(%arg0: i32) -> (i32, i32, i32) {
    %c0_i32 = arith.constant 0 : i32
    %c0_i32_0 = arith.constant 0 : i32
    %c0_i32_1 = arith.constant 0 : i32
    return %arg0, %c0_i32, %c0_i32_0 : i32, i32, i32
  }
  func.func @transform_1(%arg0: i32) -> (i32, i32, i32) {
    %c0_i32 = arith.constant 0 : i32
    %c0_i32_0 = arith.constant 0 : i32
    %c0_i32_1 = arith.constant 0 : i32
    return %arg0, %c0_i32, %c0_i32_0 : i32, i32, i32
  }
  func.func @transform_2(%arg0: i32) -> (i32, i32) {
    %c0_i32 = arith.constant 0 : i32
    %c0_i32_0 = arith.constant 0 : i32
    %c0_i32_1 = arith.constant 0 : i32
    return %c0_i32, %c0_i32_0 : i32, i32
  }
  func.func @transform_3(%arg0: i32) -> (i32, i32) {
    %c0_i32 = arith.constant 0 : i32
    %c0_i32_0 = arith.constant 0 : i32
    %c0_i32_1 = arith.constant 0 : i32
    return %c0_i32, %c0_i32_0 : i32, i32
  }
  func.func @transform_4(%arg0: i32) -> (i32, i32) {
    %c0_i32 = arith.constant 0 : i32
    %c0_i32_0 = arith.constant 0 : i32
    %c0_i32_1 = arith.constant 0 : i32
    return %c0_i32, %c0_i32_0 : i32, i32
  }
  func.func @transform_5(%arg0: i32) -> (i32, i32) {
    %c0_i32 = arith.constant 0 : i32
    %c0_i32_0 = arith.constant 0 : i32
    %c0_i32_1 = arith.constant 0 : i32
    return %c0_i32, %c0_i32_0 : i32, i32
  }
  func.func @transform_6(%arg0: i32) -> (i32, i32) {
    %c0_i32 = arith.constant 0 : i32
    %c0_i32_0 = arith.constant 0 : i32
    %c0_i32_1 = arith.constant 0 : i32
    return %c0_i32, %c0_i32_0 : i32, i32
  }
  func.func @transform_7(%arg0: i32) -> (i32, i32) {
    %c0_i32 = arith.constant 0 : i32
    %c0_i32_0 = arith.constant 0 : i32
    %c0_i32_1 = arith.constant 0 : i32
    return %c0_i32, %c0_i32_0 : i32, i32
  }
  func.func @transform_8(%arg0: i32) -> (i32, i32) {
    %c0_i32 = arith.constant 0 : i32
    %c0_i32_0 = arith.constant 0 : i32
    %c0_i32_1 = arith.constant 0 : i32
    return %c0_i32, %c0_i32_0 : i32, i32
  }
  func.func @transform_9(%arg0: i32) -> (i32, i32) {
    %c0_i32 = arith.constant 0 : i32
    %c0_i32_0 = arith.constant 0 : i32
    %c0_i32_1 = arith.constant 0 : i32
    return %c0_i32, %c0_i32_0 : i32, i32
  }
  func.func @transform_10(%arg0: i32) -> (i32, i32, i32) {
    %c0_i32 = arith.constant 0 : i32
    %c0_i32_0 = arith.constant 0 : i32
    %c0_i32_1 = arith.constant 0 : i32
    %c0_i32_2 = arith.constant 0 : i32
    return %c0_i32, %c0_i32_0, %c0_i32_1 : i32, i32, i32
  }
  func.func @transform_11(%arg0: i32) -> (i32, i32) {
    %c0_i32 = arith.constant 0 : i32
    %c0_i32_0 = arith.constant 0 : i32
    %c0_i32_1 = arith.constant 0 : i32
    return %c0_i32, %c0_i32_0 : i32, i32
  }
  func.func @transform_12(%arg0: i32) -> (i32, i32) {
    %c0_i32 = arith.constant 0 : i32
    %c0_i32_0 = arith.constant 0 : i32
    %c0_i32_1 = arith.constant 0 : i32
    return %c0_i32, %c0_i32_0 : i32, i32
  }
  func.func @transform_13(%arg0: i32) -> (i32, i32) {
    %c0_i32 = arith.constant 0 : i32
    %c0_i32_0 = arith.constant 0 : i32
    %c0_i32_1 = arith.constant 0 : i32
    return %c0_i32, %c0_i32_0 : i32, i32
  }
  func.func @transform_14(%arg0: i32) -> (i32, i32) {
    %c0_i32 = arith.constant 0 : i32
    %c0_i32_0 = arith.constant 0 : i32
    %c0_i32_1 = arith.constant 0 : i32
    return %c0_i32, %c0_i32_0 : i32, i32
  }
  func.func @transform_15(%arg0: i32) -> (i32, i32) {
    %c0_i32 = arith.constant 0 : i32
    %c0_i32_0 = arith.constant 0 : i32
    %c0_i32_1 = arith.constant 0 : i32
    return %c0_i32, %c0_i32_0 : i32, i32
  }
  func.func @transform_16(%arg0: i32) -> (i32, i32) {
    %c0_i32 = arith.constant 0 : i32
    %c0_i32_0 = arith.constant 0 : i32
    %c0_i32_1 = arith.constant 0 : i32
    return %c0_i32, %c0_i32_0 : i32, i32
  }
  func.func @transform_17(%arg0: i32) -> (i32, i32) {
    %c0_i32 = arith.constant 0 : i32
    %c0_i32_0 = arith.constant 0 : i32
    %c0_i32_1 = arith.constant 0 : i32
    return %c0_i32, %c0_i32_0 : i32, i32
  }
  func.func @transform_18(%arg0: i32) -> (i32, i32) {
    %c0_i32 = arith.constant 0 : i32
    %c0_i32_0 = arith.constant 0 : i32
    %c0_i32_1 = arith.constant 0 : i32
    return %c0_i32, %c0_i32_0 : i32, i32
  }
  func.func @transform_19(%arg0: i32) -> (i32, i32) {
    %c0_i32 = arith.constant 0 : i32
    %c0_i32_0 = arith.constant 0 : i32
    %c0_i32_1 = arith.constant 0 : i32
    return %c0_i32, %c0_i32_0 : i32, i32
  }
  func.func @transform_20(%arg0: i32) -> (i32, i32) {
    %c0_i32 = arith.constant 0 : i32
    %c0_i32_0 = arith.constant 0 : i32
    %c0_i32_1 = arith.constant 0 : i32
    return %c0_i32, %c0_i32_0 : i32, i32
  }
  func.func @transform_21(%arg0: i32) -> (i32, i32) {
    %c0_i32 = arith.constant 0 : i32
    %c0_i32_0 = arith.constant 0 : i32
    %c0_i32_1 = arith.constant 0 : i32
    return %c0_i32, %c0_i32_0 : i32, i32
  }
  func.func @transform_22(%arg0: i32) -> (i32, i32) {
    %c0_i32 = arith.constant 0 : i32
    %c0_i32_0 = arith.constant 0 : i32
    %c0_i32_1 = arith.constant 0 : i32
    return %c0_i32, %c0_i32_0 : i32, i32
  }
  func.func @transform_23(%arg0: i32) -> (i32, i32) {
    %c0_i32 = arith.constant 0 : i32
    %c0_i32_0 = arith.constant 0 : i32
    %c0_i32_1 = arith.constant 0 : i32
    return %c0_i32, %c0_i32_0 : i32, i32
  }
  func.func @transform_24(%arg0: i32) -> (i32, i32, i32) {
    %c0_i32 = arith.constant 0 : i32
    %c0_i32_0 = arith.constant 0 : i32
    %c0_i32_1 = arith.constant 0 : i32
    return %arg0, %c0_i32, %c0_i32_0 : i32, i32, i32
  }
  func.func @transform_25(%arg0: i32) -> (i32, i32, i32) {
    %c0_i32 = arith.constant 0 : i32
    %c0_i32_0 = arith.constant 0 : i32
    %c0_i32_1 = arith.constant 0 : i32
    return %arg0, %c0_i32, %c0_i32_0 : i32, i32, i32
  }
  func.func @transform_26(%arg0: i32) -> (i32, i32, i32) {
    %c0_i32 = arith.constant 0 : i32
    %c0_i32_0 = arith.constant 0 : i32
    %c0_i32_1 = arith.constant 0 : i32
    return %arg0, %c0_i32, %c0_i32_0 : i32, i32, i32
  }
}

</mosaic_0001>

<llo_original>
// kernel: vae_forward.1
$region0: #{vae_forward.1}
  #allocation0 [shape = 'u32[]', space=smem, size = 0x4, offset = 0x4, fixed_abs, tag = 'smem constant byte address 0x4 - core index']
  #allocation1 [shape = 'u32[144,128]{1,0:T(1,128)}', space=vmem, size = 0x12000, scoped, tag = 'internal scratch']
  %s0 = inlined_call_operand.vmem [shape: f32[2,20,256], index: 0, kind: input, shape index: {}]
  %s1 = inlined_call_operand.vmem [shape: f32[2,4,1], index: 1, kind: input, shape index: {}]
  %s2 = inlined_call_operand.vmem [shape: bf16[64,60], index: 2, kind: input, shape index: {}]
  %s3 = inlined_call_operand.vmem [shape: f32[64,1], index: 3, kind: input, shape index: {}]
  %s4 = inlined_call_operand.vmem [shape: bf16[64,192], index: 4, kind: input, shape index: {}]
  %s5 = inlined_call_operand.vmem [shape: f32[64,1], index: 5, kind: input, shape index: {}]
  %s6 = inlined_call_operand.vmem [shape: bf16[64,192], index: 6, kind: input, shape index: {}]
  %s7 = inlined_call_operand.vmem [shape: f32[64,1], index: 7, kind: input, shape index: {}]
  %s8 = inlined_call_operand.vmem [shape: bf16[4,64], index: 8, kind: input, shape index: {}]
  %s9 = inlined_call_operand.vmem [shape: f32[4,1], index: 9, kind: input, shape index: {}]
  %s10 = inlined_call_operand.vmem [shape: f32[4,8,64], index: 10, kind: input, shape index: {}]
  %s11 = inlined_call_operand.vmem [shape: f32[8,1], index: 11, kind: input, shape index: {}]
  %s12 = inlined_call_operand.vmem [shape: bf16[64,4], index: 12, kind: input, shape index: {}]
  %s13 = inlined_call_operand.vmem [shape: f32[64,1], index: 13, kind: input, shape index: {}]
  %s14 = inlined_call_operand.vmem [shape: bf16[64,192], index: 14, kind: input, shape index: {}]
  %s15 = inlined_call_operand.vmem [shape: f32[64,1], index: 15, kind: input, shape index: {}]
  %s16 = inlined_call_operand.vmem [shape: bf16[64,192], index: 16, kind: input, shape index: {}]
  %s17 = inlined_call_operand.vmem [shape: f32[64,1], index: 17, kind: input, shape index: {}]
  %s18 = inlined_call_operand.vmem [shape: bf16[20,192], index: 18, kind: input, shape index: {}]
  %s19 = inlined_call_operand.vmem [shape: f32[20,1], index: 19, kind: input, shape index: {}]
  %s20 = inlined_call_operand.vmem [shape: bf16[256,128], index: 20, kind: input, shape index: {}]
  %s21 = inlined_call_operand.vmem [shape: bf16[128,64], index: 21, kind: input, shape index: {}]
  %s22 = inlined_call_operand.vmem [shape: bf16[4,32], index: 22, kind: input, shape index: {}]
  %s23 = inlined_call_operand.vmem [shape: bf16[32,256], index: 23, kind: input, shape index: {}]
  %s24 = inlined_call_operand.vmem [shape: f32[2,20,256], index: 24, kind: output, shape index: {0}]
  %s25 = inlined_call_operand.vmem [shape: f32[2,4,1], index: 25, kind: output, shape index: {1}]
  %s26 = inlined_call_operand.vmem [shape: f32[2,4,1], index: 26, kind: output, shape index: {2}]
  %27 = xla_tuple %s24, %s25, %s26
  %s28 = sld [smem:[#allocation0]]
  $region145: #{vae_forward.1} parent=0
    _
  %s30 = ssub.s32 1, %s28
  %s31 = scalar_select 0, %s30, %s28
  loop: start=0, step=1, limit=4
  $region2: #{vae_forward.1} parent=0 // loop_pre_header
    _
  $region3: #{vae_forward.1} parent=0 // loop_header
    %s33 = sphi 0, %s37
    %p34 = scmp.ge.s32.totalorder %s33, 4
    %s43 = sphi 0, %s45
    %s46 = sphi 0, %s43
    %s47 = sphi 0, %s46
    %s63 = sphi 0, %s47
    %s69 = sphi 0, %s71
    %s72 = sphi 0, %s69
    %s73 = sphi 0, %s72
    %s89 = sphi 0, %s73
    %s93 = sphi 0, %s93
    %s95 = sphi 0, %s93
    %s96 = sphi 0, %s95
    %s110 = sphi 0, %s96
    %s114 = sphi 0, %s114
    %s116 = sphi 0, %s114
    %s117 = sphi 0, %s116
    %s131 = sphi 0, %s117
    %s135 = sphi 0, %s135
    %s137 = sphi 0, %s135
    %s138 = sphi 0, %s137
    %s152 = sphi 0, %s138
    %s156 = sphi 0, %s156
    %s158 = sphi 0, %s156
    %s159 = sphi 0, %s158
    %s173 = sphi 0, %s159
    %s177 = sphi 0, %s177
    %s179 = sphi 0, %s177
    %s180 = sphi 0, %s179
    %s194 = sphi 0, %s180
    %s198 = sphi 0, %s198
    %s200 = sphi 0, %s198
    %s201 = sphi 0, %s200
    %s215 = sphi 0, %s201
    %s219 = sphi 0, %s219
    %s221 = sphi 0, %s219
    %s222 = sphi 0, %s221
    %s236 = sphi 0, %s222
    %s240 = sphi 0, %s240
    %s242 = sphi 0, %s240
    %s243 = sphi 0, %s242
    %s257 = sphi 0, %s243
    %s261 = sphi 0, %s261
    %s263 = sphi 0, %s261
    %s264 = sphi 0, %s263
    %s278 = sphi 0, %s264
    %s282 = sphi 0, %s282
    %s284 = sphi 0, %s282
    %s285 = sphi 0, %s284
    %s299 = sphi 0, %s285
    %s303 = sphi 0, %s303
    %s305 = sphi 0, %s303
    %s306 = sphi 0, %s305
    %s320 = sphi 0, %s306
    %s324 = sphi 0, %s324
    %s326 = sphi 0, %s324
    %s327 = sphi 0, %s326
    %s341 = sphi 0, %s327
    %s345 = sphi 0, %s345
    %s347 = sphi 0, %s345
    %s348 = sphi 0, %s347
    %s362 = sphi 0, %s348
    %s366 = sphi 0, %s366
    %s368 = sphi 0, %s366
    %s369 = sphi 0, %s368
    %s383 = sphi 0, %s369
    %s387 = sphi 0, %s387
    %s389 = sphi 0, %s387
    %s390 = sphi 0, %s389
    %s404 = sphi 0, %s390
    %s408 = sphi 0, %s408
    %s410 = sphi 0, %s408
    %s411 = sphi 0, %s410
    %s425 = sphi 0, %s411
    %s429 = sphi 0, %s429
    %s431 = sphi 0, %s429
    %s432 = sphi 0, %s431
    %s446 = sphi 0, %s432
    %s450 = sphi 0, %s450
    %s452 = sphi 0, %s450
    %s453 = sphi 0, %s452
    %s467 = sphi 0, %s453
    %s471 = sphi 0, %s471
    %s473 = sphi 0, %s471
    %s474 = sphi 0, %s473
    %s488 = sphi 0, %s474
    %s492 = sphi 0, %s492
    %s494 = sphi 0, %s492
    %s495 = sphi 0, %s494
    %s509 = sphi 0, %s495
    %s513 = sphi 0, %s513
    %s515 = sphi 0, %s513
    %s516 = sphi 0, %s515
    %s530 = sphi 0, %s516
    %s534 = sphi 0, %s534
    %s536 = sphi 0, %s534
    %s537 = sphi 0, %s536
    %s551 = sphi 0, %s537
    %s557 = sphi 0, %s559
    %s560 = sphi 0, %s557
    %s561 = sphi 0, %s560
    %s577 = sphi 0, %s561
    %s583 = sphi 0, %s585
    %s586 = sphi 0, %s583
    %s587 = sphi 0, %s586
    %s603 = sphi 0, %s587
    %s609 = sphi 0, %s611
    %s612 = sphi 0, %s609
    %s613 = sphi 0, %s612
    %s629 = sphi 0, %s613
  $region4: #{vae_forward.1} parent=0 // loop_header_branch
    %36 = sbr.rel (%p34) target = $region8
  $region5: #{vae_forward.1} parent=0 // loop_body
    %s38 = ssub.s32 %s33, 1
    %s39 = ssub.s32 %s33, 2
    %s40 = sadd.s32 %s33, 1
    %s41 = ssub.s32 %s33, %s40
    %p42 = scmp.eq.s32.totalorder %s41, 0
    %s44 = sadd.s32 %s43, 1
    %s45 = scalar_select %p42, %s43, %s44
    %p48 = pneg %p42
    %p49 = scmp.eq.s32.totalorder %s33, 1
    %p50 = por %p48, %p49
    %p51 = scmp.ne.s32.totalorder %s43, %s46
    %p52 = scmp.eq.s32.totalorder %s33, 0
    %p53 = por %p51, %p52
    %p54 = scmp.ne.s32.totalorder %s43, %s46
    %p55 = scmp.eq.s32.totalorder %s38, 1
    %p56 = por %p54, %p55
    %p57 = scmp.ne.s32.totalorder %s46, %s47
    %p58 = scmp.eq.s32.totalorder %s38, 0
    %p59 = por %p57, %p58
    %p60 = scmp.ne.s32.totalorder %s46, %s47
    %p61 = scmp.eq.s32.totalorder %s39, 1
    %p62 = por %p60, %p61
    %p64 = scmp.ne.s32.totalorder %s47, %s63
    %p65 = scmp.eq.s32.totalorder %s39, 0
    %p66 = por %p64, %p65
    %s67 = ssub.s32 %s33, %s40
    %p68 = scmp.eq.s32.totalorder %s67, 0
    %s70 = sadd.s32 %s69, 1
    %s71 = scalar_select %p68, %s69, %s70
    %p74 = pneg %p68
    %p75 = scmp.eq.s32.totalorder %s33, 1
    %p76 = por %p74, %p75
    %p77 = scmp.ne.s32.totalorder %s69, %s72
    %p78 = scmp.eq.s32.totalorder %s33, 0
    %p79 = por %p77, %p78
    %p80 = scmp.ne.s32.totalorder %s69, %s72
    %p81 = scmp.eq.s32.totalorder %s38, 1
    %p82 = por %p80, %p81
    %p83 = scmp.ne.s32.totalorder %s72, %s73
    %p84 = scmp.eq.s32.totalorder %s38, 0
    %p85 = por %p83, %p84
    %p86 = scmp.ne.s32.totalorder %s72, %s73
    %p87 = scmp.eq.s32.totalorder %s39, 1
    %p88 = por %p86, %p87
    %p90 = scmp.ne.s32.totalorder %s73, %s89
    %p91 = scmp.eq.s32.totalorder %s39, 0
    %p92 = por %p90, %p91
    %s94 = sadd.s32 %s93, 1
    %p97 = scmp.eq.s32.totalorder %s33, 1
    %p98 = scmp.ne.s32.totalorder %s93, %s95
    %p99 = scmp.eq.s32.totalorder %s33, 0
    %p100 = por %p98, %p99
    %p101 = scmp.ne.s32.totalorder %s93, %s95
    %p102 = scmp.eq.s32.totalorder %s38, 1
    %p103 = por %p101, %p102
    %p104 = scmp.ne.s32.totalorder %s95, %s96
    %p105 = scmp.eq.s32.totalorder %s38, 0
    %p106 = por %p104, %p105
    %p107 = scmp.ne.s32.totalorder %s95, %s96
    %p108 = scmp.eq.s32.totalorder %s39, 1
    %p109 = por %p107, %p108
    %p111 = scmp.ne.s32.totalorder %s96, %s110
    %p112 = scmp.eq.s32.totalorder %s39, 0
    %p113 = por %p111, %p112
    %s115 = sadd.s32 %s114, 1
    %p118 = scmp.eq.s32.totalorder %s33, 1
    %p119 = scmp.ne.s32.totalorder %s114, %s116
    %p120 = scmp.eq.s32.totalorder %s33, 0
    %p121 = por %p119, %p120
    %p122 = scmp.ne.s32.totalorder %s114, %s116
    %p123 = scmp.eq.s32.totalorder %s38, 1
    %p124 = por %p122, %p123
    %p125 = scmp.ne.s32.totalorder %s116, %s117
    %p126 = scmp.eq.s32.totalorder %s38, 0
    %p127 = por %p125, %p126
    %p128 = scmp.ne.s32.totalorder %s116, %s117
    %p129 = scmp.eq.s32.totalorder %s39, 1
    %p130 = por %p128, %p129
    %p132 = scmp.ne.s32.totalorder %s117, %s131
    %p133 = scmp.eq.s32.totalorder %s39, 0
    %p134 = por %p132, %p133
    %s136 = sadd.s32 %s135, 1
    %p139 = scmp.eq.s32.totalorder %s33, 1
    %p140 = scmp.ne.s32.totalorder %s135, %s137
    %p141 = scmp.eq.s32.totalorder %s33, 0
    %p142 = por %p140, %p141
    %p143 = scmp.ne.s32.totalorder %s135, %s137
    %p144 = scmp.eq.s32.totalorder %s38, 1
    %p145 = por %p143, %p144
    %p146 = scmp.ne.s32.totalorder %s137, %s138
    %p147 = scmp.eq.s32.totalorder %s38, 0
    %p148 = por %p146, %p147
    %p149 = scmp.ne.s32.totalorder %s137, %s138
    %p150 = scmp.eq.s32.totalorder %s39, 1
    %p151 = por %p149, %p150
    %p153 = scmp.ne.s32.totalorder %s138, %s152
    %p154 = scmp.eq.s32.totalorder %s39, 0
    %p155 = por %p153, %p154
    %s157 = sadd.s32 %s156, 1
    %p160 = scmp.eq.s32.totalorder %s33, 1
    %p161 = scmp.ne.s32.totalorder %s156, %s158
    %p162 = scmp.eq.s32.totalorder %s33, 0
    %p163 = por %p161, %p162
    %p164 = scmp.ne.s32.totalorder %s156, %s158
    %p165 = scmp.eq.s32.totalorder %s38, 1
    %p166 = por %p164, %p165
    %p167 = scmp.ne.s32.totalorder %s158, %s159
    %p168 = scmp.eq.s32.totalorder %s38, 0
    %p169 = por %p167, %p168
    %p170 = scmp.ne.s32.totalorder %s158, %s159
    %p171 = scmp.eq.s32.totalorder %s39, 1
    %p172 = por %p170, %p171
    %p174 = scmp.ne.s32.totalorder %s159, %s173
    %p175 = scmp.eq.s32.totalorder %s39, 0
    %p176 = por %p174, %p175
    %s178 = sadd.s32 %s177, 1
    %p181 = scmp.eq.s32.totalorder %s33, 1
    %p182 = scmp.ne.s32.totalorder %s177, %s179
    %p183 = scmp.eq.s32.totalorder %s33, 0
    %p184 = por %p182, %p183
    %p185 = scmp.ne.s32.totalorder %s177, %s179
    %p186 = scmp.eq.s32.totalorder %s38, 1
    %p187 = por %p185, %p186
    %p188 = scmp.ne.s32.totalorder %s179, %s180
    %p189 = scmp.eq.s32.totalorder %s38, 0
    %p190 = por %p188, %p189
    %p191 = scmp.ne.s32.totalorder %s179, %s180
    %p192 = scmp.eq.s32.totalorder %s39, 1
    %p193 = por %p191, %p192
    %p195 = scmp.ne.s32.totalorder %s180, %s194
    %p196 = scmp.eq.s32.totalorder %s39, 0
    %p197 = por %p195, %p196
    %s199 = sadd.s32 %s198, 1
    %p202 = scmp.eq.s32.totalorder %s33, 1
    %p203 = scmp.ne.s32.totalorder %s198, %s200
    %p204 = scmp.eq.s32.totalorder %s33, 0
    %p205 = por %p203, %p204
    %p206 = scmp.ne.s32.totalorder %s198, %s200
    %p207 = scmp.eq.s32.totalorder %s38, 1
    %p208 = por %p206, %p207
    %p209 = scmp.ne.s32.totalorder %s200, %s201
    %p210 = scmp.eq.s32.totalorder %s38, 0
    %p211 = por %p209, %p210
    %p212 = scmp.ne.s32.totalorder %s200, %s201
    %p213 = scmp.eq.s32.totalorder %s39, 1
    %p214 = por %p212, %p213
    %p216 = scmp.ne.s32.totalorder %s201, %s215
    %p217 = scmp.eq.s32.totalorder %s39, 0
    %p218 = por %p216, %p217
    %s220 = sadd.s32 %s219, 1
    %p223 = scmp.eq.s32.totalorder %s33, 1
    %p224 = scmp.ne.s32.totalorder %s219, %s221
    %p225 = scmp.eq.s32.totalorder %s33, 0
    %p226 = por %p224, %p225
    %p227 = scmp.ne.s32.totalorder %s219, %s221
    %p228 = scmp.eq.s32.totalorder %s38, 1
    %p229 = por %p227, %p228
    %p230 = scmp.ne.s32.totalorder %s221, %s222
    %p231 = scmp.eq.s32.totalorder %s38, 0
    %p232 = por %p230, %p231
    %p233 = scmp.ne.s32.totalorder %s221, %s222
    %p234 = scmp.eq.s32.totalorder %s39, 1
    %p235 = por %p233, %p234
    %p237 = scmp.ne.s32.totalorder %s222, %s236
    %p238 = scmp.eq.s32.totalorder %s39, 0
    %p239 = por %p237, %p238
    %s241 = sadd.s32 %s240, 1
    %p244 = scmp.eq.s32.totalorder %s33, 1
    %p245 = scmp.ne.s32.totalorder %s240, %s242
    %p246 = scmp.eq.s32.totalorder %s33, 0
    %p247 = por %p245, %p246
    %p248 = scmp.ne.s32.totalorder %s240, %s242
    %p249 = scmp.eq.s32.totalorder %s38, 1
    %p250 = por %p248, %p249
    %p251 = scmp.ne.s32.totalorder %s242, %s243
    %p252 = scmp.eq.s32.totalorder %s38, 0
    %p253 = por %p251, %p252
    %p254 = scmp.ne.s32.totalorder %s242, %s243
    %p255 = scmp.eq.s32.totalorder %s39, 1
    %p256 = por %p254, %p255
    %p258 = scmp.ne.s32.totalorder %s243, %s257
    %p259 = scmp.eq.s32.totalorder %s39, 0
    %p260 = por %p258, %p259
    %s262 = sadd.s32 %s261, 1
    %p265 = scmp.eq.s32.totalorder %s33, 1
    %p266 = scmp.ne.s32.totalorder %s261, %s263
    %p267 = scmp.eq.s32.totalorder %s33, 0
    %p268 = por %p266, %p267
    %p269 = scmp.ne.s32.totalorder %s261, %s263
    %p270 = scmp.eq.s32.totalorder %s38, 1
    %p271 = por %p269, %p270
    %p272 = scmp.ne.s32.totalorder %s263, %s264
    %p273 = scmp.eq.s32.totalorder %s38, 0
    %p274 = por %p272, %p273
    %p275 = scmp.ne.s32.totalorder %s263, %s264
    %p276 = scmp.eq.s32.totalorder %s39, 1
    %p277 = por %p275, %p276
    %p279 = scmp.ne.s32.totalorder %s264, %s278
    %p280 = scmp.eq.s32.totalorder %s39, 0
    %p281 = por %p279, %p280
    %s283 = sadd.s32 %s282, 1
    %p286 = scmp.eq.s32.totalorder %s33, 1
    %p287 = scmp.ne.s32.totalorder %s282, %s284
    %p288 = scmp.eq.s32.totalorder %s33, 0
    %p289 = por %p287, %p288
    %p290 = scmp.ne.s32.totalorder %s282, %s284
    %p291 = scmp.eq.s32.totalorder %s38, 1
    %p292 = por %p290, %p291
    %p293 = scmp.ne.s32.totalorder %s284, %s285
    %p294 = scmp.eq.s32.totalorder %s38, 0
    %p295 = por %p293, %p294
    %p296 = scmp.ne.s32.totalorder %s284, %s285
    %p297 = scmp.eq.s32.totalorder %s39, 1
    %p298 = por %p296, %p297
    %p300 = scmp.ne.s32.totalorder %s285, %s299
    %p301 = scmp.eq.s32.totalorder %s39, 0
    %p302 = por %p300, %p301
    %s304 = sadd.s32 %s303, 1
    %p307 = scmp.eq.s32.totalorder %s33, 1
    %p308 = scmp.ne.s32.totalorder %s303, %s305
    %p309 = scmp.eq.s32.totalorder %s33, 0
    %p310 = por %p308, %p309
    %p311 = scmp.ne.s32.totalorder %s303, %s305
    %p312 = scmp.eq.s32.totalorder %s38, 1
    %p313 = por %p311, %p312
    %p314 = scmp.ne.s32.totalorder %s305, %s306
    %p315 = scmp.eq.s32.totalorder %s38, 0
    %p316 = por %p314, %p315
    %p317 = scmp.ne.s32.totalorder %s305, %s306
    %p318 = scmp.eq.s32.totalorder %s39, 1
    %p319 = por %p317, %p318
    %p321 = scmp.ne.s32.totalorder %s306, %s320
    %p322 = scmp.eq.s32.totalorder %s39, 0
    %p323 = por %p321, %p322
    %s325 = sadd.s32 %s324, 1
    %p328 = scmp.eq.s32.totalorder %s33, 1
    %p329 = scmp.ne.s32.totalorder %s324, %s326
    %p330 = scmp.eq.s32.totalorder %s33, 0
    %p331 = por %p329, %p330
    %p332 = scmp.ne.s32.totalorder %s324, %s326
    %p333 = scmp.eq.s32.totalorder %s38, 1
    %p334 = por %p332, %p333
    %p335 = scmp.ne.s32.totalorder %s326, %s327
    %p336 = scmp.eq.s32.totalorder %s38, 0
    %p337 = por %p335, %p336
    %p338 = scmp.ne.s32.totalorder %s326, %s327
    %p339 = scmp.eq.s32.totalorder %s39, 1
    %p340 = por %p338, %p339
    %p342 = scmp.ne.s32.totalorder %s327, %s341
    %p343 = scmp.eq.s32.totalorder %s39, 0
    %p344 = por %p342, %p343
    %s346 = sadd.s32 %s345, 1
    %p349 = scmp.eq.s32.totalorder %s33, 1
    %p350 = scmp.ne.s32.totalorder %s345, %s347
    %p351 = scmp.eq.s32.totalorder %s33, 0
    %p352 = por %p350, %p351
    %p353 = scmp.ne.s32.totalorder %s345, %s347
    %p354 = scmp.eq.s32.totalorder %s38, 1
    %p355 = por %p353, %p354
    %p356 = scmp.ne.s32.totalorder %s347, %s348
    %p357 = scmp.eq.s32.totalorder %s38, 0
    %p358 = por %p356, %p357
    %p359 = scmp.ne.s32.totalorder %s347, %s348
    %p360 = scmp.eq.s32.totalorder %s39, 1
    %p361 = por %p359, %p360
    %p363 = scmp.ne.s32.totalorder %s348, %s362
    %p364 = scmp.eq.s32.totalorder %s39, 0
    %p365 = por %p363, %p364
    %s367 = sadd.s32 %s366, 1
    %p370 = scmp.eq.s32.totalorder %s33, 1
    %p371 = scmp.ne.s32.totalorder %s366, %s368
    %p372 = scmp.eq.s32.totalorder %s33, 0
    %p373 = por %p371, %p372
    %p374 = scmp.ne.s32.totalorder %s366, %s368
    %p375 = scmp.eq.s32.totalorder %s38, 1
    %p376 = por %p374, %p375
    %p377 = scmp.ne.s32.totalorder %s368, %s369
    %p378 = scmp.eq.s32.totalorder %s38, 0
    %p379 = por %p377, %p378
    %p380 = scmp.ne.s32.totalorder %s368, %s369
    %p381 = scmp.eq.s32.totalorder %s39, 1
    %p382 = por %p380, %p381
    %p384 = scmp.ne.s32.totalorder %s369, %s383
    %p385 = scmp.eq.s32.totalorder %s39, 0
    %p386 = por %p384, %p385
    %s388 = sadd.s32 %s387, 1
    %p391 = scmp.eq.s32.totalorder %s33, 1
    %p392 = scmp.ne.s32.totalorder %s387, %s389
    %p393 = scmp.eq.s32.totalorder %s33, 0
    %p394 = por %p392, %p393
    %p395 = scmp.ne.s32.totalorder %s387, %s389
    %p396 = scmp.eq.s32.totalorder %s38, 1
    %p397 = por %p395, %p396
    %p398 = scmp.ne.s32.totalorder %s389, %s390
    %p399 = scmp.eq.s32.totalorder %s38, 0
    %p400 = por %p398, %p399
    %p401 = scmp.ne.s32.totalorder %s389, %s390
    %p402 = scmp.eq.s32.totalorder %s39, 1
    %p403 = por %p401, %p402
    %p405 = scmp.ne.s32.totalorder %s390, %s404
    %p406 = scmp.eq.s32.totalorder %s39, 0
    %p407 = por %p405, %p406
    %s409 = sadd.s32 %s408, 1
    %p412 = scmp.eq.s32.totalorder %s33, 1
    %p413 = scmp.ne.s32.totalorder %s408, %s410
    %p414 = scmp.eq.s32.totalorder %s33, 0
    %p415 = por %p413, %p414
    %p416 = scmp.ne.s32.totalorder %s408, %s410
    %p417 = scmp.eq.s32.totalorder %s38, 1
    %p418 = por %p416, %p417
    %p419 = scmp.ne.s32.totalorder %s410, %s411
    %p420 = scmp.eq.s32.totalorder %s38, 0
    %p421 = por %p419, %p420
    %p422 = scmp.ne.s32.totalorder %s410, %s411
    %p423 = scmp.eq.s32.totalorder %s39, 1
    %p424 = por %p422, %p423
    %p426 = scmp.ne.s32.totalorder %s411, %s425
    %p427 = scmp.eq.s32.totalorder %s39, 0
    %p428 = por %p426, %p427
    %s430 = sadd.s32 %s429, 1
    %p433 = scmp.eq.s32.totalorder %s33, 1
    %p434 = scmp.ne.s32.totalorder %s429, %s431
    %p435 = scmp.eq.s32.totalorder %s33, 0
    %p436 = por %p434, %p435
    %p437 = scmp.ne.s32.totalorder %s429, %s431
    %p438 = scmp.eq.s32.totalorder %s38, 1
    %p439 = por %p437, %p438
    %p440 = scmp.ne.s32.totalorder %s431, %s432
    %p441 = scmp.eq.s32.totalorder %s38, 0
    %p442 = por %p440, %p441
    %p443 = scmp.ne.s32.totalorder %s431, %s432
    %p444 = scmp.eq.s32.totalorder %s39, 1
    %p445 = por %p443, %p444
    %p447 = scmp.ne.s32.totalorder %s432, %s446
    %p448 = scmp.eq.s32.totalorder %s39, 0
    %p449 = por %p447, %p448
    %s451 = sadd.s32 %s450, 1
    %p454 = scmp.eq.s32.totalorder %s33, 1
    %p455 = scmp.ne.s32.totalorder %s450, %s452
    %p456 = scmp.eq.s32.totalorder %s33, 0
    %p457 = por %p455, %p456
    %p458 = scmp.ne.s32.totalorder %s450, %s452
    %p459 = scmp.eq.s32.totalorder %s38, 1
    %p460 = por %p458, %p459
    %p461 = scmp.ne.s32.totalorder %s452, %s453
    %p462 = scmp.eq.s32.totalorder %s38, 0
    %p463 = por %p461, %p462
    %p464 = scmp.ne.s32.totalorder %s452, %s453
    %p465 = scmp.eq.s32.totalorder %s39, 1
    %p466 = por %p464, %p465
    %p468 = scmp.ne.s32.totalorder %s453, %s467
    %p469 = scmp.eq.s32.totalorder %s39, 0
    %p470 = por %p468, %p469
    %s472 = sadd.s32 %s471, 1
    %p475 = scmp.eq.s32.totalorder %s33, 1
    %p476 = scmp.ne.s32.totalorder %s471, %s473
    %p477 = scmp.eq.s32.totalorder %s33, 0
    %p478 = por %p476, %p477
    %p479 = scmp.ne.s32.totalorder %s471, %s473
    %p480 = scmp.eq.s32.totalorder %s38, 1
    %p481 = por %p479, %p480
    %p482 = scmp.ne.s32.totalorder %s473, %s474
    %p483 = scmp.eq.s32.totalorder %s38, 0
    %p484 = por %p482, %p483
    %p485 = scmp.ne.s32.totalorder %s473, %s474
    %p486 = scmp.eq.s32.totalorder %s39, 1
    %p487 = por %p485, %p486
    %p489 = scmp.ne.s32.totalorder %s474, %s488
    %p490 = scmp.eq.s32.totalorder %s39, 0
    %p491 = por %p489, %p490
    %s493 = sadd.s32 %s492, 1
    %p496 = scmp.eq.s32.totalorder %s33, 1
    %p497 = scmp.ne.s32.totalorder %s492, %s494
    %p498 = scmp.eq.s32.totalorder %s33, 0
    %p499 = por %p497, %p498
    %p500 = scmp.ne.s32.totalorder %s492, %s494
    %p501 = scmp.eq.s32.totalorder %s38, 1
    %p502 = por %p500, %p501
    %p503 = scmp.ne.s32.totalorder %s494, %s495
    %p504 = scmp.eq.s32.totalorder %s38, 0
    %p505 = por %p503, %p504
    %p506 = scmp.ne.s32.totalorder %s494, %s495
    %p507 = scmp.eq.s32.totalorder %s39, 1
    %p508 = por %p506, %p507
    %p510 = scmp.ne.s32.totalorder %s495, %s509
    %p511 = scmp.eq.s32.totalorder %s39, 0
    %p512 = por %p510, %p511
    %s514 = sadd.s32 %s513, 1
    %p517 = scmp.eq.s32.totalorder %s33, 1
    %p518 = scmp.ne.s32.totalorder %s513, %s515
    %p519 = scmp.eq.s32.totalorder %s33, 0
    %p520 = por %p518, %p519
    %p521 = scmp.ne.s32.totalorder %s513, %s515
    %p522 = scmp.eq.s32.totalorder %s38, 1
    %p523 = por %p521, %p522
    %p524 = scmp.ne.s32.totalorder %s515, %s516
    %p525 = scmp.eq.s32.totalorder %s38, 0
    %p526 = por %p524, %p525
    %p527 = scmp.ne.s32.totalorder %s515, %s516
    %p528 = scmp.eq.s32.totalorder %s39, 1
    %p529 = por %p527, %p528
    %p531 = scmp.ne.s32.totalorder %s516, %s530
    %p532 = scmp.eq.s32.totalorder %s39, 0
    %p533 = por %p531, %p532
    %s535 = sadd.s32 %s534, 1
    %p538 = scmp.eq.s32.totalorder %s33, 1
    %p539 = scmp.ne.s32.totalorder %s534, %s536
    %p540 = scmp.eq.s32.totalorder %s33, 0
    %p541 = por %p539, %p540
    %p542 = scmp.ne.s32.totalorder %s534, %s536
    %p543 = scmp.eq.s32.totalorder %s38, 1
    %p544 = por %p542, %p543
    %p545 = scmp.ne.s32.totalorder %s536, %s537
    %p546 = scmp.eq.s32.totalorder %s38, 0
    %p547 = por %p545, %p546
    %p548 = scmp.ne.s32.totalorder %s536, %s537
    %p549 = scmp.eq.s32.totalorder %s39, 1
    %p550 = por %p548, %p549
    %p552 = scmp.ne.s32.totalorder %s537, %s551
    %p553 = scmp.eq.s32.totalorder %s39, 0
    %p554 = por %p552, %p553
    %s555 = ssub.s32 %s33, %s40
    %p556 = scmp.eq.s32.totalorder %s555, 0
    %s558 = sadd.s32 %s557, 1
    %s559 = scalar_select %p556, %s557, %s558
    %p562 = pneg %p556
    %p563 = scmp.eq.s32.totalorder %s33, 1
    %p564 = por %p562, %p563
    %p565 = scmp.ne.s32.totalorder %s557, %s560
    %p566 = scmp.eq.s32.totalorder %s33, 0
    %p567 = por %p565, %p566
    %p568 = scmp.ne.s32.totalorder %s557, %s560
    %p569 = scmp.eq.s32.totalorder %s38, 1
    %p570 = por %p568, %p569
    %p571 = scmp.ne.s32.totalorder %s560, %s561
    %p572 = scmp.eq.s32.totalorder %s38, 0
    %p573 = por %p571, %p572
    %p574 = scmp.ne.s32.totalorder %s560, %s561
    %p575 = scmp.eq.s32.totalorder %s39, 1
    %p576 = por %p574, %p575
    %p578 = scmp.ne.s32.totalorder %s561, %s577
    %p579 = scmp.eq.s32.totalorder %s39, 0
    %p580 = por %p578, %p579
    %s581 = ssub.s32 %s33, %s40
    %p582 = scmp.eq.s32.totalorder %s581, 0
    %s584 = sadd.s32 %s583, 1
    %s585 = scalar_select %p582, %s583, %s584
    %p588 = pneg %p582
    %p589 = scmp.eq.s32.totalorder %s33, 1
    %p590 = por %p588, %p589
    %p591 = scmp.ne.s32.totalorder %s583, %s586
    %p592 = scmp.eq.s32.totalorder %s33, 0
    %p593 = por %p591, %p592
    %p594 = scmp.ne.s32.totalorder %s583, %s586
    %p595 = scmp.eq.s32.totalorder %s38, 1
    %p596 = por %p594, %p595
    %p597 = scmp.ne.s32.totalorder %s586, %s587
    %p598 = scmp.eq.s32.totalorder %s38, 0
    %p599 = por %p597, %p598
    %p600 = scmp.ne.s32.totalorder %s586, %s587
    %p601 = scmp.eq.s32.totalorder %s39, 1
    %p602 = por %p600, %p601
    %p604 = scmp.ne.s32.totalorder %s587, %s603
    %p605 = scmp.eq.s32.totalorder %s39, 0
    %p606 = por %p604, %p605
    %s607 = ssub.s32 %s33, %s40
    %p608 = scmp.eq.s32.totalorder %s607, 0
    %s610 = sadd.s32 %s609, 1
    %s611 = scalar_select %p608, %s609, %s610
    %p614 = pneg %p608
    %p615 = scmp.eq.s32.totalorder %s33, 1
    %p616 = por %p614, %p615
    %p617 = scmp.ne.s32.totalorder %s609, %s612
    %p618 = scmp.eq.s32.totalorder %s33, 0
    %p619 = por %p617, %p618
    %p620 = scmp.ne.s32.totalorder %s609, %s612
    %p621 = scmp.eq.s32.totalorder %s38, 1
    %p622 = por %p620, %p621
    %p623 = scmp.ne.s32.totalorder %s612, %s613
    %p624 = scmp.eq.s32.totalorder %s38, 0
    %p625 = por %p623, %p624
    %p626 = scmp.ne.s32.totalorder %s612, %s613
    %p627 = scmp.eq.s32.totalorder %s39, 1
    %p628 = por %p626, %p627
    %p630 = scmp.ne.s32.totalorder %s613, %s629
    %p631 = scmp.eq.s32.totalorder %s39, 0
    %p632 = por %p630, %p631
    %p633 = scmp.le.s32.totalorder 1, %s33
    %p634 = scmp.lt.s32.totalorder %s33, 3
    %p635 = pnand %p633, %p634
    %p636 = pneg %p635
    // Predicated region
    $region9: #{vae_forward.1} parent=5 // pred_check
      _
    $region10: #{vae_forward.1} parent=5 // pred_check_branch
      %638 = sbr.rel (%p635) target = $region12
    $region11: #{vae_forward.1} parent=5 // pred_region
      %s639 = ssub.s32 %s33, 1
      // Predicated region
      $region13: #{vae_forward.1} parent=11 // pred_check
        %p640 = pneg %p106
      $region14: #{vae_forward.1} parent=11 // pred_check_branch
        %642 = sbr.rel (%p640) target = $region16
      $region15: #{vae_forward.1} parent=11 // pred_region
        _
      $region16: #{vae_forward.1} parent=11 // pred_fallthru
        _
      // Predicated region
      $region17: #{vae_forward.1} parent=11 // pred_check
        %p643 = pneg %p127
      $region18: #{vae_forward.1} parent=11 // pred_check_branch
        %645 = sbr.rel (%p643) target = $region20
      $region19: #{vae_forward.1} parent=11 // pred_region
        _
      $region20: #{vae_forward.1} parent=11 // pred_fallthru
        _
      // Predicated region
      $region21: #{vae_forward.1} parent=11 // pred_check
        %p646 = pneg %p148
      $region22: #{vae_forward.1} parent=11 // pred_check_branch
        %648 = sbr.rel (%p646) target = $region24
      $region23: #{vae_forward.1} parent=11 // pred_region
        _
      $region24: #{vae_forward.1} parent=11 // pred_fallthru
        _
      // Predicated region
      $region25: #{vae_forward.1} parent=11 // pred_check
        %p649 = pneg %p169
      $region26: #{vae_forward.1} parent=11 // pred_check_branch
        %651 = sbr.rel (%p649) target = $region28
      $region27: #{vae_forward.1} parent=11 // pred_region
        _
      $region28: #{vae_forward.1} parent=11 // pred_fallthru
        _
      // Predicated region
      $region29: #{vae_forward.1} parent=11 // pred_check
        %p652 = pneg %p190
      $region30: #{vae_forward.1} parent=11 // pred_check_branch
        %654 = sbr.rel (%p652) target = $region32
      $region31: #{vae_forward.1} parent=11 // pred_region
        _
      $region32: #{vae_forward.1} parent=11 // pred_fallthru
        _
      // Predicated region
      $region33: #{vae_forward.1} parent=11 // pred_check
        %p655 = pneg %p211
      $region34: #{vae_forward.1} parent=11 // pred_check_branch
        %657 = sbr.rel (%p655) target = $region36
      $region35: #{vae_forward.1} parent=11 // pred_region
        _
      $region36: #{vae_forward.1} parent=11 // pred_fallthru
        _
      // Predicated region
      $region37: #{vae_forward.1} parent=11 // pred_check
        %p658 = pneg %p232
      $region38: #{vae_forward.1} parent=11 // pred_check_branch
        %660 = sbr.rel (%p658) target = $region40
      $region39: #{vae_forward.1} parent=11 // pred_region
        _
      $region40: #{vae_forward.1} parent=11 // pred_fallthru
        _
      // Predicated region
      $region41: #{vae_forward.1} parent=11 // pred_check
        %p661 = pneg %p253
      $region42: #{vae_forward.1} parent=11 // pred_check_branch
        %663 = sbr.rel (%p661) target = $region44
      $region43: #{vae_forward.1} parent=11 // pred_region
        _
      $region44: #{vae_forward.1} parent=11 // pred_fallthru
        _
      // Predicated region
      $region45: #{vae_forward.1} parent=11 // pred_check
        %p664 = pneg %p274
      $region46: #{vae_forward.1} parent=11 // pred_check_branch
        %666 = sbr.rel (%p664) target = $region48
      $region47: #{vae_forward.1} parent=11 // pred_region
        _
      $region48: #{vae_forward.1} parent=11 // pred_fallthru
        _
      // Predicated region
      $region49: #{vae_forward.1} parent=11 // pred_check
        %p667 = pneg %p295
      $region50: #{vae_forward.1} parent=11 // pred_check_branch
        %669 = sbr.rel (%p667) target = $region52
      $region51: #{vae_forward.1} parent=11 // pred_region
        _
      $region52: #{vae_forward.1} parent=11 // pred_fallthru
        _
      // Predicated region
      $region53: #{vae_forward.1} parent=11 // pred_check
        %p670 = pneg %p316
      $region54: #{vae_forward.1} parent=11 // pred_check_branch
        %672 = sbr.rel (%p670) target = $region56
      $region55: #{vae_forward.1} parent=11 // pred_region
        _
      $region56: #{vae_forward.1} parent=11 // pred_fallthru
        _
      // Predicated region
      $region57: #{vae_forward.1} parent=11 // pred_check
        %p673 = pneg %p337
      $region58: #{vae_forward.1} parent=11 // pred_check_branch
        %675 = sbr.rel (%p673) target = $region60
      $region59: #{vae_forward.1} parent=11 // pred_region
        _
      $region60: #{vae_forward.1} parent=11 // pred_fallthru
        _
      // Predicated region
      $region61: #{vae_forward.1} parent=11 // pred_check
        %p676 = pneg %p358
      $region62: #{vae_forward.1} parent=11 // pred_check_branch
        %678 = sbr.rel (%p676) target = $region64
      $region63: #{vae_forward.1} parent=11 // pred_region
        _
      $region64: #{vae_forward.1} parent=11 // pred_fallthru
        _
      // Predicated region
      $region65: #{vae_forward.1} parent=11 // pred_check
        %p679 = pneg %p379
      $region66: #{vae_forward.1} parent=11 // pred_check_branch
        %681 = sbr.rel (%p679) target = $region68
      $region67: #{vae_forward.1} parent=11 // pred_region
        _
      $region68: #{vae_forward.1} parent=11 // pred_fallthru
        _
      // Predicated region
      $region69: #{vae_forward.1} parent=11 // pred_check
        %p682 = pneg %p400
      $region70: #{vae_forward.1} parent=11 // pred_check_branch
        %684 = sbr.rel (%p682) target = $region72
      $region71: #{vae_forward.1} parent=11 // pred_region
        _
      $region72: #{vae_forward.1} parent=11 // pred_fallthru
        _
      // Predicated region
      $region73: #{vae_forward.1} parent=11 // pred_check
        %p685 = pneg %p421
      $region74: #{vae_forward.1} parent=11 // pred_check_branch
        %687 = sbr.rel (%p685) target = $region76
      $region75: #{vae_forward.1} parent=11 // pred_region
        _
      $region76: #{vae_forward.1} parent=11 // pred_fallthru
        _
      // Predicated region
      $region77: #{vae_forward.1} parent=11 // pred_check
        %p688 = pneg %p442
      $region78: #{vae_forward.1} parent=11 // pred_check_branch
        %690 = sbr.rel (%p688) target = $region80
      $region79: #{vae_forward.1} parent=11 // pred_region
        _
      $region80: #{vae_forward.1} parent=11 // pred_fallthru
        _
      // Predicated region
      $region81: #{vae_forward.1} parent=11 // pred_check
        %p691 = pneg %p463
      $region82: #{vae_forward.1} parent=11 // pred_check_branch
        %693 = sbr.rel (%p691) target = $region84
      $region83: #{vae_forward.1} parent=11 // pred_region
        _
      $region84: #{vae_forward.1} parent=11 // pred_fallthru
        _
      // Predicated region
      $region85: #{vae_forward.1} parent=11 // pred_check
        %p694 = pneg %p484
      $region86: #{vae_forward.1} parent=11 // pred_check_branch
        %696 = sbr.rel (%p694) target = $region88
      $region87: #{vae_forward.1} parent=11 // pred_region
        _
      $region88: #{vae_forward.1} parent=11 // pred_fallthru
        _
      // Predicated region
      $region89: #{vae_forward.1} parent=11 // pred_check
        %p697 = pneg %p505
      $region90: #{vae_forward.1} parent=11 // pred_check_branch
        %699 = sbr.rel (%p697) target = $region92
      $region91: #{vae_forward.1} parent=11 // pred_region
        _
      $region92: #{vae_forward.1} parent=11 // pred_fallthru
        _
      // Predicated region
      $region93: #{vae_forward.1} parent=11 // pred_check
        %p700 = pneg %p526
      $region94: #{vae_forward.1} parent=11 // pred_check_branch
        %702 = sbr.rel (%p700) target = $region96
      $region95: #{vae_forward.1} parent=11 // pred_region
        _
      $region96: #{vae_forward.1} parent=11 // pred_fallthru
        _
      // Predicated region
      $region97: #{vae_forward.1} parent=11 // pred_check
        %p703 = pneg %p547
      $region98: #{vae_forward.1} parent=11 // pred_check_branch
        %705 = sbr.rel (%p703) target = $region100
      $region99: #{vae_forward.1} parent=11 // pred_region
        _
      $region100: #{vae_forward.1} parent=11 // pred_fallthru
        _
    $region12: #{vae_forward.1} parent=5 // pred_fallthru
      _
    %p706 = scmp.lt.s32.totalorder %s33, 2
    // Predicated region
    $region101: #{vae_forward.1} parent=5 // pred_check
      %p707 = pneg %p706
    $region102: #{vae_forward.1} parent=5 // pred_check_branch
      %709 = sbr.rel (%p707) target = $region104
    $region103: #{vae_forward.1} parent=5 // pred_region
      // Predicated region
      $region105: #{vae_forward.1} parent=103 // pred_check
        %p710 = pneg %p53
      $region106: #{vae_forward.1} parent=103 // pred_check_branch
        %712 = sbr.rel (%p710) target = $region108
      $region107: #{vae_forward.1} parent=103 // pred_region
        %p713 = scmp.lt.s32.totalorder %s33, 1
        %s714 = scalar_select %p713, %s33, 1
        %s715 = smul.addr %s714, 6
        %s716 = smul.addr %s715, 8
        %s717 = scalar_lea.vmem %s0, %s716
      $region108: #{vae_forward.1} parent=103 // pred_fallthru
        _
      // Predicated region
      $region109: #{vae_forward.1} parent=103 // pred_check
        %p718 = pneg %p79
      $region110: #{vae_forward.1} parent=103 // pred_check_branch
        %720 = sbr.rel (%p718) target = $region112
      $region111: #{vae_forward.1} parent=103 // pred_region
        %p721 = scmp.lt.s32.totalorder %s33, 1
        %s722 = scalar_select %p721, %s33, 1
        %s723 = smul.addr %s722, 4
        %s724 = scalar_lea.vmem %s1, %s723
      $region112: #{vae_forward.1} parent=103 // pred_fallthru
        _
    $region104: #{vae_forward.1} parent=5 // pred_fallthru
      _
    %p725 = scmp.le.s32.totalorder 1, %s33
    %p726 = scmp.lt.s32.totalorder %s33, 3
    %p727 = pnand %p725, %p726
    %p728 = pneg %p727
    // Predicated region
    $region113: #{vae_forward.1} parent=5 // pred_check
      _
    $region114: #{vae_forward.1} parent=5 // pred_check_branch
      %730 = sbr.rel (%p727) target = $region116
    $region115: #{vae_forward.1} parent=5 // pred_region
      %s731 = ssub.s32 %s33, 1
      %p732 = scmp.lt.s32.totalorder %s38, 1
      %s733 = scalar_select %p732, %s38, 1
      %s734 = smul.addr %s733, 6
      %s735 = smul.addr %s734, 8
      %s736 = scalar_lea.vmem %s0, %s735
      %p737 = pneg %p59
      %p738 = pneg %p56
      %p739 = scmp.lt.s32.totalorder %s38, 1
      %s740 = scalar_select %p739, %s38, 1
      %s741 = smul.addr %s740, 4
      %s742 = scalar_lea.vmem %s1, %s741
      %p743 = pneg %p85
      %p744 = pneg %p82
      %p745 = pneg %p106
      %p746 = pneg %p103
      %p747 = pneg %p127
      %p748 = pneg %p124
      %p749 = pneg %p148
      %p750 = pneg %p145
      %p751 = pneg %p169
      %p752 = pneg %p166
      %p753 = pneg %p190
      %p754 = pneg %p187
      %p755 = pneg %p211
      %p756 = pneg %p208
      %p757 = pneg %p232
      %p758 = pneg %p229
      %p759 = pneg %p253
      %p760 = pneg %p250
      %p761 = pneg %p274
      %p762 = pneg %p271
      %p763 = pneg %p295
      %p764 = pneg %p292
      %p765 = pneg %p316
      %p766 = pneg %p313
      %p767 = pneg %p337
      %p768 = pneg %p334
      %p769 = pneg %p358
      %p770 = pneg %p355
      %p771 = pneg %p379
      %p772 = pneg %p376
      %p773 = pneg %p400
      %p774 = pneg %p397
      %p775 = pneg %p421
      %p776 = pneg %p418
      %p777 = pneg %p442
      %p778 = pneg %p439
      %p779 = pneg %p463
      %p780 = pneg %p460
      %p781 = pneg %p484
      %p782 = pneg %p481
      %p783 = pneg %p505
      %p784 = pneg %p502
      %p785 = pneg %p526
      %p786 = pneg %p523
      %p787 = pneg %p547
      %p788 = pneg %p544
      %p789 = pneg %p573
      %p790 = pneg %p570
      %p791 = scmp.lt.s32.totalorder %s38, 1
      %s792 = scalar_select %p791, %s38, 1
      %s793 = smul.addr %s792, 6
      %s794 = smul.addr %s793, 8
      %s795 = scalar_lea.vmem %s24, %s794
      %p796 = pneg %p599
      %p797 = pneg %p596
      %p798 = scmp.lt.s32.totalorder %s38, 1
      %s799 = scalar_select %p798, %s38, 1
      %s800 = smul.addr %s799, 4
      %s801 = scalar_lea.vmem %s25, %s800
      %p802 = pneg %p625
      %p803 = pneg %p622
      %p804 = scmp.lt.s32.totalorder %s38, 1
      %s805 = scalar_select %p804, %s38, 1
      %s806 = smul.addr %s805, 4
      %s807 = scalar_lea.vmem %s26, %s806
      %p808 = scmp.lt.s32.totalorder %s38, 1
      %s809 = scalar_select %p808, %s38, 1
      %s810 = smul.addr %s809, 6
      %s811 = smul.addr %s810, 8
      %s812 = scalar_lea.vmem %s0, %s811
      %p813 = scmp.lt.s32.totalorder %s38, 1
      %s814 = scalar_select %p813, %s38, 1
      %s815 = smul.addr %s814, 4
      %s816 = scalar_lea.vmem %s1, %s815
      %p817 = scmp.lt.s32.totalorder %s38, 1
      %s818 = scalar_select %p817, %s38, 1
      %s819 = smul.addr %s818, 6
      %s820 = smul.addr %s819, 8
      %s821 = scalar_lea.vmem %s24, %s820
      %p822 = scmp.lt.s32.totalorder %s38, 1
      %s823 = scalar_select %p822, %s38, 1
      %s824 = smul.addr %s823, 4
      %s825 = scalar_lea.vmem %s25, %s824
      %p826 = scmp.lt.s32.totalorder %s38, 1
      %s827 = scalar_select %p826, %s38, 1
      %s828 = smul.addr %s827, 4
      %s829 = scalar_lea.vmem %s26, %s828
      %v831 = vld [vmem:[%s812] sm:$0xff]
      %v832 = vld [vmem:[%s812 + $0x8] sm:$0xff]
      %v833 = vld [vmem:[%s812 + $0x10] sm:$0xff]
      %v834 = vld [vmem:[%s812 + $0x18] sm:$0xff]
      %v835 = vld [vmem:[%s812 + $0x20] sm:$0xf]
      %v836 = vld [vmem:[%s812 + $0x28] sm:$0xf]
      %v837 = vpack.c.bf16 %v833, %v831
      %v838 = vpack.c.bf16 %v834, %v832
      %v839 = vpack.c.bf16 %v835, %v835
      %v840 = vpack.c.bf16 %v836, %v836
      %845 = vrot.lane.b32.xlu0 %v837, 1
      %v846 = vpop.permute.xlu0 %845
      %847 = vrot.lane.b32.xlu0 %v838, 1
      %v848 = vpop.permute.xlu0 %847
      %849 = vrot.lane.b32.xlu0 %v839, 1
      %v850 = vpop.permute.xlu0 %849
      %851 = vrot.lane.b32.xlu0 %v840, 1
      %v852 = vpop.permute.xlu0 %851
      %vm853 = vcmask 7168
      %v854 = vsel %vm853, %v846, %v848
      %v855 = vsel %vm853, %v850, %v852
      %vm857 = vcmask 7168
      %v860 = vsel %vm857, 0, %v846
      %v863 = vsel %vm857, 0, %v850
      %864 = vrot.lane.b32.xlu0 %v837, 127
      %v865 = vpop.permute.xlu0 %864
      %866 = vrot.lane.b32.xlu0 %v838, 127
      %v867 = vpop.permute.xlu0 %866
      %868 = vrot.lane.b32.xlu0 %v839, 127
      %v869 = vpop.permute.xlu0 %868
      %870 = vrot.lane.b32.xlu0 %v840, 127
      %v871 = vpop.permute.xlu0 %870
      %vm872 = vcmask 1039360
      %v873 = vsel %vm872, %v865, %v867
      %v874 = vsel %vm872, %v869, %v871
      %vm875 = vcmask 1039360
      %v877 = vsel %vm875, %v867, 0
      %v879 = vsel %vm875, %v871, 0
      %vm880 = vcmask 1041408
      %v881 = vrot.slane %v837, 6
      %v882 = vrot.slane %v838, 6
      %v883 = vrot.slane %v839, 6
      %v884 = vsel %vm880, %v881, %v883
      %v885 = vrot.slane %v840, 6
      %v886 = vsel %vm880, %v882, %v885
      %vm889 = vcmask 1043456
      %v890 = vrot.slane %v873, 4
      %v891 = vrot.slane %v877, 4
      %v892 = vrot.slane %v874, 4
      %v893 = vsel %vm889, %v890, %v892
      %v894 = vrot.slane %v879, 4
      %v895 = vsel %vm889, %v891, %v894
      %vm896 = vcmask 1041408
      %v898 = vsel %vm896, %v863, %v881
      %v902 = vsel %vm896, %v855, %v882
      %vm904 = vcmask 1043456
      %v907 = vsel %vm904, %v884, %v890
      %v911 = vsel %vm904, %v886, %v891
      %v913 = vld [vmem:[%s2] sm:$0xf]
      %v914 = vld [vmem:[%s2 + $0x4] sm:$0xf]
      %v915 = vld [vmem:[%s2 + $0x8] sm:$0xf]
      %v916 = vld [vmem:[%s2 + $0xc] sm:$0xf]
      %v917 = vld [vmem:[%s2 + $0x10] sm:$0xf]
      %v918 = vld [vmem:[%s2 + $0x14] sm:$0xf]
      %v919 = vld [vmem:[%s2 + $0x18] sm:$0xf]
      %v920 = vld [vmem:[%s2 + $0x1c] sm:$0xf]
      %v921 = vld [vmem:[%s3] sm:$0xff]
      %v922 = vld [vmem:[%s3 + $0x8] sm:$0xff]
      %v923 = vld [vmem:[%s3 + $0x10] sm:$0xff]
      %v924 = vld [vmem:[%s3 + $0x18] sm:$0xff]
      %v925 = vld [vmem:[%s3 + $0x20] sm:$0xff]
      %v926 = vld [vmem:[%s3 + $0x28] sm:$0xff]
      %v927 = vld [vmem:[%s3 + $0x30] sm:$0xff]
      %v928 = vld [vmem:[%s3 + $0x38] sm:$0xff]
      %930 = vset.pattern.permute.xlu0 0
      %931 = vperm.xlu0 %930, %v921
      %v932 = vpop.permute.xlu0 %931
      %935 = vset.pattern.permute.xlu0 0
      %936 = vperm.xlu0 %935, %v922
      %v937 = vpop.permute.xlu0 %936
      %940 = vset.pattern.permute.xlu0 0
      %941 = vperm.xlu0 %940, %v923
      %v942 = vpop.permute.xlu0 %941
      %945 = vset.pattern.permute.xlu0 0
      %946 = vperm.xlu0 %945, %v924
      %v947 = vpop.permute.xlu0 %946
      %950 = vset.pattern.permute.xlu0 0
      %951 = vperm.xlu0 %950, %v925
      %v952 = vpop.permute.xlu0 %951
      %955 = vset.pattern.permute.xlu0 0
      %956 = vperm.xlu0 %955, %v926
      %v957 = vpop.permute.xlu0 %956
      %960 = vset.pattern.permute.xlu0 0
      %961 = vperm.xlu0 %960, %v927
      %v962 = vpop.permute.xlu0 %961
      %965 = vset.pattern.permute.xlu0 0
      %966 = vperm.xlu0 %965, %v928
      %v967 = vpop.permute.xlu0 %966
      %v977 = vunpack.c.l.b16 %v913
      %v978 = vunpack.c.l.b16 %v914
      %v979 = vunpack.c.l.b16 %v915
      %v980 = vunpack.c.l.b16 %v916
      %v981 = vunpack.c.l.b16 %v917
      %v982 = vunpack.c.l.b16 %v918
      %v983 = vunpack.c.l.b16 %v919
      %v984 = vunpack.c.l.b16 %v920
      %v985 = vpack.c.b16 %v978, %v977
      %v986 = vpack.c.b16 %v980, %v979
      %v987 = vpack.c.b16 %v982, %v981
      %v988 = vpack.c.b16 %v984, %v983
      %vm989 = vcmask 490496
      %v991 = vsel %vm989, %v985, 0
      %v994 = vsel %vm989, %v986, 0
      %v997 = vsel %vm989, %v987, 0
      %v1000 = vsel %vm989, %v988, 0
      %vm1002 = vcmask 1045504
      %v1004 = vsel %vm1002, %v893, 0
      %v1007 = vsel %vm1002, %v895, 0
      %1009 = vmatprep.subr.bf16.mxu0 %v854
      %1010 = vmatpush1.bf16.msra.mxu0 %v860
      %1011 = vmatprep.subr.bf16.mxu0 %v902
      %1012 = vmatpush1.bf16.msra.mxu0 %v898
      %1013 = vmatprep.subr.bf16.mxu0 %v911
      %1014 = vmatpush1.bf16.msra.mxu0 %v907
      %1015 = vmatprep.subr.bf16.mxu0 %v1007
      %1016 = vmatpush1.bf16.msra.mxu0 %v1004
      %1017 = vmatprep.subr.bf16.mxu0 0
      %1018 = vmatpush1.bf16.msra.mxu0 0
      %1019 = vmatprep.subr.bf16.mxu0 0
      %1020 = vmatpush1.bf16.msra.mxu0 0
      %1021 = vmatprep.subr.bf16.mxu0 0
      %1022 = vmatpush1.bf16.msra.mxu0 0
      %1023 = vmatprep.subr.bf16.mxu0 0
      %1024 = vmatpush1.bf16.msra.mxu0 0
      %1025 = vmatprep.subr.bf16.mxu0 0
      %1026 = vmatpush1.bf16.msra.mxu0 0
      %1027 = vmatprep.subr.bf16.mxu0 0
      %1028 = vmatpush1.bf16.msra.mxu0 0
      %1029 = vmatprep.subr.bf16.mxu0 0
      %1030 = vmatpush1.bf16.msra.mxu0 0
      %1031 = vmatprep.subr.bf16.mxu0 0
      %1032 = vmatpush1.bf16.msra.mxu0 0
      %1033 = vmatprep.subr.bf16.mxu0 0
      %1034 = vmatpush1.bf16.msra.mxu0 0
      %1035 = vmatprep.subr.bf16.mxu0 0
      %1036 = vmatpush1.bf16.msra.mxu0 0
      %1037 = vmatprep.subr.bf16.mxu0 0
      %1038 = vmatpush1.bf16.msra.mxu0 0
      %1039 = vmatprep.subr.bf16.mxu0 0
      %1040 = vmatpush1.bf16.msra.mxu0 0
      %1041 = vmatprep.mubr.bf16.mxu0 0
      %1042 = vmatmul.mubr.bf16.gmra.mrb[0].mxu0 %v991
      %v1043 = vpop.f32.mrb[0].mxu0
      %v1044 = vadd.f32 %v932, %v1043
      %v1045 = vpop.f32.mrb[0].mxu0
      %v1046 = vadd.f32 %v932, %v1045
      %v1047 = vpop.f32.mrb[0].mxu0
      %v1048 = vadd.f32 %v937, %v1047
      %v1049 = vpop.f32.mrb[0].mxu0
      %v1050 = vadd.f32 %v937, %v1049
      %1051 = vmatprep.mubr.bf16.mxu0 0
      %1052 = vmatmul.mubr.bf16.gmra.mrb[0].mxu0 %v994
      %v1053 = vpop.f32.mrb[0].mxu0
      %v1054 = vadd.f32 %v942, %v1053
      %v1055 = vpop.f32.mrb[0].mxu0
      %v1056 = vadd.f32 %v942, %v1055
      %v1057 = vpop.f32.mrb[0].mxu0
      %v1058 = vadd.f32 %v947, %v1057
      %v1059 = vpop.f32.mrb[0].mxu0
      %v1060 = vadd.f32 %v947, %v1059
      %1061 = vmatprep.mubr.bf16.mxu0 0
      %1062 = vmatmul.mubr.bf16.gmra.mrb[0].mxu0 %v997
      %v1063 = vpop.f32.mrb[0].mxu0
      %v1064 = vadd.f32 %v952, %v1063
      %v1065 = vpop.f32.mrb[0].mxu0
      %v1066 = vadd.f32 %v952, %v1065
      %v1067 = vpop.f32.mrb[0].mxu0
      %v1068 = vadd.f32 %v957, %v1067
      %v1069 = vpop.f32.mrb[0].mxu0
      %v1070 = vadd.f32 %v957, %v1069
      %1071 = vmatprep.mubr.bf16.mxu0 0
      %1072 = vmatmul.mubr.bf16.gmra.mrb[0].mxu0 %v1000
      %v1073 = vpop.f32.mrb[0].mxu0
      %v1074 = vadd.f32 %v962, %v1073
      %v1075 = vpop.f32.mrb[0].mxu0
      %v1076 = vadd.f32 %v962, %v1075
      %v1077 = vpop.f32.mrb[0].mxu0
      %v1078 = vadd.f32 %v967, %v1077
      %v1079 = vpop.f32.mrb[0].mxu0
      %v1080 = vadd.f32 %v967, %v1079
      %1081 = vdwg.mxu0
      %v1082 = vmax.f32 %v1044, 0.0
      %v1083 = vmax.f32 %v1046, 0.0
      %v1084 = vmax.f32 %v1048, 0.0
      %v1085 = vmax.f32 %v1050, 0.0
      %v1086 = vmax.f32 %v1054, 0.0
      %v1087 = vmax.f32 %v1056, 0.0
      %v1088 = vmax.f32 %v1058, 0.0
      %v1089 = vmax.f32 %v1060, 0.0
      %v1090 = vmax.f32 %v1064, 0.0
      %v1091 = vmax.f32 %v1066, 0.0
      %v1092 = vmax.f32 %v1068, 0.0
      %v1093 = vmax.f32 %v1070, 0.0
      %v1094 = vmax.f32 %v1074, 0.0
      %v1095 = vmax.f32 %v1076, 0.0
      %v1096 = vmax.f32 %v1078, 0.0
      %v1097 = vmax.f32 %v1080, 0.0
      %v1098 = vpack.c.bf16 %v1084, %v1082
      %v1099 = vpack.c.bf16 %v1085, %v1083
      %v1100 = vpack.c.bf16 %v1088, %v1086
      %v1101 = vpack.c.bf16 %v1089, %v1087
      %v1102 = vpack.c.bf16 %v1092, %v1090
      %v1103 = vpack.c.bf16 %v1093, %v1091
      %v1104 = vpack.c.bf16 %v1096, %v1094
      %v1105 = vpack.c.bf16 %v1097, %v1095
      %1114 = vrot.lane.b32.xlu0 %v1098, 1
      %v1115 = vpop.permute.xlu0 %1114
      %1116 = vrot.lane.b32.xlu0 %v1099, 1
      %v1117 = vpop.permute.xlu0 %1116
      %1118 = vrot.lane.b32.xlu0 %v1100, 1
      %v1119 = vpop.permute.xlu0 %1118
      %1120 = vrot.lane.b32.xlu0 %v1101, 1
      %v1121 = vpop.permute.xlu0 %1120
      %1122 = vrot.lane.b32.xlu0 %v1102, 1
      %v1123 = vpop.permute.xlu0 %1122
      %1124 = vrot.lane.b32.xlu0 %v1103, 1
      %v1125 = vpop.permute.xlu0 %1124
      %1126 = vrot.lane.b32.xlu0 %v1104, 1
      %v1127 = vpop.permute.xlu0 %1126
      %1128 = vrot.lane.b32.xlu0 %v1105, 1
      %v1129 = vpop.permute.xlu0 %1128
      %v1130 = vsel %vm853, %v1115, %v1117
      %v1131 = vsel %vm853, %v1119, %v1121
      %v1132 = vsel %vm853, %v1123, %v1125
      %v1133 = vsel %vm853, %v1127, %v1129
      %v1139 = vsel %vm857, 0, %v1115
      %v1142 = vsel %vm857, 0, %v1119
      %v1145 = vsel %vm857, 0, %v1123
      %v1148 = vsel %vm857, 0, %v1127
      %1150 = vrot.lane.b32.xlu0 %v1098, 127
      %v1151 = vpop.permute.xlu0 %1150
      %1152 = vrot.lane.b32.xlu0 %v1099, 127
      %v1153 = vpop.permute.xlu0 %1152
      %1154 = vrot.lane.b32.xlu0 %v1100, 127
      %v1155 = vpop.permute.xlu0 %1154
      %1156 = vrot.lane.b32.xlu0 %v1101, 127
      %v1157 = vpop.permute.xlu0 %1156
      %1158 = vrot.lane.b32.xlu0 %v1102, 127
      %v1159 = vpop.permute.xlu0 %1158
      %1160 = vrot.lane.b32.xlu0 %v1103, 127
      %v1161 = vpop.permute.xlu0 %1160
      %1162 = vrot.lane.b32.xlu0 %v1104, 127
      %v1163 = vpop.permute.xlu0 %1162
      %1164 = vrot.lane.b32.xlu0 %v1105, 127
      %v1165 = vpop.permute.xlu0 %1164
      %v1166 = vsel %vm872, %v1151, %v1153
      %v1167 = vsel %vm872, %v1155, %v1157
      %v1168 = vsel %vm872, %v1159, %v1161
      %v1169 = vsel %vm872, %v1163, %v1165
      %v1175 = vsel %vm875, %v1153, 0
      %v1178 = vsel %vm875, %v1157, 0
      %v1181 = vsel %vm875, %v1161, 0
      %v1184 = vsel %vm875, %v1165, 0
      %v1186 = vld [vmem:[%s4] sm:$0xff]
      %v1187 = vld [vmem:[%s4 + $0x8] sm:$0xff]
      %v1188 = vld [vmem:[%s4 + $0x10] sm:$0xff]
      %v1189 = vld [vmem:[%s4 + $0x18] sm:$0xff]
      %v1190 = vld [vmem:[%s4 + $0x20] sm:$0xff]
      %v1191 = vld [vmem:[%s4 + $0x28] sm:$0xff]
      %v1192 = vld [vmem:[%s4 + $0x30] sm:$0xff]
      %v1193 = vld [vmem:[%s4 + $0x38] sm:$0xff]
      %v1194 = vld [vmem:[%s5] sm:$0xff]
      %v1195 = vld [vmem:[%s5 + $0x8] sm:$0xff]
      %v1196 = vld [vmem:[%s5 + $0x10] sm:$0xff]
      %v1197 = vld [vmem:[%s5 + $0x18] sm:$0xff]
      %v1198 = vld [vmem:[%s5 + $0x20] sm:$0xff]
      %v1199 = vld [vmem:[%s5 + $0x28] sm:$0xff]
      %v1200 = vld [vmem:[%s5 + $0x30] sm:$0xff]
      %v1201 = vld [vmem:[%s5 + $0x38] sm:$0xff]
      %1203 = vset.pattern.permute.xlu0 0
      %1204 = vperm.xlu0 %1203, %v1194
      %v1205 = vpop.permute.xlu0 %1204
      %1208 = vset.pattern.permute.xlu0 0
      %1209 = vperm.xlu0 %1208, %v1195
      %v1210 = vpop.permute.xlu0 %1209
      %1213 = vset.pattern.permute.xlu0 0
      %1214 = vperm.xlu0 %1213, %v1196
      %v1215 = vpop.permute.xlu0 %1214
      %1218 = vset.pattern.permute.xlu0 0
      %1219 = vperm.xlu0 %1218, %v1197
      %v1220 = vpop.permute.xlu0 %1219
      %1223 = vset.pattern.permute.xlu0 0
      %1224 = vperm.xlu0 %1223, %v1198
      %v1225 = vpop.permute.xlu0 %1224
      %1228 = vset.pattern.permute.xlu0 0
      %1229 = vperm.xlu0 %1228, %v1199
      %v1230 = vpop.permute.xlu0 %1229
      %1233 = vset.pattern.permute.xlu0 0
      %1234 = vperm.xlu0 %1233, %v1200
      %v1235 = vpop.permute.xlu0 %1234
      %1238 = vset.pattern.permute.xlu0 0
      %1239 = vperm.xlu0 %1238, %v1201
      %v1240 = vpop.permute.xlu0 %1239
      %v1250 = vunpack.c.l.b16 %v1186
      %v1251 = vunpack.c.h.b16 %v1186
      %v1252 = vunpack.c.l.b16 %v1187
      %v1253 = vunpack.c.h.b16 %v1187
      %v1254 = vunpack.c.l.b16 %v1188
      %v1255 = vunpack.c.h.b16 %v1188
      %v1256 = vunpack.c.l.b16 %v1189
      %v1257 = vunpack.c.h.b16 %v1189
      %v1258 = vunpack.c.l.b16 %v1190
      %v1259 = vunpack.c.h.b16 %v1190
      %v1260 = vunpack.c.l.b16 %v1191
      %v1261 = vunpack.c.h.b16 %v1191
      %v1262 = vunpack.c.l.b16 %v1192
      %v1263 = vunpack.c.h.b16 %v1192
      %v1264 = vunpack.c.l.b16 %v1193
      %v1265 = vunpack.c.h.b16 %v1193
      %v1266 = vpack.c.b16 %v1252, %v1250
      %v1267 = vpack.c.b16 %v1253, %v1251
      %v1268 = vpack.c.b16 %v1256, %v1254
      %v1269 = vpack.c.b16 %v1257, %v1255
      %v1270 = vpack.c.b16 %v1260, %v1258
      %v1271 = vpack.c.b16 %v1261, %v1259
      %v1272 = vpack.c.b16 %v1264, %v1262
      %v1273 = vpack.c.b16 %v1265, %v1263
      %vm1278 = vcmask 523264
      %v1280 = vsel %vm1278, %v1267, 0
      %v1283 = vsel %vm1278, %v1269, 0
      %v1286 = vsel %vm1278, %v1271, 0
      %v1289 = vsel %vm1278, %v1273, 0
      %1291 = vmatprep.subr.bf16.mxu0 %v1130
      %1292 = vmatpush1.bf16.msra.mxu0 %v1139
      %1293 = vmatprep.subr.bf16.mxu0 %v1131
      %1294 = vmatpush1.bf16.msra.mxu0 %v1142
      %1295 = vmatprep.subr.bf16.mxu0 %v1132
      %1296 = vmatpush1.bf16.msra.mxu0 %v1145
      %1297 = vmatprep.subr.bf16.mxu0 %v1133
      %1298 = vmatpush1.bf16.msra.mxu0 %v1148
      %1299 = vmatprep.subr.bf16.mxu0 %v1099
      %1300 = vmatpush1.bf16.msra.mxu0 %v1098
      %1301 = vmatprep.subr.bf16.mxu0 %v1101
      %1302 = vmatpush1.bf16.msra.mxu0 %v1100
      %1303 = vmatprep.subr.bf16.mxu0 %v1103
      %1304 = vmatpush1.bf16.msra.mxu0 %v1102
      %1305 = vmatprep.subr.bf16.mxu0 %v1105
      %1306 = vmatpush1.bf16.msra.mxu0 %v1104
      %1307 = vmatprep.subr.bf16.mxu0 %v1175
      %1308 = vmatpush1.bf16.msra.mxu0 %v1166
      %1309 = vmatprep.subr.bf16.mxu0 %v1178
      %1310 = vmatpush1.bf16.msra.mxu0 %v1167
      %1311 = vmatprep.subr.bf16.mxu0 %v1181
      %1312 = vmatpush1.bf16.msra.mxu0 %v1168
      %1313 = vmatprep.subr.bf16.mxu0 %v1184
      %1314 = vmatpush1.bf16.msra.mxu0 %v1169
      %1315 = vmatprep.subr.bf16.mxu0 0
      %1316 = vmatpush1.bf16.msra.mxu0 0
      %1317 = vmatprep.subr.bf16.mxu0 0
      %1318 = vmatpush1.bf16.msra.mxu0 0
      %1319 = vmatprep.subr.bf16.mxu0 0
      %1320 = vmatpush1.bf16.msra.mxu0 0
      %1321 = vmatprep.subr.bf16.mxu0 0
      %1322 = vmatpush1.bf16.msra.mxu0 0
      %1323 = vmatprep.mubr.bf16.mxu0 %v1280
      %1324 = vmatmul.mubr.bf16.gmra.mrb[0].mxu0 %v1266
      %v1325 = vpop.f32.mrb[0].mxu0
      %v1326 = vadd.f32 %v1205, %v1325
      %v1327 = vpop.f32.mrb[0].mxu0
      %v1328 = vadd.f32 %v1205, %v1327
      %v1329 = vpop.f32.mrb[0].mxu0
      %v1330 = vadd.f32 %v1210, %v1329
      %v1331 = vpop.f32.mrb[0].mxu0
      %v1332 = vadd.f32 %v1210, %v1331
      %1333 = vmatprep.mubr.bf16.mxu0 %v1283
      %1334 = vmatmul.mubr.bf16.gmra.mrb[0].mxu0 %v1268
      %v1335 = vpop.f32.mrb[0].mxu0
      %v1336 = vadd.f32 %v1215, %v1335
      %v1337 = vpop.f32.mrb[0].mxu0
      %v1338 = vadd.f32 %v1215, %v1337
      %v1339 = vpop.f32.mrb[0].mxu0
      %v1340 = vadd.f32 %v1220, %v1339
      %v1341 = vpop.f32.mrb[0].mxu0
      %v1342 = vadd.f32 %v1220, %v1341
      %1343 = vmatprep.mubr.bf16.mxu0 %v1286
      %1344 = vmatmul.mubr.bf16.gmra.mrb[0].mxu0 %v1270
      %v1345 = vpop.f32.mrb[0].mxu0
      %v1346 = vadd.f32 %v1225, %v1345
      %v1347 = vpop.f32.mrb[0].mxu0
      %v1348 = vadd.f32 %v1225, %v1347
      %v1349 = vpop.f32.mrb[0].mxu0
      %v1350 = vadd.f32 %v1230, %v1349
      %v1351 = vpop.f32.mrb[0].mxu0
      %v1352 = vadd.f32 %v1230, %v1351
      %1353 = vmatprep.mubr.bf16.mxu0 %v1289
      %1354 = vmatmul.mubr.bf16.gmra.mrb[0].mxu0 %v1272
      %v1355 = vpop.f32.mrb[0].mxu0
      %v1356 = vadd.f32 %v1235, %v1355
      %v1357 = vpop.f32.mrb[0].mxu0
      %v1358 = vadd.f32 %v1235, %v1357
      %v1359 = vpop.f32.mrb[0].mxu0
      %v1360 = vadd.f32 %v1240, %v1359
      %v1361 = vpop.f32.mrb[0].mxu0
      %v1362 = vadd.f32 %v1240, %v1361
      %1363 = vdwg.mxu0
      %v1364 = vmax.f32 %v1326, 0.0
      %v1365 = vmax.f32 %v1328, 0.0
      %v1366 = vmax.f32 %v1330, 0.0
      %v1367 = vmax.f32 %v1332, 0.0
      %v1368 = vmax.f32 %v1336, 0.0
      %v1369 = vmax.f32 %v1338, 0.0
      %v1370 = vmax.f32 %v1340, 0.0
      %v1371 = vmax.f32 %v1342, 0.0
      %v1372 = vmax.f32 %v1346, 0.0
      %v1373 = vmax.f32 %v1348, 0.0
      %v1374 = vmax.f32 %v1350, 0.0
      %v1375 = vmax.f32 %v1352, 0.0
      %v1376 = vmax.f32 %v1356, 0.0
      %v1377 = vmax.f32 %v1358, 0.0
      %v1378 = vmax.f32 %v1360, 0.0
      %v1379 = vmax.f32 %v1362, 0.0
      %v1380 = vpack.c.bf16 %v1366, %v1364
      %v1381 = vpack.c.bf16 %v1367, %v1365
      %v1382 = vpack.c.bf16 %v1370, %v1368
      %v1383 = vpack.c.bf16 %v1371, %v1369
      %v1384 = vpack.c.bf16 %v1374, %v1372
      %v1385 = vpack.c.bf16 %v1375, %v1373
      %v1386 = vpack.c.bf16 %v1378, %v1376
      %v1387 = vpack.c.bf16 %v1379, %v1377
      %1396 = vrot.lane.b32.xlu0 %v1380, 127
      %v1397 = vpop.permute.xlu0 %1396
      %1398 = vrot.lane.b32.xlu0 %v1381, 127
      %v1399 = vpop.permute.xlu0 %1398
      %1400 = vrot.lane.b32.xlu0 %v1382, 127
      %v1401 = vpop.permute.xlu0 %1400
      %1402 = vrot.lane.b32.xlu0 %v1383, 127
      %v1403 = vpop.permute.xlu0 %1402
      %1404 = vrot.lane.b32.xlu0 %v1384, 127
      %v1405 = vpop.permute.xlu0 %1404
      %1406 = vrot.lane.b32.xlu0 %v1385, 127
      %v1407 = vpop.permute.xlu0 %1406
      %1408 = vrot.lane.b32.xlu0 %v1386, 127
      %v1409 = vpop.permute.xlu0 %1408
      %1410 = vrot.lane.b32.xlu0 %v1387, 127
      %v1411 = vpop.permute.xlu0 %1410
      %v1412 = vsel %vm872, %v1397, %v1399
      %v1413 = vsel %vm872, %v1401, %v1403
      %v1414 = vsel %vm872, %v1405, %v1407
      %v1415 = vsel %vm872, %v1409, %v1411
      %v1421 = vsel %vm875, %v1399, 0
      %v1424 = vsel %vm875, %v1403, 0
      %v1427 = vsel %vm875, %v1407, 0
      %v1430 = vsel %vm875, %v1411, 0
      %v1432 = vmax.bf16 %v1380, %v1412
      %v1433 = vmax.bf16 %v1381, %v1421
      %v1434 = vmax.bf16 %v1382, %v1413
      %v1435 = vmax.bf16 %v1383, %v1424
      %v1436 = vmax.bf16 %v1384, %v1414
      %v1437 = vmax.bf16 %v1385, %v1427
      %v1438 = vmax.bf16 %v1386, %v1415
      %v1439 = vmax.bf16 %v1387, %v1430
      %v1440 = vld [vmem:[%s20] sm:$0xf]
      %v1441 = vld [vmem:[%s20 + $0x4] sm:$0xf]
      %v1442 = vld [vmem:[%s20 + $0x8] sm:$0xf]
      %v1443 = vld [vmem:[%s20 + $0xc] sm:$0xf]
      %v1444 = vld [vmem:[%s20 + $0x10] sm:$0xf]
      %v1445 = vld [vmem:[%s20 + $0x14] sm:$0xf]
      %v1446 = vld [vmem:[%s20 + $0x18] sm:$0xf]
      %v1447 = vld [vmem:[%s20 + $0x1c] sm:$0xf]
      %v1448 = vld [vmem:[%s20 + $0x20] sm:$0xf]
      %v1449 = vld [vmem:[%s20 + $0x24] sm:$0xf]
      %v1450 = vld [vmem:[%s20 + $0x28] sm:$0xf]
      %v1451 = vld [vmem:[%s20 + $0x2c] sm:$0xf]
      %v1452 = vld [vmem:[%s20 + $0x30] sm:$0xf]
      %v1453 = vld [vmem:[%s20 + $0x34] sm:$0xf]
      %v1454 = vld [vmem:[%s20 + $0x38] sm:$0xf]
      %v1455 = vld [vmem:[%s20 + $0x3c] sm:$0xf]
      %v1456 = vld [vmem:[%s20 + $0x40] sm:$0xf]
      %v1457 = vld [vmem:[%s20 + $0x44] sm:$0xf]
      %v1458 = vld [vmem:[%s20 + $0x48] sm:$0xf]
      %v1459 = vld [vmem:[%s20 + $0x4c] sm:$0xf]
      %v1460 = vld [vmem:[%s20 + $0x50] sm:$0xf]
      %v1461 = vld [vmem:[%s20 + $0x54] sm:$0xf]
      %v1462 = vld [vmem:[%s20 + $0x58] sm:$0xf]
      %v1463 = vld [vmem:[%s20 + $0x5c] sm:$0xf]
      %v1464 = vld [vmem:[%s20 + $0x60] sm:$0xf]
      %v1465 = vld [vmem:[%s20 + $0x64] sm:$0xf]
      %v1466 = vld [vmem:[%s20 + $0x68] sm:$0xf]
      %v1467 = vld [vmem:[%s20 + $0x6c] sm:$0xf]
      %v1468 = vld [vmem:[%s20 + $0x70] sm:$0xf]
      %v1469 = vld [vmem:[%s20 + $0x74] sm:$0xf]
      %v1470 = vld [vmem:[%s20 + $0x78] sm:$0xf]
      %v1471 = vld [vmem:[%s20 + $0x7c] sm:$0xf]
      %v1504 = vunpack.c.l.b16 %v1440
      %v1505 = vunpack.c.l.b16 %v1441
      %v1506 = vunpack.c.l.b16 %v1442
      %v1507 = vunpack.c.l.b16 %v1443
      %v1508 = vunpack.c.l.b16 %v1444
      %v1509 = vunpack.c.l.b16 %v1445
      %v1510 = vunpack.c.l.b16 %v1446
      %v1511 = vunpack.c.l.b16 %v1447
      %v1512 = vunpack.c.l.b16 %v1448
      %v1513 = vunpack.c.l.b16 %v1449
      %v1514 = vunpack.c.l.b16 %v1450
      %v1515 = vunpack.c.l.b16 %v1451
      %v1516 = vunpack.c.l.b16 %v1452
      %v1517 = vunpack.c.l.b16 %v1453
      %v1518 = vunpack.c.l.b16 %v1454
      %v1519 = vunpack.c.l.b16 %v1455
      %v1520 = vunpack.c.l.b16 %v1456
      %v1521 = vunpack.c.l.b16 %v1457
      %v1522 = vunpack.c.l.b16 %v1458
      %v1523 = vunpack.c.l.b16 %v1459
      %v1524 = vunpack.c.l.b16 %v1460
      %v1525 = vunpack.c.l.b16 %v1461
      %v1526 = vunpack.c.l.b16 %v1462
      %v1527 = vunpack.c.l.b16 %v1463
      %v1528 = vunpack.c.l.b16 %v1464
      %v1529 = vunpack.c.l.b16 %v1465
      %v1530 = vunpack.c.l.b16 %v1466
      %v1531 = vunpack.c.l.b16 %v1467
      %v1532 = vunpack.c.l.b16 %v1468
      %v1533 = vunpack.c.l.b16 %v1469
      %v1534 = vunpack.c.l.b16 %v1470
      %v1535 = vunpack.c.l.b16 %v1471
      %v1536 = vpack.c.b16 %v1505, %v1504
      %v1537 = vpack.c.b16 %v1507, %v1506
      %v1538 = vpack.c.b16 %v1509, %v1508
      %v1539 = vpack.c.b16 %v1511, %v1510
      %v1540 = vpack.c.b16 %v1513, %v1512
      %v1541 = vpack.c.b16 %v1515, %v1514
      %v1542 = vpack.c.b16 %v1517, %v1516
      %v1543 = vpack.c.b16 %v1519, %v1518
      %v1544 = vpack.c.b16 %v1521, %v1520
      %v1545 = vpack.c.b16 %v1523, %v1522
      %v1546 = vpack.c.b16 %v1525, %v1524
      %v1547 = vpack.c.b16 %v1527, %v1526
      %v1548 = vpack.c.b16 %v1529, %v1528
      %v1549 = vpack.c.b16 %v1531, %v1530
      %v1550 = vpack.c.b16 %v1533, %v1532
      %v1551 = vpack.c.b16 %v1535, %v1534
      %1568 = vmatprep.subr.bf16.mxu0 0
      %1569 = vmatpush1.bf16.msra.mxu0 %v1536
      %1570 = vmatprep.subr.bf16.mxu0 0
      %1571 = vmatpush1.bf16.msra.mxu0 %v1537
      %1572 = vmatprep.subr.bf16.mxu0 0
      %1573 = vmatpush1.bf16.msra.mxu0 %v1538
      %1574 = vmatprep.subr.bf16.mxu0 0
      %1575 = vmatpush1.bf16.msra.mxu0 %v1539
      %1576 = vmatprep.subr.bf16.mxu0 0
      %1577 = vmatpush1.bf16.msra.mxu0 %v1540
      %1578 = vmatprep.subr.bf16.mxu0 0
      %1579 = vmatpush1.bf16.msra.mxu0 %v1541
      %1580 = vmatprep.subr.bf16.mxu0 0
      %1581 = vmatpush1.bf16.msra.mxu0 %v1542
      %1582 = vmatprep.subr.bf16.mxu0 0
      %1583 = vmatpush1.bf16.msra.mxu0 %v1543
      %1584 = vmatprep.subr.bf16.mxu0 0
      %1585 = vmatpush1.bf16.msra.mxu0 %v1544
      %1586 = vmatprep.subr.bf16.mxu0 0
      %1587 = vmatpush1.bf16.msra.mxu0 %v1545
      %1588 = vmatprep.subr.bf16.mxu0 0
      %1589 = vmatpush1.bf16.msra.mxu0 %v1546
      %1590 = vmatprep.subr.bf16.mxu0 0
      %1591 = vmatpush1.bf16.msra.mxu0 %v1547
      %1592 = vmatprep.subr.bf16.mxu0 0
      %1593 = vmatpush1.bf16.msra.mxu0 %v1548
      %1594 = vmatprep.subr.bf16.mxu0 0
      %1595 = vmatpush1.bf16.msra.mxu0 %v1549
      %1596 = vmatprep.subr.bf16.mxu0 0
      %1597 = vmatpush1.bf16.msra.mxu0 %v1550
      %1598 = vmatprep.subr.bf16.mxu0 0
      %1599 = vmatpush1.bf16.msra.mxu0 %v1551
      %1600 = vmatprep.mubr.bf16.mxu0 %v1433
      %1601 = vmatmul.mubr.bf16.gmra.mrb[0].mxu0 %v1432
      %v1602 = vpop.f32.mrb[0].mxu0
      %v1603 = vadd.f32 0.0, %v1602
      %v1604 = vpop.f32.mrb[0].mxu0
      %v1605 = vpop.f32.mrb[0].mxu0
      %v1606 = vadd.f32 0.0, %v1605
      %v1607 = vpop.f32.mrb[0].mxu0
      %1608 = vmatprep.mubr.bf16.mxu0 %v1435
      %1609 = vmatmul.mubr.bf16.gmra.mrb[0].mxu0 %v1434
      %v1610 = vpop.f32.mrb[0].mxu0
      %v1611 = vadd.f32 0.0, %v1610
      %v1612 = vpop.f32.mrb[0].mxu0
      %v1613 = vpop.f32.mrb[0].mxu0
      %v1614 = vadd.f32 0.0, %v1613
      %v1615 = vpop.f32.mrb[0].mxu0
      %1616 = vmatprep.mubr.bf16.mxu0 %v1437
      %1617 = vmatmul.mubr.bf16.gmra.mrb[0].mxu0 %v1436
      %v1618 = vpop.f32.mrb[0].mxu0
      %v1619 = vadd.f32 0.0, %v1618
      %v1620 = vpop.f32.mrb[0].mxu0
      %v1621 = vpop.f32.mrb[0].mxu0
      %v1622 = vadd.f32 0.0, %v1621
      %v1623 = vpop.f32.mrb[0].mxu0
      %1624 = vmatprep.mubr.bf16.mxu0 %v1439
      %1625 = vmatmul.mubr.bf16.gmra.mrb[0].mxu0 %v1438
      %v1626 = vpop.f32.mrb[0].mxu0
      %v1627 = vadd.f32 0.0, %v1626
      %v1628 = vpop.f32.mrb[0].mxu0
      %v1629 = vpop.f32.mrb[0].mxu0
      %v1630 = vadd.f32 0.0, %v1629
      %v1631 = vpop.f32.mrb[0].mxu0
      %1632 = vdwg.mxu0
      %v1633 = vpack.c.bf16 %v1606, %v1603
      %v1634 = vpack.c.bf16 %v1614, %v1611
      %v1635 = vpack.c.bf16 %v1622, %v1619
      %v1636 = vpack.c.bf16 %v1630, %v1627
      %1641 = vrot.lane.b32.xlu0 %v1633, 1
      %v1642 = vpop.permute.xlu0 %1641
      %1643 = vrot.lane.b32.xlu0 %v1634, 1
      %v1644 = vpop.permute.xlu0 %1643
      %1645 = vrot.lane.b32.xlu0 %v1635, 1
      %v1646 = vpop.permute.xlu0 %1645
      %1647 = vrot.lane.b32.xlu0 %v1636, 1
      %v1648 = vpop.permute.xlu0 %1647
      %v1650 = vsel %vm857, 0, %v1642
      %v1653 = vsel %vm857, 0, %v1644
      %v1656 = vsel %vm857, 0, %v1646
      %v1659 = vsel %vm857, 0, %v1648
      %1661 = vrot.lane.b32.xlu0 %v1633, 127
      %v1662 = vpop.permute.xlu0 %1661
      %1663 = vrot.lane.b32.xlu0 %v1634, 127
      %v1664 = vpop.permute.xlu0 %1663
      %1665 = vrot.lane.b32.xlu0 %v1635, 127
      %v1666 = vpop.permute.xlu0 %1665
      %1667 = vrot.lane.b32.xlu0 %v1636, 127
      %v1668 = vpop.permute.xlu0 %1667
      %v1670 = vsel %vm875, %v1662, 0
      %v1673 = vsel %vm875, %v1664, 0
      %v1676 = vsel %vm875, %v1666, 0
      %v1679 = vsel %vm875, %v1668, 0
      %v1681 = vld [vmem:[%s6] sm:$0xff]
      %v1682 = vld [vmem:[%s6 + $0x8] sm:$0xff]
      %v1683 = vld [vmem:[%s6 + $0x10] sm:$0xff]
      %v1684 = vld [vmem:[%s6 + $0x18] sm:$0xff]
      %v1685 = vld [vmem:[%s6 + $0x20] sm:$0xff]
      %v1686 = vld [vmem:[%s6 + $0x28] sm:$0xff]
      %v1687 = vld [vmem:[%s6 + $0x30] sm:$0xff]
      %v1688 = vld [vmem:[%s6 + $0x38] sm:$0xff]
      %v1689 = vld [vmem:[%s7] sm:$0xff]
      %v1690 = vld [vmem:[%s7 + $0x8] sm:$0xff]
      %v1691 = vld [vmem:[%s7 + $0x10] sm:$0xff]
      %v1692 = vld [vmem:[%s7 + $0x18] sm:$0xff]
      %v1693 = vld [vmem:[%s7 + $0x20] sm:$0xff]
      %v1694 = vld [vmem:[%s7 + $0x28] sm:$0xff]
      %v1695 = vld [vmem:[%s7 + $0x30] sm:$0xff]
      %v1696 = vld [vmem:[%s7 + $0x38] sm:$0xff]
      %1698 = vset.pattern.permute.xlu0 0
      %1699 = vperm.xlu0 %1698, %v1689
      %v1700 = vpop.permute.xlu0 %1699
      %1703 = vset.pattern.permute.xlu0 0
      %1704 = vperm.xlu0 %1703, %v1690
      %v1705 = vpop.permute.xlu0 %1704
      %1708 = vset.pattern.permute.xlu0 0
      %1709 = vperm.xlu0 %1708, %v1691
      %v1710 = vpop.permute.xlu0 %1709
      %1713 = vset.pattern.permute.xlu0 0
      %1714 = vperm.xlu0 %1713, %v1692
      %v1715 = vpop.permute.xlu0 %1714
      %1718 = vset.pattern.permute.xlu0 0
      %1719 = vperm.xlu0 %1718, %v1693
      %v1720 = vpop.permute.xlu0 %1719
      %1723 = vset.pattern.permute.xlu0 0
      %1724 = vperm.xlu0 %1723, %v1694
      %v1725 = vpop.permute.xlu0 %1724
      %1728 = vset.pattern.permute.xlu0 0
      %1729 = vperm.xlu0 %1728, %v1695
      %v1730 = vpop.permute.xlu0 %1729
      %1733 = vset.pattern.permute.xlu0 0
      %1734 = vperm.xlu0 %1733, %v1696
      %v1735 = vpop.permute.xlu0 %1734
      %v1745 = vunpack.c.l.b16 %v1681
      %v1746 = vunpack.c.h.b16 %v1681
      %v1747 = vunpack.c.l.b16 %v1682
      %v1748 = vunpack.c.h.b16 %v1682
      %v1749 = vunpack.c.l.b16 %v1683
      %v1750 = vunpack.c.h.b16 %v1683
      %v1751 = vunpack.c.l.b16 %v1684
      %v1752 = vunpack.c.h.b16 %v1684
      %v1753 = vunpack.c.l.b16 %v1685
      %v1754 = vunpack.c.h.b16 %v1685
      %v1755 = vunpack.c.l.b16 %v1686
      %v1756 = vunpack.c.h.b16 %v1686
      %v1757 = vunpack.c.l.b16 %v1687
      %v1758 = vunpack.c.h.b16 %v1687
      %v1759 = vunpack.c.l.b16 %v1688
      %v1760 = vunpack.c.h.b16 %v1688
      %v1761 = vpack.c.b16 %v1747, %v1745
      %v1762 = vpack.c.b16 %v1748, %v1746
      %v1763 = vpack.c.b16 %v1751, %v1749
      %v1764 = vpack.c.b16 %v1752, %v1750
      %v1765 = vpack.c.b16 %v1755, %v1753
      %v1766 = vpack.c.b16 %v1756, %v1754
      %v1767 = vpack.c.b16 %v1759, %v1757
      %v1768 = vpack.c.b16 %v1760, %v1758
      %v1774 = vsel %vm1278, %v1762, 0
      %v1777 = vsel %vm1278, %v1764, 0
      %v1780 = vsel %vm1278, %v1766, 0
      %v1783 = vsel %vm1278, %v1768, 0
      %1785 = vmatprep.subr.bf16.mxu0 0
      %1786 = vmatpush1.bf16.msra.mxu0 %v1650
      %1787 = vmatprep.subr.bf16.mxu0 0
      %1788 = vmatpush1.bf16.msra.mxu0 %v1653
      %1789 = vmatprep.subr.bf16.mxu0 0
      %1790 = vmatpush1.bf16.msra.mxu0 %v1656
      %1791 = vmatprep.subr.bf16.mxu0 0
      %1792 = vmatpush1.bf16.msra.mxu0 %v1659
      %1793 = vmatprep.subr.bf16.mxu0 0
      %1794 = vmatpush1.bf16.msra.mxu0 %v1633
      %1795 = vmatprep.subr.bf16.mxu0 0
      %1796 = vmatpush1.bf16.msra.mxu0 %v1634
      %1797 = vmatprep.subr.bf16.mxu0 0
      %1798 = vmatpush1.bf16.msra.mxu0 %v1635
      %1799 = vmatprep.subr.bf16.mxu0 0
      %1800 = vmatpush1.bf16.msra.mxu0 %v1636
      %1801 = vmatprep.subr.bf16.mxu0 0
      %1802 = vmatpush1.bf16.msra.mxu0 %v1670
      %1803 = vmatprep.subr.bf16.mxu0 0
      %1804 = vmatpush1.bf16.msra.mxu0 %v1673
      %1805 = vmatprep.subr.bf16.mxu0 0
      %1806 = vmatpush1.bf16.msra.mxu0 %v1676
      %1807 = vmatprep.subr.bf16.mxu0 0
      %1808 = vmatpush1.bf16.msra.mxu0 %v1679
      %1809 = vmatprep.subr.bf16.mxu0 0
      %1810 = vmatpush1.bf16.msra.mxu0 0
      %1811 = vmatprep.subr.bf16.mxu0 0
      %1812 = vmatpush1.bf16.msra.mxu0 0
      %1813 = vmatprep.subr.bf16.mxu0 0
      %1814 = vmatpush1.bf16.msra.mxu0 0
      %1815 = vmatprep.subr.bf16.mxu0 0
      %1816 = vmatpush1.bf16.msra.mxu0 0
      %1817 = vmatprep.mubr.bf16.mxu0 %v1774
      %1818 = vmatmul.mubr.bf16.gmra.mrb[0].mxu0 %v1761
      %v1819 = vpop.f32.mrb[0].mxu0
      %v1820 = vadd.f32 %v1700, %v1819
      %v1821 = vpop.f32.mrb[0].mxu0
      %v1822 = vpop.f32.mrb[0].mxu0
      %v1823 = vadd.f32 %v1705, %v1822
      %v1824 = vpop.f32.mrb[0].mxu0
      %1825 = vmatprep.mubr.bf16.mxu0 %v1777
      %1826 = vmatmul.mubr.bf16.gmra.mrb[0].mxu0 %v1763
      %v1827 = vpop.f32.mrb[0].mxu0
      %v1828 = vadd.f32 %v1710, %v1827
      %v1829 = vpop.f32.mrb[0].mxu0
      %v1830 = vpop.f32.mrb[0].mxu0
      %v1831 = vadd.f32 %v1715, %v1830
      %v1832 = vpop.f32.mrb[0].mxu0
      %1833 = vmatprep.mubr.bf16.mxu0 %v1780
      %1834 = vmatmul.mubr.bf16.gmra.mrb[0].mxu0 %v1765
      %v1835 = vpop.f32.mrb[0].mxu0
      %v1836 = vadd.f32 %v1720, %v1835
      %v1837 = vpop.f32.mrb[0].mxu0
      %v1838 = vpop.f32.mrb[0].mxu0
      %v1839 = vadd.f32 %v1725, %v1838
      %v1840 = vpop.f32.mrb[0].mxu0
      %1841 = vmatprep.mubr.bf16.mxu0 %v1783
      %1842 = vmatmul.mubr.bf16.gmra.mrb[0].mxu0 %v1767
      %v1843 = vpop.f32.mrb[0].mxu0
      %v1844 = vadd.f32 %v1730, %v1843
      %v1845 = vpop.f32.mrb[0].mxu0
      %v1846 = vpop.f32.mrb[0].mxu0
      %v1847 = vadd.f32 %v1735, %v1846
      %v1848 = vpop.f32.mrb[0].mxu0
      %1849 = vdwg.mxu0
      %v1850 = vmax.f32 %v1820, 0.0
      %v1851 = vmax.f32 %v1823, 0.0
      %v1852 = vmax.f32 %v1828, 0.0
      %v1853 = vmax.f32 %v1831, 0.0
      %v1854 = vmax.f32 %v1836, 0.0
      %v1855 = vmax.f32 %v1839, 0.0
      %v1856 = vmax.f32 %v1844, 0.0
      %v1857 = vmax.f32 %v1847, 0.0
      %v1858 = vpack.c.bf16 %v1851, %v1850
      %v1859 = vpack.c.bf16 %v1853, %v1852
      %v1860 = vpack.c.bf16 %v1855, %v1854
      %v1861 = vpack.c.bf16 %v1857, %v1856
      %1866 = vrot.lane.b32.xlu0 %v1858, 127
      %v1867 = vpop.permute.xlu0 %1866
      %1868 = vrot.lane.b32.xlu0 %v1859, 127
      %v1869 = vpop.permute.xlu0 %1868
      %1870 = vrot.lane.b32.xlu0 %v1860, 127
      %v1871 = vpop.permute.xlu0 %1870
      %1872 = vrot.lane.b32.xlu0 %v1861, 127
      %v1873 = vpop.permute.xlu0 %1872
      %v1875 = vsel %vm875, %v1867, 0
      %v1878 = vsel %vm875, %v1869, 0
      %v1881 = vsel %vm875, %v1871, 0
      %v1884 = vsel %vm875, %v1873, 0
      %v1886 = vmax.bf16 %v1858, %v1875
      %v1887 = vmax.bf16 %v1859, %v1878
      %v1888 = vmax.bf16 %v1860, %v1881
      %v1889 = vmax.bf16 %v1861, %v1884
      %v1890 = vld [vmem:[%s21] sm:$0xf]
      %v1891 = vld [vmem:[%s21 + $0x4] sm:$0xf]
      %v1892 = vld [vmem:[%s21 + $0x8] sm:$0xf]
      %v1893 = vld [vmem:[%s21 + $0xc] sm:$0xf]
      %v1894 = vld [vmem:[%s21 + $0x10] sm:$0xf]
      %v1895 = vld [vmem:[%s21 + $0x14] sm:$0xf]
      %v1896 = vld [vmem:[%s21 + $0x18] sm:$0xf]
      %v1897 = vld [vmem:[%s21 + $0x1c] sm:$0xf]
      %v1898 = vld [vmem:[%s21 + $0x20] sm:$0xf]
      %v1899 = vld [vmem:[%s21 + $0x24] sm:$0xf]
      %v1900 = vld [vmem:[%s21 + $0x28] sm:$0xf]
      %v1901 = vld [vmem:[%s21 + $0x2c] sm:$0xf]
      %v1902 = vld [vmem:[%s21 + $0x30] sm:$0xf]
      %v1903 = vld [vmem:[%s21 + $0x34] sm:$0xf]
      %v1904 = vld [vmem:[%s21 + $0x38] sm:$0xf]
      %v1905 = vld [vmem:[%s21 + $0x3c] sm:$0xf]
      %v1922 = vunpack.c.l.b16 %v1890
      %v1923 = vunpack.c.l.b16 %v1891
      %v1924 = vunpack.c.l.b16 %v1892
      %v1925 = vunpack.c.l.b16 %v1893
      %v1926 = vunpack.c.l.b16 %v1894
      %v1927 = vunpack.c.l.b16 %v1895
      %v1928 = vunpack.c.l.b16 %v1896
      %v1929 = vunpack.c.l.b16 %v1897
      %v1930 = vunpack.c.l.b16 %v1898
      %v1931 = vunpack.c.l.b16 %v1899
      %v1932 = vunpack.c.l.b16 %v1900
      %v1933 = vunpack.c.l.b16 %v1901
      %v1934 = vunpack.c.l.b16 %v1902
      %v1935 = vunpack.c.l.b16 %v1903
      %v1936 = vunpack.c.l.b16 %v1904
      %v1937 = vunpack.c.l.b16 %v1905
      %v1938 = vpack.c.b16 %v1923, %v1922
      %v1939 = vpack.c.b16 %v1925, %v1924
      %v1940 = vpack.c.b16 %v1927, %v1926
      %v1941 = vpack.c.b16 %v1929, %v1928
      %v1942 = vpack.c.b16 %v1931, %v1930
      %v1943 = vpack.c.b16 %v1933, %v1932
      %v1944 = vpack.c.b16 %v1935, %v1934
      %v1945 = vpack.c.b16 %v1937, %v1936
      %1954 = vmatprep.subr.bf16.mxu0 0
      %1955 = vmatpush1.bf16.msra.mxu0 %v1938
      %1956 = vmatprep.subr.bf16.mxu0 0
      %1957 = vmatpush1.bf16.msra.mxu0 %v1939
      %1958 = vmatprep.subr.bf16.mxu0 0
      %1959 = vmatpush1.bf16.msra.mxu0 %v1940
      %1960 = vmatprep.subr.bf16.mxu0 0
      %1961 = vmatpush1.bf16.msra.mxu0 %v1941
      %1962 = vmatprep.subr.bf16.mxu0 0
      %1963 = vmatpush1.bf16.msra.mxu0 %v1942
      %1964 = vmatprep.subr.bf16.mxu0 0
      %1965 = vmatpush1.bf16.msra.mxu0 %v1943
      %1966 = vmatprep.subr.bf16.mxu0 0
      %1967 = vmatpush1.bf16.msra.mxu0 %v1944
      %1968 = vmatprep.subr.bf16.mxu0 0
      %1969 = vmatpush1.bf16.msra.mxu0 %v1945
      %1970 = vmatprep.subr.bf16.mxu0 0
      %1971 = vmatpush1.bf16.msra.mxu0 0
      %1972 = vmatprep.subr.bf16.mxu0 0
      %1973 = vmatpush1.bf16.msra.mxu0 0
      %1974 = vmatprep.subr.bf16.mxu0 0
      %1975 = vmatpush1.bf16.msra.mxu0 0
      %1976 = vmatprep.subr.bf16.mxu0 0
      %1977 = vmatpush1.bf16.msra.mxu0 0
      %1978 = vmatprep.subr.bf16.mxu0 0
      %1979 = vmatpush1.bf16.msra.mxu0 0
      %1980 = vmatprep.subr.bf16.mxu0 0
      %1981 = vmatpush1.bf16.msra.mxu0 0
      %1982 = vmatprep.subr.bf16.mxu0 0
      %1983 = vmatpush1.bf16.msra.mxu0 0
      %1984 = vmatprep.subr.bf16.mxu0 0
      %1985 = vmatpush1.bf16.msra.mxu0 0
      %1986 = vmatprep.mubr.bf16.mxu0 0
      %1987 = vmatmul.mubr.bf16.gmra.mrb[0].mxu0 %v1886
      %v1988 = vpop.f32.mrb[0].mxu0
      %v1989 = vadd.f32 0.0, %v1988
      %v1990 = vpop.f32.mrb[0].mxu0
      %v1991 = vpop.f32.mrb[0].mxu0
      %v1992 = vadd.f32 0.0, %v1991
      %v1993 = vpop.f32.mrb[0].mxu0
      %1994 = vmatprep.mubr.bf16.mxu0 0
      %1995 = vmatmul.mubr.bf16.gmra.mrb[0].mxu0 %v1887
      %v1996 = vpop.f32.mrb[0].mxu0
      %v1997 = vadd.f32 0.0, %v1996
      %v1998 = vpop.f32.mrb[0].mxu0
      %v1999 = vpop.f32.mrb[0].mxu0
      %v2000 = vadd.f32 0.0, %v1999
      %v2001 = vpop.f32.mrb[0].mxu0
      %2002 = vmatprep.mubr.bf16.mxu0 0
      %2003 = vmatmul.mubr.bf16.gmra.mrb[0].mxu0 %v1888
      %v2004 = vpop.f32.mrb[0].mxu0
      %v2005 = vadd.f32 0.0, %v2004
      %v2006 = vpop.f32.mrb[0].mxu0
      %v2007 = vpop.f32.mrb[0].mxu0
      %v2008 = vadd.f32 0.0, %v2007
      %v2009 = vpop.f32.mrb[0].mxu0
      %2010 = vmatprep.mubr.bf16.mxu0 0
      %2011 = vmatmul.mubr.bf16.gmra.mrb[0].mxu0 %v1889
      %v2012 = vpop.f32.mrb[0].mxu0
      %v2013 = vadd.f32 0.0, %v2012
      %v2014 = vpop.f32.mrb[0].mxu0
      %v2015 = vpop.f32.mrb[0].mxu0
      %v2016 = vadd.f32 0.0, %v2015
      %v2017 = vpop.f32.mrb[0].mxu0
      %2018 = vdwg.mxu0
      %v2019 = vld [vmem:[%s8] sm:$0x3]
      %v2020 = vpack.c.bf16 %v1992, %v1989
      %v2021 = vpack.c.bf16 %v2000, %v1997
      %v2022 = vpack.c.bf16 %v2008, %v2005
      %v2023 = vpack.c.bf16 %v2016, %v2013
      %v2024 = vld [vmem:[%s9] sm:$0xf]
      %2026 = vset.pattern.permute.xlu0 0
      %2027 = vperm.xlu0 %2026, %v2024
      %v2028 = vpop.permute.xlu0 %2027
      %v2031 = vsel %vm1278, %v2019, 0
      %2033 = vmatprep.subr.bf16.mxu0 0
      %2034 = vmatpush1.bf16.msra.mxu0 %v2020
      %2035 = vmatprep.subr.bf16.mxu0 0
      %2036 = vmatpush1.bf16.msra.mxu0 %v2021
      %2037 = vmatprep.subr.bf16.mxu0 0
      %2038 = vmatpush1.bf16.msra.mxu0 %v2022
      %2039 = vmatprep.subr.bf16.mxu0 0
      %2040 = vmatpush1.bf16.msra.mxu0 %v2023
      %2041 = vmatprep.subr.bf16.mxu0 0
      %2042 = vmatpush1.bf16.msra.mxu0 0
      %2043 = vmatprep.subr.bf16.mxu0 0
      %2044 = vmatpush1.bf16.msra.mxu0 0
      %2045 = vmatprep.subr.bf16.mxu0 0
      %2046 = vmatpush1.bf16.msra.mxu0 0
      %2047 = vmatprep.subr.bf16.mxu0 0
      %2048 = vmatpush1.bf16.msra.mxu0 0
      %2049 = vmatprep.subr.bf16.mxu0 0
      %2050 = vmatpush1.bf16.msra.mxu0 0
      %2051 = vmatprep.subr.bf16.mxu0 0
      %2052 = vmatpush1.bf16.msra.mxu0 0
      %2053 = vmatprep.subr.bf16.mxu0 0
      %2054 = vmatpush1.bf16.msra.mxu0 0
      %2055 = vmatprep.subr.bf16.mxu0 0
      %2056 = vmatpush1.bf16.msra.mxu0 0
      %2057 = vmatprep.subr.bf16.mxu0 0
      %2058 = vmatpush1.bf16.msra.mxu0 0
      %2059 = vmatprep.subr.bf16.mxu0 0
      %2060 = vmatpush1.bf16.msra.mxu0 0
      %2061 = vmatprep.subr.bf16.mxu0 0
      %2062 = vmatpush1.bf16.msra.mxu0 0
      %2063 = vmatprep.subr.bf16.mxu0 0
      %2064 = vmatpush1.bf16.msra.mxu0 0
      %2065 = vmatprep.mubr.bf16.mxu0 0
      %2066 = vmatmul.mubr.bf16.gmra.mrb[0].mxu0 %v2031
      %v2067 = vpop.f32.mrb[0].mxu0
      %v2068 = vadd.f32 %v2028, %v2067
      %v2069 = vpop.f32.mrb[0].mxu0
      %v2070 = vpop.f32.mrb[0].mxu0
      %v2071 = vpop.f32.mrb[0].mxu0
      %2072 = vdwg.mxu0
      %v2073 = vld [vmem:[%s10] sm:$0xff]
      %v2074 = vlaneseq
      %v2075 = vshrl.u32 %v2074, 7
      %v2076 = vsub.s32 0, %v2075
      %v2077 = vrot.slane %v2068, %v2076
      %v2078 = vmul.f32 %v2073, %v2077
      %s2079 = scalar_lea.vmem %s10, 8
      %v2080 = vld [vmem:[%s2079] sm:$0xff]
      %v2081 = vlaneseq
      %v2082 = vshrl.u32 %v2081, 7
      %v2083 = vsub.s32 1, %v2082
      %v2084 = vrot.slane %v2068, %v2083
      %v2085 = vmul.f32 %v2080, %v2084
      %v2086 = vadd.f32 %v2078, %v2085
      %s2087 = scalar_lea.vmem %s10, 16
      %v2088 = vld [vmem:[%s2087] sm:$0xff]
      %v2089 = vlaneseq
      %v2090 = vshrl.u32 %v2089, 7
      %v2091 = vsub.s32 2, %v2090
      %v2092 = vrot.slane %v2068, %v2091
      %v2093 = vmul.f32 %v2088, %v2092
      %v2094 = vadd.f32 %v2086, %v2093
      %s2095 = scalar_lea.vmem %s10, 24
      %v2096 = vld [vmem:[%s2095] sm:$0xff]
      %v2097 = vlaneseq
      %v2098 = vshrl.u32 %v2097, 7
      %v2099 = vsub.s32 3, %v2098
      %v2100 = vrot.slane %v2068, %v2099
      %v2101 = vmul.f32 %v2096, %v2100
      %v2102 = vadd.f32 %v2094, %v2101
      %v2103 = vsel %vm1278, %v2102, 0.0
      %2104 = vadd.xlane.f32.xlu0 %v2103
      %v2105 = vpop.xlane.xlu0 %2104
      %v2106 = vld [vmem:[%s11] sm:$0xff]
      %v2107 = vadd.f32 %v2105, %v2106
      %vm2108 = vcmask 3072
      %2109 = vst.msk [vmem:[%s825] sm:$0xf] %vm2108, %v2107
      %vm2110 = vcmask 7172
      %2111 = vst.msk [vmem:[%s829 - $0x4] sm:$0xf0] %vm2110, %v2107
      %v2112 = vld [vmem:[%s816] sm:$0xf]
      %v2114 = vrot.slane %v2112, 4
      %v2116 = vmul.f32 %v2107, %v2114
      %v2118 = vrot.slane %v2116, 4
      %v2120 = vadd.f32 %v2107, %v2118
      %v2121 = vld [vmem:[%s12] sm:$0xf]
      %v2122 = vld [vmem:[%s12 + $0x4] sm:$0xf]
      %v2123 = vld [vmem:[%s12 + $0x8] sm:$0xf]
      %v2124 = vld [vmem:[%s12 + $0xc] sm:$0xf]
      %v2125 = vld [vmem:[%s12 + $0x10] sm:$0xf]
      %v2126 = vld [vmem:[%s12 + $0x14] sm:$0xf]
      %v2127 = vld [vmem:[%s12 + $0x18] sm:$0xf]
      %v2128 = vld [vmem:[%s12 + $0x1c] sm:$0xf]
      %v2129 = vpack.c.bf16 %v2120, %v2120
      %v2130 = vld [vmem:[%s13] sm:$0xff]
      %v2131 = vld [vmem:[%s13 + $0x8] sm:$0xff]
      %v2132 = vld [vmem:[%s13 + $0x10] sm:$0xff]
      %v2133 = vld [vmem:[%s13 + $0x18] sm:$0xff]
      %v2134 = vld [vmem:[%s13 + $0x20] sm:$0xff]
      %v2135 = vld [vmem:[%s13 + $0x28] sm:$0xff]
      %v2136 = vld [vmem:[%s13 + $0x30] sm:$0xff]
      %v2137 = vld [vmem:[%s13 + $0x38] sm:$0xff]
      %v2146 = vunpack.c.l.b16 %v2121
      %v2147 = vunpack.c.l.b16 %v2122
      %v2148 = vunpack.c.l.b16 %v2123
      %v2149 = vunpack.c.l.b16 %v2124
      %v2150 = vunpack.c.l.b16 %v2125
      %v2151 = vunpack.c.l.b16 %v2126
      %v2152 = vunpack.c.l.b16 %v2127
      %v2153 = vunpack.c.l.b16 %v2128
      %v2154 = vpack.c.b16 %v2147, %v2146
      %v2155 = vpack.c.b16 %v2149, %v2148
      %v2156 = vpack.c.b16 %v2151, %v2150
      %v2157 = vpack.c.b16 %v2153, %v2152
      %vm2158 = vcmask 31744
      %v2160 = vsel %vm2158, %v2154, 0
      %v2163 = vsel %vm2158, %v2155, 0
      %v2166 = vsel %vm2158, %v2156, 0
      %v2169 = vsel %vm2158, %v2157, 0
      %v2172 = vsel %vm896, %v2129, 0
      %2174 = vmatprep.subr.bf16.mxu0 0
      %2175 = vmatpush1.bf16.msra.mxu0 %v2172
      %2176 = vmatprep.subr.bf16.mxu0 0
      %2177 = vmatpush1.bf16.msra.mxu0 0
      %2178 = vmatprep.subr.bf16.mxu0 0
      %2179 = vmatpush1.bf16.msra.mxu0 0
      %2180 = vmatprep.subr.bf16.mxu0 0
      %2181 = vmatpush1.bf16.msra.mxu0 0
      %2182 = vmatprep.subr.bf16.mxu0 0
      %2183 = vmatpush1.bf16.msra.mxu0 0
      %2184 = vmatprep.subr.bf16.mxu0 0
      %2185 = vmatpush1.bf16.msra.mxu0 0
      %2186 = vmatprep.subr.bf16.mxu0 0
      %2187 = vmatpush1.bf16.msra.mxu0 0
      %2188 = vmatprep.subr.bf16.mxu0 0
      %2189 = vmatpush1.bf16.msra.mxu0 0
      %2190 = vmatprep.subr.bf16.mxu0 0
      %2191 = vmatpush1.bf16.msra.mxu0 0
      %2192 = vmatprep.subr.bf16.mxu0 0
      %2193 = vmatpush1.bf16.msra.mxu0 0
      %2194 = vmatprep.subr.bf16.mxu0 0
      %2195 = vmatpush1.bf16.msra.mxu0 0
      %2196 = vmatprep.subr.bf16.mxu0 0
      %2197 = vmatpush1.bf16.msra.mxu0 0
      %2198 = vmatprep.subr.bf16.mxu0 0
      %2199 = vmatpush1.bf16.msra.mxu0 0
      %2200 = vmatprep.subr.bf16.mxu0 0
      %2201 = vmatpush1.bf16.msra.mxu0 0
      %2202 = vmatprep.subr.bf16.mxu0 0
      %2203 = vmatpush1.bf16.msra.mxu0 0
      %2204 = vmatprep.subr.bf16.mxu0 0
      %2205 = vmatpush1.bf16.msra.mxu0 0
      %2206 = vmatprep.mubr.bf16.mxu0 0
      %2207 = vmatmul.mubr.bf16.gmra.mrb[0].mxu0 %v2160
      %v2208 = vpop.f32.mrb[0].mxu0
      %v2209 = vadd.f32 %v2130, %v2208
      %v2210 = vpop.f32.mrb[0].mxu0
      %v2211 = vpop.f32.mrb[0].mxu0
      %v2212 = vadd.f32 %v2131, %v2211
      %v2213 = vpop.f32.mrb[0].mxu0
      %2214 = vmatprep.mubr.bf16.mxu0 0
      %2215 = vmatmul.mubr.bf16.gmra.mrb[0].mxu0 %v2163
      %v2216 = vpop.f32.mrb[0].mxu0
      %v2217 = vadd.f32 %v2132, %v2216
      %v2218 = vpop.f32.mrb[0].mxu0
      %v2219 = vpop.f32.mrb[0].mxu0
      %v2220 = vadd.f32 %v2133, %v2219
      %v2221 = vpop.f32.mrb[0].mxu0
      %2222 = vmatprep.mubr.bf16.mxu0 0
      %2223 = vmatmul.mubr.bf16.gmra.mrb[0].mxu0 %v2166
      %v2224 = vpop.f32.mrb[0].mxu0
      %v2225 = vadd.f32 %v2134, %v2224
      %v2226 = vpop.f32.mrb[0].mxu0
      %v2227 = vpop.f32.mrb[0].mxu0
      %v2228 = vadd.f32 %v2135, %v2227
      %v2229 = vpop.f32.mrb[0].mxu0
      %2230 = vmatprep.mubr.bf16.mxu0 0
      %2231 = vmatmul.mubr.bf16.gmra.mrb[0].mxu0 %v2169
      %v2232 = vpop.f32.mrb[0].mxu0
      %v2233 = vadd.f32 %v2136, %v2232
      %v2234 = vpop.f32.mrb[0].mxu0
      %v2235 = vpop.f32.mrb[0].mxu0
      %v2236 = vadd.f32 %v2137, %v2235
      %v2237 = vpop.f32.mrb[0].mxu0
      %2238 = vdwg.mxu0
      %v2239 = vmax.f32 %v2209, 0.0
      %v2240 = vmax.f32 %v2212, 0.0
      %v2241 = vmax.f32 %v2217, 0.0
      %v2242 = vmax.f32 %v2220, 0.0
      %v2243 = vmax.f32 %v2225, 0.0
      %v2244 = vmax.f32 %v2228, 0.0
      %v2245 = vmax.f32 %v2233, 0.0
      %v2246 = vmax.f32 %v2236, 0.0
      %2248 = vset.pattern.permute.xlu0 0
      %2249 = vperm.xlu0 %2248, %v2239
      %v2250 = vpop.permute.xlu0 %2249
      %2253 = vset.pattern.permute.xlu0 0
      %2254 = vperm.xlu0 %2253, %v2240
      %v2255 = vpop.permute.xlu0 %2254
      %2258 = vset.pattern.permute.xlu0 0
      %2259 = vperm.xlu0 %2258, %v2241
      %v2260 = vpop.permute.xlu0 %2259
      %2263 = vset.pattern.permute.xlu0 0
      %2264 = vperm.xlu0 %2263, %v2242
      %v2265 = vpop.permute.xlu0 %2264
      %2268 = vset.pattern.permute.xlu0 0
      %2269 = vperm.xlu0 %2268, %v2243
      %v2270 = vpop.permute.xlu0 %2269
      %2273 = vset.pattern.permute.xlu0 0
      %2274 = vperm.xlu0 %2273, %v2244
      %v2275 = vpop.permute.xlu0 %2274
      %2278 = vset.pattern.permute.xlu0 0
      %2279 = vperm.xlu0 %2278, %v2245
      %v2280 = vpop.permute.xlu0 %2279
      %2283 = vset.pattern.permute.xlu0 0
      %2284 = vperm.xlu0 %2283, %v2246
      %v2285 = vpop.permute.xlu0 %2284
      %v2287 = vpack.c.bf16 %v2255, %v2250
      %v2288 = vpack.c.bf16 %v2265, %v2260
      %v2289 = vpack.c.bf16 %v2275, %v2270
      %v2290 = vpack.c.bf16 %v2285, %v2280
      %v2292 = vsel %vm857, 0, %v2287
      %v2295 = vsel %vm857, 0, %v2288
      %v2298 = vsel %vm857, 0, %v2289
      %v2301 = vsel %vm857, 0, %v2290
      %vm2303 = vcmask 23552
      %v2304 = vsel %vm2303, %v2287, 0
      %v2306 = vsel %vm2303, %v2288, 0
      %v2308 = vsel %vm2303, %v2289, 0
      %v2310 = vsel %vm2303, %v2290, 0
      %v2312 = vld [vmem:[%s14] sm:$0xff]
      %v2313 = vld [vmem:[%s14 + $0x8] sm:$0xff]
      %v2314 = vld [vmem:[%s14 + $0x10] sm:$0xff]
      %v2315 = vld [vmem:[%s14 + $0x18] sm:$0xff]
      %v2316 = vld [vmem:[%s14 + $0x20] sm:$0xff]
      %v2317 = vld [vmem:[%s14 + $0x28] sm:$0xff]
      %v2318 = vld [vmem:[%s14 + $0x30] sm:$0xff]
      %v2319 = vld [vmem:[%s14 + $0x38] sm:$0xff]
      %v2320 = vld [vmem:[%s15] sm:$0xff]
      %v2321 = vld [vmem:[%s15 + $0x8] sm:$0xff]
      %v2322 = vld [vmem:[%s15 + $0x10] sm:$0xff]
      %v2323 = vld [vmem:[%s15 + $0x18] sm:$0xff]
      %v2324 = vld [vmem:[%s15 + $0x20] sm:$0xff]
      %v2325 = vld [vmem:[%s15 + $0x28] sm:$0xff]
      %v2326 = vld [vmem:[%s15 + $0x30] sm:$0xff]
      %v2327 = vld [vmem:[%s15 + $0x38] sm:$0xff]
      %2329 = vset.pattern.permute.xlu0 0
      %2330 = vperm.xlu0 %2329, %v2320
      %v2331 = vpop.permute.xlu0 %2330
      %2334 = vset.pattern.permute.xlu0 0
      %2335 = vperm.xlu0 %2334, %v2321
      %v2336 = vpop.permute.xlu0 %2335
      %2339 = vset.pattern.permute.xlu0 0
      %2340 = vperm.xlu0 %2339, %v2322
      %v2341 = vpop.permute.xlu0 %2340
      %2344 = vset.pattern.permute.xlu0 0
      %2345 = vperm.xlu0 %2344, %v2323
      %v2346 = vpop.permute.xlu0 %2345
      %2349 = vset.pattern.permute.xlu0 0
      %2350 = vperm.xlu0 %2349, %v2324
      %v2351 = vpop.permute.xlu0 %2350
      %2354 = vset.pattern.permute.xlu0 0
      %2355 = vperm.xlu0 %2354, %v2325
      %v2356 = vpop.permute.xlu0 %2355
      %2359 = vset.pattern.permute.xlu0 0
      %2360 = vperm.xlu0 %2359, %v2326
      %v2361 = vpop.permute.xlu0 %2360
      %2364 = vset.pattern.permute.xlu0 0
      %2365 = vperm.xlu0 %2364, %v2327
      %v2366 = vpop.permute.xlu0 %2365
      %v2376 = vunpack.c.l.b16 %v2312
      %v2377 = vunpack.c.h.b16 %v2312
      %v2378 = vunpack.c.l.b16 %v2313
      %v2379 = vunpack.c.h.b16 %v2313
      %v2380 = vunpack.c.l.b16 %v2314
      %v2381 = vunpack.c.h.b16 %v2314
      %v2382 = vunpack.c.l.b16 %v2315
      %v2383 = vunpack.c.h.b16 %v2315
      %v2384 = vunpack.c.l.b16 %v2316
      %v2385 = vunpack.c.h.b16 %v2316
      %v2386 = vunpack.c.l.b16 %v2317
      %v2387 = vunpack.c.h.b16 %v2317
      %v2388 = vunpack.c.l.b16 %v2318
      %v2389 = vunpack.c.h.b16 %v2318
      %v2390 = vunpack.c.l.b16 %v2319
      %v2391 = vunpack.c.h.b16 %v2319
      %v2392 = vpack.c.b16 %v2378, %v2376
      %v2393 = vpack.c.b16 %v2379, %v2377
      %v2394 = vpack.c.b16 %v2382, %v2380
      %v2395 = vpack.c.b16 %v2383, %v2381
      %v2396 = vpack.c.b16 %v2386, %v2384
      %v2397 = vpack.c.b16 %v2387, %v2385
      %v2398 = vpack.c.b16 %v2390, %v2388
      %v2399 = vpack.c.b16 %v2391, %v2389
      %v2405 = vsel %vm1278, %v2393, 0
      %v2408 = vsel %vm1278, %v2395, 0
      %v2411 = vsel %vm1278, %v2397, 0
      %v2414 = vsel %vm1278, %v2399, 0
      %2416 = vmatprep.subr.bf16.mxu0 0
      %2417 = vmatpush1.bf16.msra.mxu0 %v2292
      %2418 = vmatprep.subr.bf16.mxu0 0
      %2419 = vmatpush1.bf16.msra.mxu0 %v2295
      %2420 = vmatprep.subr.bf16.mxu0 0
      %2421 = vmatpush1.bf16.msra.mxu0 %v2298
      %2422 = vmatprep.subr.bf16.mxu0 0
      %2423 = vmatpush1.bf16.msra.mxu0 %v2301
      %2424 = vmatprep.subr.bf16.mxu0 0
      %2425 = vmatpush1.bf16.msra.mxu0 %v2287
      %2426 = vmatprep.subr.bf16.mxu0 0
      %2427 = vmatpush1.bf16.msra.mxu0 %v2288
      %2428 = vmatprep.subr.bf16.mxu0 0
      %2429 = vmatpush1.bf16.msra.mxu0 %v2289
      %2430 = vmatprep.subr.bf16.mxu0 0
      %2431 = vmatpush1.bf16.msra.mxu0 %v2290
      %2432 = vmatprep.subr.bf16.mxu0 0
      %2433 = vmatpush1.bf16.msra.mxu0 %v2304
      %2434 = vmatprep.subr.bf16.mxu0 0
      %2435 = vmatpush1.bf16.msra.mxu0 %v2306
      %2436 = vmatprep.subr.bf16.mxu0 0
      %2437 = vmatpush1.bf16.msra.mxu0 %v2308
      %2438 = vmatprep.subr.bf16.mxu0 0
      %2439 = vmatpush1.bf16.msra.mxu0 %v2310
      %2440 = vmatprep.subr.bf16.mxu0 0
      %2441 = vmatpush1.bf16.msra.mxu0 0
      %2442 = vmatprep.subr.bf16.mxu0 0
      %2443 = vmatpush1.bf16.msra.mxu0 0
      %2444 = vmatprep.subr.bf16.mxu0 0
      %2445 = vmatpush1.bf16.msra.mxu0 0
      %2446 = vmatprep.subr.bf16.mxu0 0
      %2447 = vmatpush1.bf16.msra.mxu0 0
      %2448 = vmatprep.mubr.bf16.mxu0 %v2405
      %2449 = vmatmul.mubr.bf16.gmra.mrb[0].mxu0 %v2392
      %v2450 = vpop.f32.mrb[0].mxu0
      %v2451 = vadd.f32 %v2331, %v2450
      %v2452 = vpop.f32.mrb[0].mxu0
      %v2453 = vpop.f32.mrb[0].mxu0
      %v2454 = vadd.f32 %v2336, %v2453
      %v2455 = vpop.f32.mrb[0].mxu0
      %2456 = vmatprep.mubr.bf16.mxu0 %v2408
      %2457 = vmatmul.mubr.bf16.gmra.mrb[0].mxu0 %v2394
      %v2458 = vpop.f32.mrb[0].mxu0
      %v2459 = vadd.f32 %v2341, %v2458
      %v2460 = vpop.f32.mrb[0].mxu0
      %v2461 = vpop.f32.mrb[0].mxu0
      %v2462 = vadd.f32 %v2346, %v2461
      %v2463 = vpop.f32.mrb[0].mxu0
      %2464 = vmatprep.mubr.bf16.mxu0 %v2411
      %2465 = vmatmul.mubr.bf16.gmra.mrb[0].mxu0 %v2396
      %v2466 = vpop.f32.mrb[0].mxu0
      %v2467 = vadd.f32 %v2351, %v2466
      %v2468 = vpop.f32.mrb[0].mxu0
      %v2469 = vpop.f32.mrb[0].mxu0
      %v2470 = vadd.f32 %v2356, %v2469
      %v2471 = vpop.f32.mrb[0].mxu0
      %2472 = vmatprep.mubr.bf16.mxu0 %v2414
      %2473 = vmatmul.mubr.bf16.gmra.mrb[0].mxu0 %v2398
      %v2474 = vpop.f32.mrb[0].mxu0
      %v2475 = vadd.f32 %v2361, %v2474
      %v2476 = vpop.f32.mrb[0].mxu0
      %v2477 = vpop.f32.mrb[0].mxu0
      %v2478 = vadd.f32 %v2366, %v2477
      %v2479 = vpop.f32.mrb[0].mxu0
      %2480 = vdwg.mxu0
      %v2481 = vmax.f32 %v2451, 0.0
      %v2482 = vmax.f32 %v2454, 0.0
      %v2483 = vmax.f32 %v2459, 0.0
      %v2484 = vmax.f32 %v2462, 0.0
      %v2485 = vmax.f32 %v2467, 0.0
      %v2486 = vmax.f32 %v2470, 0.0
      %v2487 = vmax.f32 %v2475, 0.0
      %v2488 = vmax.f32 %v2478, 0.0
      %v2489 = vpack.c.bf16 %v2482, %v2481
      %v2490 = vpack.c.bf16 %v2484, %v2483
      %v2491 = vpack.c.bf16 %v2486, %v2485
      %v2492 = vpack.c.bf16 %v2488, %v2487
      %v2493 = vld [vmem:[%s22] sm:$0x3]
      %v2495 = vsel %vm2158, %v2489, 0
      %v2498 = vsel %vm2158, %v2490, 0
      %v2501 = vsel %vm2158, %v2491, 0
      %v2504 = vsel %vm2158, %v2492, 0
      %v2507 = vsel %vm896, %v2493, 0
      %2509 = vmatprep.subr.bf16.mxu0 0
      %2510 = vmatpush1.bf16.msra.mxu0 %v2507
      %2511 = vmatprep.subr.bf16.mxu0 0
      %2512 = vmatpush1.bf16.msra.mxu0 0
      %2513 = vmatprep.subr.bf16.mxu0 0
      %2514 = vmatpush1.bf16.msra.mxu0 0
      %2515 = vmatprep.subr.bf16.mxu0 0
      %2516 = vmatpush1.bf16.msra.mxu0 0
      %2517 = vmatprep.subr.bf16.mxu0 0
      %2518 = vmatpush1.bf16.msra.mxu0 0
      %2519 = vmatprep.subr.bf16.mxu0 0
      %2520 = vmatpush1.bf16.msra.mxu0 0
      %2521 = vmatprep.subr.bf16.mxu0 0
      %2522 = vmatpush1.bf16.msra.mxu0 0
      %2523 = vmatprep.subr.bf16.mxu0 0
      %2524 = vmatpush1.bf16.msra.mxu0 0
      %2525 = vmatprep.subr.bf16.mxu0 0
      %2526 = vmatpush1.bf16.msra.mxu0 0
      %2527 = vmatprep.subr.bf16.mxu0 0
      %2528 = vmatpush1.bf16.msra.mxu0 0
      %2529 = vmatprep.subr.bf16.mxu0 0
      %2530 = vmatpush1.bf16.msra.mxu0 0
      %2531 = vmatprep.subr.bf16.mxu0 0
      %2532 = vmatpush1.bf16.msra.mxu0 0
      %2533 = vmatprep.subr.bf16.mxu0 0
      %2534 = vmatpush1.bf16.msra.mxu0 0
      %2535 = vmatprep.subr.bf16.mxu0 0
      %2536 = vmatpush1.bf16.msra.mxu0 0
      %2537 = vmatprep.subr.bf16.mxu0 0
      %2538 = vmatpush1.bf16.msra.mxu0 0
      %2539 = vmatprep.subr.bf16.mxu0 0
      %2540 = vmatpush1.bf16.msra.mxu0 0
      %2541 = vmatprep.mubr.bf16.mxu0 0
      %2542 = vmatmul.mubr.bf16.gmra.mrb[0].mxu0 %v2495
      %v2543 = vpop.f32.mrb[0].mxu0
      %v2544 = vadd.f32 0.0, %v2543
      %v2545 = vpop.f32.mrb[0].mxu0
      %v2546 = vpop.f32.mrb[0].mxu0
      %v2547 = vadd.f32 0.0, %v2546
      %v2548 = vpop.f32.mrb[0].mxu0
      %2549 = vmatprep.mubr.bf16.mxu0 0
      %2550 = vmatmul.mubr.bf16.gmra.mrb[0].mxu0 %v2498
      %v2551 = vpop.f32.mrb[0].mxu0
      %v2552 = vadd.f32 0.0, %v2551
      %v2553 = vpop.f32.mrb[0].mxu0
      %v2554 = vpop.f32.mrb[0].mxu0
      %v2555 = vadd.f32 0.0, %v2554
      %v2556 = vpop.f32.mrb[0].mxu0
      %2557 = vmatprep.mubr.bf16.mxu0 0
      %2558 = vmatmul.mubr.bf16.gmra.mrb[0].mxu0 %v2501
      %v2559 = vpop.f32.mrb[0].mxu0
      %v2560 = vadd.f32 0.0, %v2559
      %v2561 = vpop.f32.mrb[0].mxu0
      %v2562 = vpop.f32.mrb[0].mxu0
      %v2563 = vadd.f32 0.0, %v2562
      %v2564 = vpop.f32.mrb[0].mxu0
      %2565 = vmatprep.mubr.bf16.mxu0 0
      %2566 = vmatmul.mubr.bf16.gmra.mrb[0].mxu0 %v2504
      %v2567 = vpop.f32.mrb[0].mxu0
      %v2568 = vadd.f32 0.0, %v2567
      %v2569 = vpop.f32.mrb[0].mxu0
      %v2570 = vpop.f32.mrb[0].mxu0
      %v2571 = vadd.f32 0.0, %v2570
      %v2572 = vpop.f32.mrb[0].mxu0
      %2573 = vdwg.mxu0
      %v2574 = vpack.c.bf16 %v2547, %v2544
      %v2575 = vpack.c.bf16 %v2555, %v2552
      %v2576 = vpack.c.bf16 %v2563, %v2560
      %v2577 = vpack.c.bf16 %v2571, %v2568
      %2582 = vrot.lane.b32.xlu0 %v2574, 1
      %v2583 = vpop.permute.xlu0 %2582
      %2584 = vrot.lane.b32.xlu0 %v2575, 1
      %v2585 = vpop.permute.xlu0 %2584
      %2586 = vrot.lane.b32.xlu0 %v2576, 1
      %v2587 = vpop.permute.xlu0 %2586
      %2588 = vrot.lane.b32.xlu0 %v2577, 1
      %v2589 = vpop.permute.xlu0 %2588
      %v2591 = vsel %vm857, 0, %v2583
      %v2594 = vsel %vm857, 0, %v2585
      %v2597 = vsel %vm857, 0, %v2587
      %v2600 = vsel %vm857, 0, %v2589
      %2602 = vrot.lane.b32.xlu0 %v2574, 127
      %v2603 = vpop.permute.xlu0 %2602
      %2604 = vrot.lane.b32.xlu0 %v2575, 127
      %v2605 = vpop.permute.xlu0 %2604
      %2606 = vrot.lane.b32.xlu0 %v2576, 127
      %v2607 = vpop.permute.xlu0 %2606
      %2608 = vrot.lane.b32.xlu0 %v2577, 127
      %v2609 = vpop.permute.xlu0 %2608
      %vm2610 = vcmask 252928
      %v2612 = vsel %vm2610, %v2603, 0
      %v2615 = vsel %vm2610, %v2605, 0
      %v2618 = vsel %vm2610, %v2607, 0
      %v2621 = vsel %vm2610, %v2609, 0
      %v2623 = vld [vmem:[%s16] sm:$0xff]
      %v2624 = vld [vmem:[%s16 + $0x8] sm:$0xff]
      %v2625 = vld [vmem:[%s16 + $0x10] sm:$0xff]
      %v2626 = vld [vmem:[%s16 + $0x18] sm:$0xff]
      %v2627 = vld [vmem:[%s16 + $0x20] sm:$0xff]
      %v2628 = vld [vmem:[%s16 + $0x28] sm:$0xff]
      %v2629 = vld [vmem:[%s16 + $0x30] sm:$0xff]
      %v2630 = vld [vmem:[%s16 + $0x38] sm:$0xff]
      %v2631 = vld [vmem:[%s17] sm:$0xff]
      %v2632 = vld [vmem:[%s17 + $0x8] sm:$0xff]
      %v2633 = vld [vmem:[%s17 + $0x10] sm:$0xff]
      %v2634 = vld [vmem:[%s17 + $0x18] sm:$0xff]
      %v2635 = vld [vmem:[%s17 + $0x20] sm:$0xff]
      %v2636 = vld [vmem:[%s17 + $0x28] sm:$0xff]
      %v2637 = vld [vmem:[%s17 + $0x30] sm:$0xff]
      %v2638 = vld [vmem:[%s17 + $0x38] sm:$0xff]
      %2640 = vset.pattern.permute.xlu0 0
      %2641 = vperm.xlu0 %2640, %v2631
      %v2642 = vpop.permute.xlu0 %2641
      %2645 = vset.pattern.permute.xlu0 0
      %2646 = vperm.xlu0 %2645, %v2632
      %v2647 = vpop.permute.xlu0 %2646
      %2650 = vset.pattern.permute.xlu0 0
      %2651 = vperm.xlu0 %2650, %v2633
      %v2652 = vpop.permute.xlu0 %2651
      %2655 = vset.pattern.permute.xlu0 0
      %2656 = vperm.xlu0 %2655, %v2634
      %v2657 = vpop.permute.xlu0 %2656
      %2660 = vset.pattern.permute.xlu0 0
      %2661 = vperm.xlu0 %2660, %v2635
      %v2662 = vpop.permute.xlu0 %2661
      %2665 = vset.pattern.permute.xlu0 0
      %2666 = vperm.xlu0 %2665, %v2636
      %v2667 = vpop.permute.xlu0 %2666
      %2670 = vset.pattern.permute.xlu0 0
      %2671 = vperm.xlu0 %2670, %v2637
      %v2672 = vpop.permute.xlu0 %2671
      %2675 = vset.pattern.permute.xlu0 0
      %2676 = vperm.xlu0 %2675, %v2638
      %v2677 = vpop.permute.xlu0 %2676
      %v2687 = vunpack.c.l.b16 %v2623
      %v2688 = vunpack.c.h.b16 %v2623
      %v2689 = vunpack.c.l.b16 %v2624
      %v2690 = vunpack.c.h.b16 %v2624
      %v2691 = vunpack.c.l.b16 %v2625
      %v2692 = vunpack.c.h.b16 %v2625
      %v2693 = vunpack.c.l.b16 %v2626
      %v2694 = vunpack.c.h.b16 %v2626
      %v2695 = vunpack.c.l.b16 %v2627
      %v2696 = vunpack.c.h.b16 %v2627
      %v2697 = vunpack.c.l.b16 %v2628
      %v2698 = vunpack.c.h.b16 %v2628
      %v2699 = vunpack.c.l.b16 %v2629
      %v2700 = vunpack.c.h.b16 %v2629
      %v2701 = vunpack.c.l.b16 %v2630
      %v2702 = vunpack.c.h.b16 %v2630
      %v2703 = vpack.c.b16 %v2689, %v2687
      %v2704 = vpack.c.b16 %v2690, %v2688
      %v2705 = vpack.c.b16 %v2693, %v2691
      %v2706 = vpack.c.b16 %v2694, %v2692
      %v2707 = vpack.c.b16 %v2697, %v2695
      %v2708 = vpack.c.b16 %v2698, %v2696
      %v2709 = vpack.c.b16 %v2701, %v2699
      %v2710 = vpack.c.b16 %v2702, %v2700
      %v2716 = vsel %vm1278, %v2704, 0
      %v2719 = vsel %vm1278, %v2706, 0
      %v2722 = vsel %vm1278, %v2708, 0
      %v2725 = vsel %vm1278, %v2710, 0
      %2727 = vmatprep.subr.bf16.mxu0 0
      %2728 = vmatpush1.bf16.msra.mxu0 %v2591
      %2729 = vmatprep.subr.bf16.mxu0 0
      %2730 = vmatpush1.bf16.msra.mxu0 %v2594
      %2731 = vmatprep.subr.bf16.mxu0 0
      %2732 = vmatpush1.bf16.msra.mxu0 %v2597
      %2733 = vmatprep.subr.bf16.mxu0 0
      %2734 = vmatpush1.bf16.msra.mxu0 %v2600
      %2735 = vmatprep.subr.bf16.mxu0 0
      %2736 = vmatpush1.bf16.msra.mxu0 %v2574
      %2737 = vmatprep.subr.bf16.mxu0 0
      %2738 = vmatpush1.bf16.msra.mxu0 %v2575
      %2739 = vmatprep.subr.bf16.mxu0 0
      %2740 = vmatpush1.bf16.msra.mxu0 %v2576
      %2741 = vmatprep.subr.bf16.mxu0 0
      %2742 = vmatpush1.bf16.msra.mxu0 %v2577
      %2743 = vmatprep.subr.bf16.mxu0 0
      %2744 = vmatpush1.bf16.msra.mxu0 %v2612
      %2745 = vmatprep.subr.bf16.mxu0 0
      %2746 = vmatpush1.bf16.msra.mxu0 %v2615
      %2747 = vmatprep.subr.bf16.mxu0 0
      %2748 = vmatpush1.bf16.msra.mxu0 %v2618
      %2749 = vmatprep.subr.bf16.mxu0 0
      %2750 = vmatpush1.bf16.msra.mxu0 %v2621
      %2751 = vmatprep.subr.bf16.mxu0 0
      %2752 = vmatpush1.bf16.msra.mxu0 0
      %2753 = vmatprep.subr.bf16.mxu0 0
      %2754 = vmatpush1.bf16.msra.mxu0 0
      %2755 = vmatprep.subr.bf16.mxu0 0
      %2756 = vmatpush1.bf16.msra.mxu0 0
      %2757 = vmatprep.subr.bf16.mxu0 0
      %2758 = vmatpush1.bf16.msra.mxu0 0
      %2759 = vmatprep.mubr.bf16.mxu0 %v2716
      %2760 = vmatmul.mubr.bf16.gmra.mrb[0].mxu0 %v2703
      %v2761 = vpop.f32.mrb[0].mxu0
      %v2762 = vadd.f32 %v2642, %v2761
      %v2763 = vpop.f32.mrb[0].mxu0
      %v2764 = vpop.f32.mrb[0].mxu0
      %v2765 = vadd.f32 %v2647, %v2764
      %v2766 = vpop.f32.mrb[0].mxu0
      %2767 = vmatprep.mubr.bf16.mxu0 %v2719
      %2768 = vmatmul.mubr.bf16.gmra.mrb[0].mxu0 %v2705
      %v2769 = vpop.f32.mrb[0].mxu0
      %v2770 = vadd.f32 %v2652, %v2769
      %v2771 = vpop.f32.mrb[0].mxu0
      %v2772 = vpop.f32.mrb[0].mxu0
      %v2773 = vadd.f32 %v2657, %v2772
      %v2774 = vpop.f32.mrb[0].mxu0
      %2775 = vmatprep.mubr.bf16.mxu0 %v2722
      %2776 = vmatmul.mubr.bf16.gmra.mrb[0].mxu0 %v2707
      %v2777 = vpop.f32.mrb[0].mxu0
      %v2778 = vadd.f32 %v2662, %v2777
      %v2779 = vpop.f32.mrb[0].mxu0
      %v2780 = vpop.f32.mrb[0].mxu0
      %v2781 = vadd.f32 %v2667, %v2780
      %v2782 = vpop.f32.mrb[0].mxu0
      %2783 = vmatprep.mubr.bf16.mxu0 %v2725
      %2784 = vmatmul.mubr.bf16.gmra.mrb[0].mxu0 %v2709
      %v2785 = vpop.f32.mrb[0].mxu0
      %v2786 = vadd.f32 %v2672, %v2785
      %v2787 = vpop.f32.mrb[0].mxu0
      %v2788 = vpop.f32.mrb[0].mxu0
      %v2789 = vadd.f32 %v2677, %v2788
      %v2790 = vpop.f32.mrb[0].mxu0
      %2791 = vdwg.mxu0
      %v2792 = vmax.f32 %v2762, 0.0
      %v2793 = vmax.f32 %v2765, 0.0
      %v2794 = vmax.f32 %v2770, 0.0
      %v2795 = vmax.f32 %v2773, 0.0
      %v2796 = vmax.f32 %v2778, 0.0
      %v2797 = vmax.f32 %v2781, 0.0
      %v2798 = vmax.f32 %v2786, 0.0
      %v2799 = vmax.f32 %v2789, 0.0
      %v2800 = vpack.c.bf16 %v2793, %v2792
      %v2801 = vpack.c.bf16 %v2795, %v2794
      %v2802 = vpack.c.bf16 %v2797, %v2796
      %v2803 = vpack.c.bf16 %v2799, %v2798
      %v2804 = vld [vmem:[%s23] sm:$0xff]
      %v2805 = vld [vmem:[%s23 + $0x8] sm:$0xff]
      %v2806 = vld [vmem:[%s23 + $0x10] sm:$0xff]
      %v2807 = vld [vmem:[%s23 + $0x18] sm:$0xff]
      %v2812 = vunpack.c.l.b16 %v2804
      %v2813 = vunpack.c.h.b16 %v2804
      %v2814 = vunpack.c.l.b16 %v2805
      %v2815 = vunpack.c.h.b16 %v2805
      %v2816 = vunpack.c.l.b16 %v2806
      %v2817 = vunpack.c.h.b16 %v2806
      %v2818 = vunpack.c.l.b16 %v2807
      %v2819 = vunpack.c.h.b16 %v2807
      %v2820 = vpack.c.b16 %v2814, %v2812
      %v2821 = vpack.c.b16 %v2815, %v2813
      %v2822 = vpack.c.b16 %v2818, %v2816
      %v2823 = vpack.c.b16 %v2819, %v2817
      %vm2828 = vcmask 261120
      %v2830 = vsel %vm2828, %v2800, 0
      %v2833 = vsel %vm2828, %v2801, 0
      %v2836 = vsel %vm2828, %v2802, 0
      %v2839 = vsel %vm2828, %v2803, 0
      %2841 = vmatprep.subr.bf16.mxu0 %v2821
      %2842 = vmatpush1.bf16.msra.mxu0 %v2820
      %2843 = vmatprep.subr.bf16.mxu0 %v2823
      %2844 = vmatpush1.bf16.msra.mxu0 %v2822
      %2845 = vmatprep.subr.bf16.mxu0 0
      %2846 = vmatpush1.bf16.msra.mxu0 0
      %2847 = vmatprep.subr.bf16.mxu0 0
      %2848 = vmatpush1.bf16.msra.mxu0 0
      %2849 = vmatprep.subr.bf16.mxu0 0
      %2850 = vmatpush1.bf16.msra.mxu0 0
      %2851 = vmatprep.subr.bf16.mxu0 0
      %2852 = vmatpush1.bf16.msra.mxu0 0
      %2853 = vmatprep.subr.bf16.mxu0 0
      %2854 = vmatpush1.bf16.msra.mxu0 0
      %2855 = vmatprep.subr.bf16.mxu0 0
      %2856 = vmatpush1.bf16.msra.mxu0 0
      %2857 = vmatprep.subr.bf16.mxu0 0
      %2858 = vmatpush1.bf16.msra.mxu0 0
      %2859 = vmatprep.subr.bf16.mxu0 0
      %2860 = vmatpush1.bf16.msra.mxu0 0
      %2861 = vmatprep.subr.bf16.mxu0 0
      %2862 = vmatpush1.bf16.msra.mxu0 0
      %2863 = vmatprep.subr.bf16.mxu0 0
      %2864 = vmatpush1.bf16.msra.mxu0 0
      %2865 = vmatprep.subr.bf16.mxu0 0
      %2866 = vmatpush1.bf16.msra.mxu0 0
      %2867 = vmatprep.subr.bf16.mxu0 0
      %2868 = vmatpush1.bf16.msra.mxu0 0
      %2869 = vmatprep.subr.bf16.mxu0 0
      %2870 = vmatpush1.bf16.msra.mxu0 0
      %2871 = vmatprep.subr.bf16.mxu0 0
      %2872 = vmatpush1.bf16.msra.mxu0 0
      %2873 = vmatprep.mubr.bf16.mxu0 0
      %2874 = vmatmul.mubr.bf16.gmra.mrb[0].mxu0 %v2830
      %v2875 = vpop.f32.mrb[0].mxu0
      %v2876 = vadd.f32 0.0, %v2875
      %v2877 = vpop.f32.mrb[0].mxu0
      %v2878 = vadd.f32 0.0, %v2877
      %v2879 = vpop.f32.mrb[0].mxu0
      %v2880 = vadd.f32 0.0, %v2879
      %v2881 = vpop.f32.mrb[0].mxu0
      %v2882 = vadd.f32 0.0, %v2881
      %2883 = vmatprep.mubr.bf16.mxu0 0
      %2884 = vmatmul.mubr.bf16.gmra.mrb[0].mxu0 %v2833
      %v2885 = vpop.f32.mrb[0].mxu0
      %v2886 = vadd.f32 0.0, %v2885
      %v2887 = vpop.f32.mrb[0].mxu0
      %v2888 = vadd.f32 0.0, %v2887
      %v2889 = vpop.f32.mrb[0].mxu0
      %v2890 = vadd.f32 0.0, %v2889
      %v2891 = vpop.f32.mrb[0].mxu0
      %v2892 = vadd.f32 0.0, %v2891
      %2893 = vmatprep.mubr.bf16.mxu0 0
      %2894 = vmatmul.mubr.bf16.gmra.mrb[0].mxu0 %v2836
      %v2895 = vpop.f32.mrb[0].mxu0
      %v2896 = vadd.f32 0.0, %v2895
      %v2897 = vpop.f32.mrb[0].mxu0
      %v2898 = vadd.f32 0.0, %v2897
      %v2899 = vpop.f32.mrb[0].mxu0
      %v2900 = vadd.f32 0.0, %v2899
      %v2901 = vpop.f32.mrb[0].mxu0
      %v2902 = vadd.f32 0.0, %v2901
      %2903 = vmatprep.mubr.bf16.mxu0 0
      %2904 = vmatmul.mubr.bf16.gmra.mrb[0].mxu0 %v2839
      %v2905 = vpop.f32.mrb[0].mxu0
      %v2906 = vadd.f32 0.0, %v2905
      %v2907 = vpop.f32.mrb[0].mxu0
      %v2908 = vadd.f32 0.0, %v2907
      %v2909 = vpop.f32.mrb[0].mxu0
      %v2910 = vadd.f32 0.0, %v2909
      %v2911 = vpop.f32.mrb[0].mxu0
      %v2912 = vadd.f32 0.0, %v2911
      %2913 = vdwg.mxu0
      %v2914 = vpack.c.bf16 %v2880, %v2876
      %v2915 = vpack.c.bf16 %v2882, %v2878
      %v2916 = vpack.c.bf16 %v2890, %v2886
      %v2917 = vpack.c.bf16 %v2892, %v2888
      %v2918 = vpack.c.bf16 %v2900, %v2896
      %v2919 = vpack.c.bf16 %v2902, %v2898
      %v2920 = vpack.c.bf16 %v2910, %v2906
      %v2921 = vpack.c.bf16 %v2912, %v2908
      %2930 = vrot.lane.b32.xlu0 %v2914, 1
      %v2931 = vpop.permute.xlu0 %2930
      %2932 = vrot.lane.b32.xlu0 %v2915, 1
      %v2933 = vpop.permute.xlu0 %2932
      %2934 = vrot.lane.b32.xlu0 %v2916, 1
      %v2935 = vpop.permute.xlu0 %2934
      %2936 = vrot.lane.b32.xlu0 %v2917, 1
      %v2937 = vpop.permute.xlu0 %2936
      %2938 = vrot.lane.b32.xlu0 %v2918, 1
      %v2939 = vpop.permute.xlu0 %2938
      %2940 = vrot.lane.b32.xlu0 %v2919, 1
      %v2941 = vpop.permute.xlu0 %2940
      %2942 = vrot.lane.b32.xlu0 %v2920, 1
      %v2943 = vpop.permute.xlu0 %2942
      %2944 = vrot.lane.b32.xlu0 %v2921, 1
      %v2945 = vpop.permute.xlu0 %2944
      %v2946 = vsel %vm853, %v2931, %v2933
      %v2947 = vsel %vm853, %v2935, %v2937
      %v2948 = vsel %vm853, %v2939, %v2941
      %v2949 = vsel %vm853, %v2943, %v2945
      %v2955 = vsel %vm857, 0, %v2931
      %v2958 = vsel %vm857, 0, %v2935
      %v2961 = vsel %vm857, 0, %v2939
      %v2964 = vsel %vm857, 0, %v2943
      %2966 = vrot.lane.b32.xlu0 %v2914, 127
      %v2967 = vpop.permute.xlu0 %2966
      %2968 = vrot.lane.b32.xlu0 %v2915, 127
      %v2969 = vpop.permute.xlu0 %2968
      %2970 = vrot.lane.b32.xlu0 %v2916, 127
      %v2971 = vpop.permute.xlu0 %2970
      %2972 = vrot.lane.b32.xlu0 %v2917, 127
      %v2973 = vpop.permute.xlu0 %2972
      %2974 = vrot.lane.b32.xlu0 %v2918, 127
      %v2975 = vpop.permute.xlu0 %2974
      %2976 = vrot.lane.b32.xlu0 %v2919, 127
      %v2977 = vpop.permute.xlu0 %2976
      %2978 = vrot.lane.b32.xlu0 %v2920, 127
      %v2979 = vpop.permute.xlu0 %2978
      %2980 = vrot.lane.b32.xlu0 %v2921, 127
      %v2981 = vpop.permute.xlu0 %2980
      %v2982 = vsel %vm872, %v2967, %v2969
      %v2983 = vsel %vm872, %v2971, %v2973
      %v2984 = vsel %vm872, %v2975, %v2977
      %v2985 = vsel %vm872, %v2979, %v2981
      %v2991 = vsel %vm875, %v2969, 0
      %v2994 = vsel %vm875, %v2973, 0
      %v2997 = vsel %vm875, %v2977, 0
      %v3000 = vsel %vm875, %v2981, 0
      %v3002 = vld [vmem:[%s18] sm:$0xff]
      %v3003 = vld [vmem:[%s18 + $0x8] sm:$0xff]
      %v3004 = vld [vmem:[%s18 + $0x10] sm:$0x33]
      %v3005 = vld [vmem:[%s19] sm:$0xff]
      %v3006 = vld [vmem:[%s19 + $0x8] sm:$0xff]
      %v3007 = vld [vmem:[%s19 + $0x10] sm:$0xf]
      %3009 = vset.pattern.permute.xlu0 0
      %3010 = vperm.xlu0 %3009, %v3005
      %v3011 = vpop.permute.xlu0 %3010
      %3014 = vset.pattern.permute.xlu0 0
      %3015 = vperm.xlu0 %3014, %v3006
      %v3016 = vpop.permute.xlu0 %3015
      %3019 = vset.pattern.permute.xlu0 0
      %3020 = vperm.xlu0 %3019, %v3007
      %v3021 = vpop.permute.xlu0 %3020
      %v3026 = vunpack.c.l.b16 %v3002
      %v3027 = vunpack.c.h.b16 %v3002
      %v3028 = vunpack.c.l.b16 %v3003
      %v3029 = vunpack.c.h.b16 %v3003
      %v3030 = vunpack.c.l.b16 %v3004
      %v3031 = vunpack.c.h.b16 %v3004
      %v3032 = vpack.c.b16 %v3028, %v3026
      %v3033 = vpack.c.b16 %v3029, %v3027
      %v3034 = vpack.c.b16 %v3030, %v3030
      %v3035 = vpack.c.b16 %v3031, %v3031
      %v3039 = vsel %vm1278, %v3033, 0
      %v3042 = vsel %vm1278, %v3035, 0
      %3044 = vmatprep.subr.bf16.mxu0 %v2946
      %3045 = vmatpush1.bf16.msra.mxu0 %v2955
      %3046 = vmatprep.subr.bf16.mxu0 %v2947
      %3047 = vmatpush1.bf16.msra.mxu0 %v2958
      %3048 = vmatprep.subr.bf16.mxu0 %v2948
      %3049 = vmatpush1.bf16.msra.mxu0 %v2961
      %3050 = vmatprep.subr.bf16.mxu0 %v2949
      %3051 = vmatpush1.bf16.msra.mxu0 %v2964
      %3052 = vmatprep.subr.bf16.mxu0 %v2915
      %3053 = vmatpush1.bf16.msra.mxu0 %v2914
      %3054 = vmatprep.subr.bf16.mxu0 %v2917
      %3055 = vmatpush1.bf16.msra.mxu0 %v2916
      %3056 = vmatprep.subr.bf16.mxu0 %v2919
      %3057 = vmatpush1.bf16.msra.mxu0 %v2918
      %3058 = vmatprep.subr.bf16.mxu0 %v2921
      %3059 = vmatpush1.bf16.msra.mxu0 %v2920
      %3060 = vmatprep.subr.bf16.mxu0 %v2991
      %3061 = vmatpush1.bf16.msra.mxu0 %v2982
      %3062 = vmatprep.subr.bf16.mxu0 %v2994
      %3063 = vmatpush1.bf16.msra.mxu0 %v2983
      %3064 = vmatprep.subr.bf16.mxu0 %v2997
      %3065 = vmatpush1.bf16.msra.mxu0 %v2984
      %3066 = vmatprep.subr.bf16.mxu0 %v3000
      %3067 = vmatpush1.bf16.msra.mxu0 %v2985
      %3068 = vmatprep.subr.bf16.mxu0 0
      %3069 = vmatpush1.bf16.msra.mxu0 0
      %3070 = vmatprep.subr.bf16.mxu0 0
      %3071 = vmatpush1.bf16.msra.mxu0 0
      %3072 = vmatprep.subr.bf16.mxu0 0
      %3073 = vmatpush1.bf16.msra.mxu0 0
      %3074 = vmatprep.subr.bf16.mxu0 0
      %3075 = vmatpush1.bf16.msra.mxu0 0
      %3076 = vmatprep.mubr.bf16.mxu0 %v3039
      %3077 = vmatmul.mubr.bf16.gmra.mrb[0].mxu0 %v3032
      %v3078 = vpop.f32.mrb[0].mxu0
      %v3079 = vadd.f32 %v3011, %v3078
      %v3080 = vpop.f32.mrb[0].mxu0
      %v3081 = vadd.f32 %v3011, %v3080
      %v3082 = vpop.f32.mrb[0].mxu0
      %v3083 = vadd.f32 %v3016, %v3082
      %v3084 = vpop.f32.mrb[0].mxu0
      %v3085 = vadd.f32 %v3016, %v3084
      %3086 = vmatprep.mubr.bf16.mxu0 %v3042
      %3087 = vmatmul.mubr.bf16.gmra.mrb[0].mxu0 %v3034
      %v3088 = vpop.f32.mrb[0].mxu0
      %v3089 = vadd.f32 %v3021, %v3088
      %v3090 = vpop.f32.mrb[0].mxu0
      %v3091 = vadd.f32 %v3021, %v3090
      %v3092 = vpop.f32.mrb[0].mxu0
      %v3093 = vpop.f32.mrb[0].mxu0
      %3094 = vdwg.mxu0
      %3095 = vst [vmem:[%s821] sm:$0xff] %v3079
      %3096 = vst [vmem:[%s821 + $0x8] sm:$0xff] %v3081
      %3097 = vst [vmem:[%s821 + $0x10] sm:$0xff] %v3083
      %3098 = vst [vmem:[%s821 + $0x18] sm:$0xff] %v3085
      %3099 = vst [vmem:[%s821 + $0x20] sm:$0xf] %v3089
      %3100 = vst [vmem:[%s821 + $0x28] sm:$0xf] %v3091
      %p3101 = scmp.lt.s32.totalorder %s38, 1
      %s3102 = scalar_select %p3101, %s38, 1
      %s3103 = smul.addr %s3102, 6
      %s3104 = smul.addr %s3103, 8
      %s3105 = scalar_lea.vmem %s24, %s3104
      %p3106 = scmp.lt.s32.totalorder %s38, 1
      %s3107 = scalar_select %p3106, %s38, 1
      %s3108 = smul.addr %s3107, 4
      %s3109 = scalar_lea.vmem %s25, %s3108
      %p3110 = scmp.lt.s32.totalorder %s38, 1
      %s3111 = scalar_select %p3110, %s38, 1
      %s3112 = smul.addr %s3111, 4
      %s3113 = scalar_lea.vmem %s26, %s3112
      // Predicated region
      $region117: #{vae_forward.1} parent=115 // pred_check
        %p3114 = pneg %p570
      $region118: #{vae_forward.1} parent=115 // pred_check_branch
        %3116 = sbr.rel (%p3114) target = $region120
      $region119: #{vae_forward.1} parent=115 // pred_region
        _
      $region120: #{vae_forward.1} parent=115 // pred_fallthru
        _
      // Predicated region
      $region121: #{vae_forward.1} parent=115 // pred_check
        %p3117 = pneg %p596
      $region122: #{vae_forward.1} parent=115 // pred_check_branch
        %3119 = sbr.rel (%p3117) target = $region124
      $region123: #{vae_forward.1} parent=115 // pred_region
        _
      $region124: #{vae_forward.1} parent=115 // pred_fallthru
        _
      // Predicated region
      $region125: #{vae_forward.1} parent=115 // pred_check
        %p3120 = pneg %p622
      $region126: #{vae_forward.1} parent=115 // pred_check_branch
        %3122 = sbr.rel (%p3120) target = $region128
      $region127: #{vae_forward.1} parent=115 // pred_region
        _
      $region128: #{vae_forward.1} parent=115 // pred_fallthru
        _
    $region116: #{vae_forward.1} parent=5 // pred_fallthru
      _
    %p3123 = scmp.le.s32.totalorder 2, %s33
    // Predicated region
    $region129: #{vae_forward.1} parent=5 // pred_check
      %p3124 = pneg %p3123
    $region130: #{vae_forward.1} parent=5 // pred_check_branch
      %3126 = sbr.rel (%p3124) target = $region132
    $region131: #{vae_forward.1} parent=5 // pred_region
      %s3127 = ssub.s32 %s33, 2
      // Predicated region
      $region133: #{vae_forward.1} parent=131 // pred_check
        %p3128 = pneg %p576
      $region134: #{vae_forward.1} parent=131 // pred_check_branch
        %3130 = sbr.rel (%p3128) target = $region136
      $region135: #{vae_forward.1} parent=131 // pred_region
        %p3131 = scmp.lt.s32.totalorder %s39, 1
        %s3132 = scalar_select %p3131, %s39, 1
        %s3133 = smul.addr %s3132, 6
        %s3134 = smul.addr %s3133, 8
        %s3135 = scalar_lea.vmem %s24, %s3134
      $region136: #{vae_forward.1} parent=131 // pred_fallthru
        _
      // Predicated region
      $region137: #{vae_forward.1} parent=131 // pred_check
        %p3136 = pneg %p602
      $region138: #{vae_forward.1} parent=131 // pred_check_branch
        %3138 = sbr.rel (%p3136) target = $region140
      $region139: #{vae_forward.1} parent=131 // pred_region
        %p3139 = scmp.lt.s32.totalorder %s39, 1
        %s3140 = scalar_select %p3139, %s39, 1
        %s3141 = smul.addr %s3140, 4
        %s3142 = scalar_lea.vmem %s25, %s3141
      $region140: #{vae_forward.1} parent=131 // pred_fallthru
        _
      // Predicated region
      $region141: #{vae_forward.1} parent=131 // pred_check
        %p3143 = pneg %p628
      $region142: #{vae_forward.1} parent=131 // pred_check_branch
        %3145 = sbr.rel (%p3143) target = $region144
      $region143: #{vae_forward.1} parent=131 // pred_region
        %p3146 = scmp.lt.s32.totalorder %s39, 1
        %s3147 = scalar_select %p3146, %s39, 1
        %s3148 = smul.addr %s3147, 4
        %s3149 = scalar_lea.vmem %s26, %s3148
      $region144: #{vae_forward.1} parent=131 // pred_fallthru
        _
    $region132: #{vae_forward.1} parent=5 // pred_fallthru
      _
  $region6: #{vae_forward.1} parent=0 // loop_footer
    %s37 = sadd.s32 1, %s33
  $region7: #{vae_forward.1} parent=0 // loop_footer_branch
    %32 = sbr.rel target = $region3
  $region8: #{vae_forward.1} parent=0 // loop_exit
    _

</llo_original>
